<compile_context>
chip_gen: v7x
topology: tpu7x:2x2x1
jax: 0.10.0
libtpu: 0.0.40
codegen_flags: <defaults>
</compile_context>

<pallas_src>
import functools

import jax
import jax.numpy as jnp
from jax import lax
from jax.experimental import pallas as pl
from jax.experimental.pallas import tpu as pltpu

K = 3            # conv kernel size
KT = K ** 3      # 27 taps
ALPHA = 0.1      # LeakyReLU slope
EPS = 1e-5       # InstanceNorm eps (PyTorch default)
LANE = 128
CK = 512         # lane chunk for the in-kernel spatial loop (multiple of 128)


def _rup(a, m):
    return -(-a // m) * m


def _chunks(total, ck):
    out, s = [], 0
    while s < total:
        sz = min(ck, total - s)
        out.append((s, sz))
        s += sz
    return tuple(out)


# ---------------------------------------------------------------------------
# Pass 1: fused conv1 + conv2 + partial InstanceNorm statistics (one D-slab tile).
# ---------------------------------------------------------------------------
def _fused_conv_kernel(g_ref, mask_ref, w1_ref, b1_ref, w2_ref, b2_ref,
                       o_ref, stat_ref, o1e_ref,
                       *, p, wp, r, ts, chunks_a, chunks_b):
    # g_ref    : (1, 1, Cin8, Lin) bf16  halo'd flattened input window (channels zero-padded to 8)
    # mask_ref : (1, 1, LA)        f32   interior mask at conv1-output (o1e) positions
    # w1_ref   : (Cmid, 27*Cin8)   bf16  conv1 weights, taps folded into the contraction
    # b1_ref   : (Cmid, 1)         f32
    # w2_ref   : (Cout, 27*Cmid)   bf16  conv2 weights, taps folded into the contraction
    # b2_ref   : (Cout, 1)         f32
    # o_ref    : (1, 1, Cout, TSR) bf16  conv2 output tile (pre-norm), lane-dense
    # stat_ref : (1, 1, Cout, 2)   f32   [masked sum, masked sum of squares]
    # o1e_ref  : (Cmid, LA)        bf16  scratch: conv1 output incl. emulated zero-padding ring
    w1 = w1_ref[...]
    w2 = w2_ref[...]
    b1 = b1_ref[...]
    b2 = b2_ref[...]
    cout = b2.shape[0]
    offs = tuple(kd * p + kh * wp + kw
                 for kd in range(K) for kh in range(K) for kw in range(K))

    # ---- phase A: conv1 as one tap-folded MXU contraction per chunk, masked ring, bf16 scratch
    for s, ck in chunks_a:
        stk = jnp.concatenate([g_ref[0, 0, :, s + o: s + o + ck] for o in offs],
                              axis=0)                                  # (27*Cin8, ck) bf16
        acc = jnp.dot(w1, stk, preferred_element_type=jnp.float32)     # (Cmid, ck) f32
        o1 = (acc + b1) * mask_ref[0, :, s: s + ck]                    # zero the padding ring
        o1e_ref[:, s: s + ck] = o1.astype(o1e_ref.dtype)

    # ---- phase B: conv2 (tap-folded) + partial InstanceNorm statistics (from the f32 values)
    s1 = jnp.zeros((cout, 1), jnp.float32)
    s2 = jnp.zeros((cout, 1), jnp.float32)
    for s, ck in chunks_b:
        stk = jnp.concatenate([o1e_ref[:, s + o: s + o + ck] for o in offs],
                              axis=0)                                  # (27*Cmid, ck) bf16
        o2 = jnp.dot(w2, stk, preferred_element_type=jnp.float32) + b2  # (Cout, ck) f32
        o_ref[0, 0, :, s: s + ck] = o2.astype(o_ref.dtype)
        # valid-output-voxel mask = ring mask shifted by r, with the 128-padding tail dropped
        vm = mask_ref[0, :, r + s: r + s + ck]
        lanes = lax.broadcasted_iota(jnp.int32, (1, ck), 1) + s
        vm = vm * (lanes < ts).astype(jnp.float32)
        o2m = o2 * vm
        s1 = s1 + jnp.sum(o2m, axis=-1, keepdims=True)
        s2 = s2 + jnp.sum(o2m * o2, axis=-1, keepdims=True)
    stat_ref[0, 0] = jnp.concatenate([s1, s2], axis=1)                 # (Cout, 2)


# ---------------------------------------------------------------------------
# Pass 2: normalize + LeakyReLU (cheap, 3-channel sweep over lane-dense tiles).
# ---------------------------------------------------------------------------
def _norm_act_kernel(o_ref, mean_ref, inv_ref, y_ref):
    xn = (o_ref[0, 0].astype(jnp.float32) - mean_ref[0]) * inv_ref[0]
    y_ref[0, 0] = jnp.where(xn > 0, xn, ALPHA * xn)


# ---------------------------------------------------------------------------
# Forward pass (ConvInsBlock.forward)
# ---------------------------------------------------------------------------
@functools.partial(jax.jit, static_argnames=("td",))
def conv_ins_block_forward(x, y, w1, b1, w2, b2, *, td=None):
    n, cx, d, h, w = x.shape
    cin = cx + y.shape[1]
    cin_p = _rup(cin, 8)         # sublane-pad the input channels (6 -> 8)
    cmid = w1.shape[0]           # 32
    cout = w2.shape[0]           # 3

    if td is None:
        td = min(4, d)
        while td > 1 and n * (-(-d // td)) < 4:   # >=4 parallel grid steps for v7x megacore
            td -= 1

    nt = -(-d // td)             # number of D-slab tiles
    d_pad = nt * td
    hp, wp = h + 4, w + 4        # spatial dims padded by 2 on each side
    p = hp * wp                  # flattened plane size
    r = p + wp + 1               # flat offset of the (+1,+1,+1) tap
    ts = td * p                  # conv2 output positions per tile (= tile stride)
    tsr = _rup(ts, LANE)         # lane-dense tile length (tail masked from statistics)
    la = _rup(tsr + 2 * r, LANE)  # conv1 (o1e) positions computed per tile
    lin = _rup(la + 2 * r, LANE)  # input positions needed per tile
    chunks_a = _chunks(la, CK)
    chunks_b = _chunks(tsr, CK)

    # -------- XLA-side plumbing (only 6 input / 3 output channels touch HBM) --------
    u = jnp.concatenate([x, y], axis=1)
    u = jnp.pad(u, ((0, 0), (0, cin_p - cin),
                    (2, 2 + d_pad - d), (2, 2), (2, 2)))               # (N, 8, Dp+4, hp, wp)
    upf = u.reshape(n, cin_p, (d_pad + 4) * p)
    need = (nt - 1) * ts + lin
    upf = jnp.pad(upf, ((0, 0), (0, 0), (0, max(0, need - upf.shape[-1]))))
    # overlapping halo'd windows (stride ts, length lin) -- small halo, not an im2col.
    # TODO(synk): replace with an element-offset index_map / manual DMA to avoid this HBM copy.
    g = jnp.stack([lax.slice_in_dim(upf, t * ts, t * ts + lin, axis=2)
                   for t in range(nt)], axis=1).astype(jnp.bfloat16)   # (N, nt, 8, lin)

    # interior mask at o1e positions: 1 exactly where conv1 produces a real output voxel,
    # 0 on the emulated zero-padding ring / D-rounding slack.  Shifted by r it also selects the
    # valid conv2 output voxels for the InstanceNorm statistics.
    maskA = jnp.zeros((d_pad + 4, hp, wp), jnp.float32)
    maskA = maskA.at[1:d + 1, 1:h + 1, 1:w + 1].set(1.0)
    maskAf = maskA.reshape(-1)
    need_m = (nt - 1) * ts + la
    maskAf = jnp.pad(maskAf, (0, max(0, need_m - maskAf.shape[0])))
    mg = jnp.stack([lax.slice_in_dim(maskAf, t * ts, t * ts + la, axis=0)
                    for t in range(nt)], axis=0).reshape(nt, 1, la)

    # tap-folded weights: contraction index = ((kd*3+kh)*3+kw)*C + c
    w1f = jnp.transpose(w1, (0, 2, 3, 4, 1))
    w1f = jnp.pad(w1f, ((0, 0), (0, 0), (0, 0), (0, 0), (0, cin_p - cin)))
    w1f = w1f.reshape(cmid, KT * cin_p).astype(jnp.bfloat16)           # (32, 216)
    w2f = jnp.transpose(w2, (0, 2, 3, 4, 1)).reshape(cout, KT * cmid).astype(jnp.bfloat16)  # (3, 864)
    b1c = b1.reshape(cmid, 1).astype(jnp.float32)
    b2c = b2.reshape(cout, 1).astype(jnp.float32)

    kernel = functools.partial(_fused_conv_kernel, p=p, wp=wp, r=r, ts=ts,
                               chunks_a=chunks_a, chunks_b=chunks_b)

    # VMEM budget (double-buffered blocks + scratch + staging), with headroom; cap for v7x 64 MiB.
    ckmax = min(CK, max(tsr, la))
    vmem_bytes = (2 * cin_p * lin * 2 + 2 * la * 4
                  + w1f.size * 2 + w2f.size * 2 + (cmid + cout) * 4
                  + 2 * cout * tsr * 2 + 2 * cout * 2 * 4
                  + cmid * la * 2
                  + 3 * KT * cmid * ckmax * 2 + 4 * cmid * ckmax * 4)
    vmem_limit = int(min(60 * 2 ** 20, max(32 * 2 ** 20, 2 * vmem_bytes)))

    flops = 2 * n * nt * (cmid * KT * cin_p * la + cout * KT * cmid * tsr)
    bytes_accessed = (g.size * 2 + n * mg.size * 4 + (w1f.size + w2f.size) * 2
                      + n * nt * cout * (tsr * 2 + 8))

    o2_t, stats = pl.pallas_call(
        kernel,
        grid=(n, nt),
        in_specs=[
            pl.BlockSpec((1, 1, cin_p, lin), lambda i, t: (i, t, 0, 0)),     # input windows
            pl.BlockSpec((1, 1, la), lambda i, t: (t, 0, 0)),                # interior mask
            pl.BlockSpec((cmid, KT * cin_p), lambda i, t: (0, 0)),           # W1 (resident)
            pl.BlockSpec((cmid, 1), lambda i, t: (0, 0)),                    # b1
            pl.BlockSpec((cout, KT * cmid), lambda i, t: (0, 0)),            # W2 (resident)
            pl.BlockSpec((cout, 1), lambda i, t: (0, 0)),                    # b2
        ],
        out_specs=[
            pl.BlockSpec((1, 1, cout, tsr), lambda i, t: (i, t, 0, 0)),      # conv2 tiles (bf16)
            pl.BlockSpec((1, 1, cout, 2), lambda i, t: (i, t, 0, 0)),        # per-tile stats
        ],
        out_shape=[
            jax.ShapeDtypeStruct((n, nt, cout, tsr), jnp.bfloat16),
            jax.ShapeDtypeStruct((n, nt, cout, 2), jnp.float32),
        ],
        scratch_shapes=[pltpu.VMEM((cmid, la), jnp.bfloat16)],
        compiler_params=pltpu.CompilerParams(
            dimension_semantics=("parallel", "parallel"),
            vmem_limit_bytes=vmem_limit),
        cost_estimate=pl.CostEstimate(flops=flops, transcendentals=0,
                                      bytes_accessed=bytes_accessed),
    )(g, mg, w1f, b1c, w2f, b2c)

    # -------- finalize InstanceNorm statistics (N*Cout scalars, biased variance) --------
    count = float(d * h * w)
    tot = jnp.sum(stats, axis=1)                      # (N, Cout, 2)
    mean = tot[..., 0] / count
    # TODO(synk): E[x^2]-mean^2 can cancel when |mean| >> std on huge volumes; switch to a
    #             per-tile-shifted / Welford merge of the per-tile stats if that regime matters.
    var = tot[..., 1] / count - mean * mean
    inv = lax.rsqrt(var + EPS)
    mean = mean.reshape(n, cout, 1)
    inv = inv.reshape(n, cout, 1)

    y_t = pl.pallas_call(
        _norm_act_kernel,
        grid=(n, nt),
        in_specs=[
            pl.BlockSpec((1, 1, cout, tsr), lambda i, t: (i, t, 0, 0)),
            pl.BlockSpec((1, cout, 1), lambda i, t: (i, 0, 0)),
            pl.BlockSpec((1, cout, 1), lambda i, t: (i, 0, 0)),
        ],
        out_specs=pl.BlockSpec((1, 1, cout, tsr), lambda i, t: (i, t, 0, 0)),
        out_shape=jax.ShapeDtypeStruct((n, nt, cout, tsr), jnp.float32),
        compiler_params=pltpu.CompilerParams(
            dimension_semantics=("parallel", "parallel")),
    )(o2_t, mean, inv)

    # -------- un-tile / crop (3 output channels, one fused XLA pass) --------
    out = y_t[..., :ts].reshape(n, nt, cout, td, hp, wp)
    out = out.transpose(0, 2, 1, 3, 4, 5).reshape(n, cout, d_pad, hp, wp)
    return out[:, :, :d, :h, :w]


# ---------------------------------------------------------------------------
# Pure-JAX reference (semantic ground truth, f32 HIGHEST)
# ---------------------------------------------------------------------------
def _ref_forward(x, y, w1, b1, w2, b2):
    inp = jnp.concatenate([x, y], axis=1)
    dn1 = lax.conv_dimension_numbers(inp.shape, w1.shape, ('NCDHW', 'OIDHW', 'NCDHW'))
    o1 = lax.conv_general_dilated(inp, w1, (1, 1, 1), [(1, 1)] * 3,
                                  dimension_numbers=dn1, precision=lax.Precision.HIGHEST)
    o1 = o1 + b1[None, :, None, None, None]
    dn2 = lax.conv_dimension_numbers(o1.shape, w2.shape, ('NCDHW', 'OIDHW', 'NCDHW'))
    o2 = lax.conv_general_dilated(o1, w2, (1, 1, 1), [(1, 1)] * 3,
                                  dimension_numbers=dn2, precision=lax.Precision.HIGHEST)
    o2 = o2 + b2[None, :, None, None, None]
    mean = o2.mean(axis=(2, 3, 4), keepdims=True)
    var = ((o2 - mean) ** 2).mean(axis=(2, 3, 4), keepdims=True)
    xn = (o2 - mean) * lax.rsqrt(var + EPS)
    return jnp.where(xn > 0, xn, ALPHA * xn)


if __name__ == "__main__":
    N, CX, CY, D, H, W = 2, 3, 3, 8, 8, 8
    C_MID, C_OUT = 32, 3

    key = jax.random.PRNGKey(0)
    kx, ky, kw1, kb1, kw2, kb2 = jax.random.split(key, 6)

    x = jax.random.normal(kx, (N, CX, D, H, W), jnp.float32)
    y = jax.random.normal(ky, (N, CY, D, H, W), jnp.float32)

    fan1 = (CX + CY) * K ** 3
    fan2 = C_MID * K ** 3
    w1 = jax.random.uniform(kw1, (C_MID, CX + CY, K, K, K), jnp.float32, -1.0, 1.0) / jnp.sqrt(fan1)
    b1 = jax.random.uniform(kb1, (C_MID,), jnp.float32, -1.0, 1.0) / jnp.sqrt(fan1)
    w2 = jax.random.uniform(kw2, (C_OUT, C_MID, K, K, K), jnp.float32, -1.0, 1.0) / jnp.sqrt(fan2)
    b2 = jax.random.uniform(kb2, (C_OUT,), jnp.float32, -1.0, 1.0) / jnp.sqrt(fan2)

    ref = _ref_forward(x, y, w1, b1, w2, b2)

    # td=4 -> D tiles evenly; td=3 -> exercises the D-rounding / mask / uneven-chunk paths.
    for td in (4, 3):
        out = jax.block_until_ready(conv_ins_block_forward(x, y, w1, b1, w2, b2, td=td))
        assert out.shape == (N, C_OUT, D, H, W), out.shape
        max_err = float(jnp.max(jnp.abs(out - ref)))
        # bf16 MXU path: inputs/weights/o1 and the stored conv2 intermediate are bf16
        # (f32 accumulation + f32 statistics); InstanceNorm amplifies the rounding by
        # |o2 - mean| / std, hence the looser-than-f32 bound.
        assert max_err < 5e-2, f"td={td}: max abs error {max_err}"

    print("KERNEL_OK")
</pallas_src>

<mosaic_0001>
module attributes {stable_mosaic.version = 11 : i64} {
  func.func @_norm_act_kernel(%arg0: i32, %arg1: i32, %arg2: memref<1x1x3x640xbf16, #tpu.memory_space<vmem>>, %arg3: memref<1x3x1xf32, #tpu.memory_space<vmem>>, %arg4: memref<1x3x1xf32, #tpu.memory_space<vmem>>, %arg5: memref<1x1x3x640xf32, #tpu.memory_space<vmem>>) attributes {dimension_semantics = [#tpu.dimension_semantics<parallel>, #tpu.dimension_semantics<parallel>], iteration_bounds = array<i64: 2, 2>, scalar_prefetch = 0 : i64, scratch_operands = 0 : i64, tpu.core_type = #tpu.core_type<tc>, window_params = [{transform_indices = @transform_0, window_bounds = array<i64: 1, 1, 3, 640>}, {transform_indices = @transform_1, window_bounds = array<i64: 1, 3, 1>}, {transform_indices = @transform_2, window_bounds = array<i64: 1, 3, 1>}, {transform_indices = @transform_3, window_bounds = array<i64: 1, 1, 3, 640>}]} {
    %c0 = arith.constant 0 : index
    %c0_0 = arith.constant 0 : index
    %c0_1 = arith.constant 0 : index
    %c0_2 = arith.constant 0 : index
    %0 = vector.load %arg2[%c0, %c0_0, %c0_1, %c0_2] : memref<1x1x3x640xbf16, #tpu.memory_space<vmem>>, vector<1x1x3x640xbf16>
    %1 = vector.shape_cast %0 : vector<1x1x3x640xbf16> to vector<3x640xbf16>
    %2 = arith.extf %1 : vector<3x640xbf16> to vector<3x640xf32>
    %c0_3 = arith.constant 0 : index
    %c0_4 = arith.constant 0 : index
    %c0_5 = arith.constant 0 : index
    %3 = vector.load %arg3[%c0_3, %c0_4, %c0_5] : memref<1x3x1xf32, #tpu.memory_space<vmem>>, vector<1x3x1xf32>
    %4 = vector.shape_cast %3 : vector<1x3x1xf32> to vector<3x1xf32>
    %5 = vector.broadcast %4 : vector<3x1xf32> to vector<3x640xf32>
    %6 = arith.subf %2, %5 : vector<3x640xf32>
    %c0_6 = arith.constant 0 : index
    %c0_7 = arith.constant 0 : index
    %c0_8 = arith.constant 0 : index
    %7 = vector.load %arg4[%c0_6, %c0_7, %c0_8] : memref<1x3x1xf32, #tpu.memory_space<vmem>>, vector<1x3x1xf32>
    %8 = vector.shape_cast %7 : vector<1x3x1xf32> to vector<3x1xf32>
    %9 = vector.broadcast %8 : vector<3x1xf32> to vector<3x640xf32>
    %10 = arith.mulf %6, %9 : vector<3x640xf32>
    %cst = arith.constant 0.000000e+00 : f32
    %11 = vector.broadcast %cst : f32 to vector<3x640xf32>
    %12 = arith.cmpf ogt, %10, %11 : vector<3x640xf32>
    %cst_9 = arith.constant 1.000000e-01 : f32
    %13 = vector.broadcast %cst_9 : f32 to vector<3x640xf32>
    %14 = arith.mulf %13, %10 : vector<3x640xf32>
    %15 = arith.select %12, %10, %14 : vector<3x640xi1>, vector<3x640xf32>
    %c0_10 = arith.constant 0 : index
    %c0_11 = arith.constant 0 : index
    %c0_12 = arith.constant 0 : index
    %c0_13 = arith.constant 0 : index
    %16 = vector.load %arg5[%c0_10, %c0_11, %c0_12, %c0_13] : memref<1x1x3x640xf32, #tpu.memory_space<vmem>>, vector<1x1x3x640xf32>
    %17 = vector.shape_cast %16 : vector<1x1x3x640xf32> to vector<3x640xf32>
    %18 = vector.shape_cast %15 : vector<3x640xf32> to vector<1x1x3x640xf32>
    tpu.vector_store %arg5[%c0_10, %c0_11, %c0_12, %c0_13], %18 {strides = array<i32>} : memref<1x1x3x640xf32, #tpu.memory_space<vmem>>, vector<1x1x3x640xf32>,
    return
  }
  func.func @transform_0(%arg0: i32, %arg1: i32) -> (i32, i32, i32, i32) {
    %c0_i32 = arith.constant 0 : i32
    %c0_i32_0 = arith.constant 0 : i32
    %c0_i32_1 = arith.constant 0 : i32
    return %arg0, %arg1, %c0_i32, %c0_i32_0 : i32, i32, i32, i32
  }
  func.func @transform_1(%arg0: i32, %arg1: i32) -> (i32, i32, i32) {
    %c0_i32 = arith.constant 0 : i32
    %c0_i32_0 = arith.constant 0 : i32
    %c0_i32_1 = arith.constant 0 : i32
    return %arg0, %c0_i32, %c0_i32_0 : i32, i32, i32
  }
  func.func @transform_2(%arg0: i32, %arg1: i32) -> (i32, i32, i32) {
    %c0_i32 = arith.constant 0 : i32
    %c0_i32_0 = arith.constant 0 : i32
    %c0_i32_1 = arith.constant 0 : i32
    return %arg0, %c0_i32, %c0_i32_0 : i32, i32, i32
  }
  func.func @transform_3(%arg0: i32, %arg1: i32) -> (i32, i32, i32, i32) {
    %c0_i32 = arith.constant 0 : i32
    %c0_i32_0 = arith.constant 0 : i32
    %c0_i32_1 = arith.constant 0 : i32
    return %arg0, %arg1, %c0_i32, %c0_i32_0 : i32, i32, i32, i32
  }
}

module attributes {stable_mosaic.version = 11 : i64} {
  func.func @_fused_conv_kernel(%arg0: i32, %arg1: i32, %arg2: memref<1x1x8x1408xbf16, #tpu.memory_space<vmem>>, %arg3: memref<1x1x1024xf32, #tpu.memory_space<vmem>>, %arg4: memref<32x216xbf16, #tpu.memory_space<vmem>>, %arg5: memref<32x1xf32, #tpu.memory_space<vmem>>, %arg6: memref<3x864xbf16, #tpu.memory_space<vmem>>, %arg7: memref<3x1xf32, #tpu.memory_space<vmem>>, %arg8: memref<1x1x3x640xbf16, #tpu.memory_space<vmem>>, %arg9: memref<1x1x3x2xf32, #tpu.memory_space<vmem>>, %arg10: memref<32x1024xbf16, #tpu.memory_space<vmem>>) attributes {dimension_semantics = [#tpu.dimension_semantics<parallel>, #tpu.dimension_semantics<parallel>], iteration_bounds = array<i64: 2, 2>, scalar_prefetch = 0 : i64, scratch_operands = 1 : i64, tpu.core_type = #tpu.core_type<tc>, window_params = [{transform_indices = @transform_0, window_bounds = array<i64: 1, 1, 8, 1408>}, {transform_indices = @transform_1, window_bounds = array<i64: 1, 1, 1024>}, {pipeline_mode = #tpu.pipeline_mode<synchronous>, transform_indices = @transform_2, window_bounds = array<i64: 32, 216>}, {pipeline_mode = #tpu.pipeline_mode<synchronous>, transform_indices = @transform_3, window_bounds = array<i64: 32, 1>}, {pipeline_mode = #tpu.pipeline_mode<synchronous>, transform_indices = @transform_4, window_bounds = array<i64: 3, 864>}, {pipeline_mode = #tpu.pipeline_mode<synchronous>, transform_indices = @transform_5, window_bounds = array<i64: 3, 1>}, {transform_indices = @transform_6, window_bounds = array<i64: 1, 1, 3, 640>}, {transform_indices = @transform_7, window_bounds = array<i64: 1, 1, 3, 2>}]} {
    %c0 = arith.constant 0 : index
    %c0_0 = arith.constant 0 : index
    %0 = vector.load %arg4[%c0, %c0_0] : memref<32x216xbf16, #tpu.memory_space<vmem>>, vector<32x216xbf16>
    %c0_1 = arith.constant 0 : index
    %c0_2 = arith.constant 0 : index
    %1 = vector.load %arg6[%c0_1, %c0_2] : memref<3x864xbf16, #tpu.memory_space<vmem>>, vector<3x864xbf16>
    %c0_3 = arith.constant 0 : index
    %c0_4 = arith.constant 0 : index
    %2 = vector.load %arg5[%c0_3, %c0_4] : memref<32x1xf32, #tpu.memory_space<vmem>>, vector<32x1xf32>
    %c0_5 = arith.constant 0 : index
    %c0_6 = arith.constant 0 : index
    %3 = vector.load %arg7[%c0_5, %c0_6] : memref<3x1xf32, #tpu.memory_space<vmem>>, vector<3x1xf32>
    %c0_7 = arith.constant 0 : index
    %c0_8 = arith.constant 0 : index
    %c0_9 = arith.constant 0 : index
    %c0_10 = arith.constant 0 : index
    %4 = vector.load %arg2[%c0_7, %c0_8, %c0_9, %c0_10] : memref<1x1x8x1408xbf16, #tpu.memory_space<vmem>>, vector<1x1x8x512xbf16>
    %5 = vector.shape_cast %4 : vector<1x1x8x512xbf16> to vector<8x512xbf16>
    %c0_11 = arith.constant 0 : index
    %c0_12 = arith.constant 0 : index
    %c0_13 = arith.constant 0 : index
    %c1 = arith.constant 1 : index
    %6 = vector.load %arg2[%c0_11, %c0_12, %c0_13, %c1] : memref<1x1x8x1408xbf16, #tpu.memory_space<vmem>>, vector<1x1x8x512xbf16>
    %7 = vector.shape_cast %6 : vector<1x1x8x512xbf16> to vector<8x512xbf16>
    %c0_14 = arith.constant 0 : index
    %c0_15 = arith.constant 0 : index
    %c0_16 = arith.constant 0 : index
    %c2 = arith.constant 2 : index
    %8 = vector.load %arg2[%c0_14, %c0_15, %c0_16, %c2] : memref<1x1x8x1408xbf16, #tpu.memory_space<vmem>>, vector<1x1x8x512xbf16>
    %9 = vector.shape_cast %8 : vector<1x1x8x512xbf16> to vector<8x512xbf16>
    %c0_17 = arith.constant 0 : index
    %c0_18 = arith.constant 0 : index
    %c0_19 = arith.constant 0 : index
    %c12 = arith.constant 12 : index
    %10 = vector.load %arg2[%c0_17, %c0_18, %c0_19, %c12] : memref<1x1x8x1408xbf16, #tpu.memory_space<vmem>>, vector<1x1x8x512xbf16>
    %11 = vector.shape_cast %10 : vector<1x1x8x512xbf16> to vector<8x512xbf16>
    %c0_20 = arith.constant 0 : index
    %c0_21 = arith.constant 0 : index
    %c0_22 = arith.constant 0 : index
    %c13 = arith.constant 13 : index
    %12 = vector.load %arg2[%c0_20, %c0_21, %c0_22, %c13] : memref<1x1x8x1408xbf16, #tpu.memory_space<vmem>>, vector<1x1x8x512xbf16>
    %13 = vector.shape_cast %12 : vector<1x1x8x512xbf16> to vector<8x512xbf16>
    %c0_23 = arith.constant 0 : index
    %c0_24 = arith.constant 0 : index
    %c0_25 = arith.constant 0 : index
    %c14 = arith.constant 14 : index
    %14 = vector.load %arg2[%c0_23, %c0_24, %c0_25, %c14] : memref<1x1x8x1408xbf16, #tpu.memory_space<vmem>>, vector<1x1x8x512xbf16>
    %15 = vector.shape_cast %14 : vector<1x1x8x512xbf16> to vector<8x512xbf16>
    %c0_26 = arith.constant 0 : index
    %c0_27 = arith.constant 0 : index
    %c0_28 = arith.constant 0 : index
    %c24 = arith.constant 24 : index
    %16 = vector.load %arg2[%c0_26, %c0_27, %c0_28, %c24] : memref<1x1x8x1408xbf16, #tpu.memory_space<vmem>>, vector<1x1x8x512xbf16>
    %17 = vector.shape_cast %16 : vector<1x1x8x512xbf16> to vector<8x512xbf16>
    %c0_29 = arith.constant 0 : index
    %c0_30 = arith.constant 0 : index
    %c0_31 = arith.constant 0 : index
    %c25 = arith.constant 25 : index
    %18 = vector.load %arg2[%c0_29, %c0_30, %c0_31, %c25] : memref<1x1x8x1408xbf16, #tpu.memory_space<vmem>>, vector<1x1x8x512xbf16>
    %19 = vector.shape_cast %18 : vector<1x1x8x512xbf16> to vector<8x512xbf16>
    %c0_32 = arith.constant 0 : index
    %c0_33 = arith.constant 0 : index
    %c0_34 = arith.constant 0 : index
    %c26 = arith.constant 26 : index
    %20 = vector.load %arg2[%c0_32, %c0_33, %c0_34, %c26] : memref<1x1x8x1408xbf16, #tpu.memory_space<vmem>>, vector<1x1x8x512xbf16>
    %21 = vector.shape_cast %20 : vector<1x1x8x512xbf16> to vector<8x512xbf16>
    %c0_35 = arith.constant 0 : index
    %c0_36 = arith.constant 0 : index
    %c0_37 = arith.constant 0 : index
    %c144 = arith.constant 144 : index
    %22 = vector.load %arg2[%c0_35, %c0_36, %c0_37, %c144] : memref<1x1x8x1408xbf16, #tpu.memory_space<vmem>>, vector<1x1x8x512xbf16>
    %23 = vector.shape_cast %22 : vector<1x1x8x512xbf16> to vector<8x512xbf16>
    %c0_38 = arith.constant 0 : index
    %c0_39 = arith.constant 0 : index
    %c0_40 = arith.constant 0 : index
    %c145 = arith.constant 145 : index
    %24 = vector.load %arg2[%c0_38, %c0_39, %c0_40, %c145] : memref<1x1x8x1408xbf16, #tpu.memory_space<vmem>>, vector<1x1x8x512xbf16>
    %25 = vector.shape_cast %24 : vector<1x1x8x512xbf16> to vector<8x512xbf16>
    %c0_41 = arith.constant 0 : index
    %c0_42 = arith.constant 0 : index
    %c0_43 = arith.constant 0 : index
    %c146 = arith.constant 146 : index
    %26 = vector.load %arg2[%c0_41, %c0_42, %c0_43, %c146] : memref<1x1x8x1408xbf16, #tpu.memory_space<vmem>>, vector<1x1x8x512xbf16>
    %27 = vector.shape_cast %26 : vector<1x1x8x512xbf16> to vector<8x512xbf16>
    %c0_44 = arith.constant 0 : index
    %c0_45 = arith.constant 0 : index
    %c0_46 = arith.constant 0 : index
    %c156 = arith.constant 156 : index
    %28 = vector.load %arg2[%c0_44, %c0_45, %c0_46, %c156] : memref<1x1x8x1408xbf16, #tpu.memory_space<vmem>>, vector<1x1x8x512xbf16>
    %29 = vector.shape_cast %28 : vector<1x1x8x512xbf16> to vector<8x512xbf16>
    %c0_47 = arith.constant 0 : index
    %c0_48 = arith.constant 0 : index
    %c0_49 = arith.constant 0 : index
    %c157 = arith.constant 157 : index
    %30 = vector.load %arg2[%c0_47, %c0_48, %c0_49, %c157] : memref<1x1x8x1408xbf16, #tpu.memory_space<vmem>>, vector<1x1x8x512xbf16>
    %31 = vector.shape_cast %30 : vector<1x1x8x512xbf16> to vector<8x512xbf16>
    %c0_50 = arith.constant 0 : index
    %c0_51 = arith.constant 0 : index
    %c0_52 = arith.constant 0 : index
    %c158 = arith.constant 158 : index
    %32 = vector.load %arg2[%c0_50, %c0_51, %c0_52, %c158] : memref<1x1x8x1408xbf16, #tpu.memory_space<vmem>>, vector<1x1x8x512xbf16>
    %33 = vector.shape_cast %32 : vector<1x1x8x512xbf16> to vector<8x512xbf16>
    %c0_53 = arith.constant 0 : index
    %c0_54 = arith.constant 0 : index
    %c0_55 = arith.constant 0 : index
    %c168 = arith.constant 168 : index
    %34 = vector.load %arg2[%c0_53, %c0_54, %c0_55, %c168] : memref<1x1x8x1408xbf16, #tpu.memory_space<vmem>>, vector<1x1x8x512xbf16>
    %35 = vector.shape_cast %34 : vector<1x1x8x512xbf16> to vector<8x512xbf16>
    %c0_56 = arith.constant 0 : index
    %c0_57 = arith.constant 0 : index
    %c0_58 = arith.constant 0 : index
    %c169 = arith.constant 169 : index
    %36 = vector.load %arg2[%c0_56, %c0_57, %c0_58, %c169] : memref<1x1x8x1408xbf16, #tpu.memory_space<vmem>>, vector<1x1x8x512xbf16>
    %37 = vector.shape_cast %36 : vector<1x1x8x512xbf16> to vector<8x512xbf16>
    %c0_59 = arith.constant 0 : index
    %c0_60 = arith.constant 0 : index
    %c0_61 = arith.constant 0 : index
    %c170 = arith.constant 170 : index
    %38 = vector.load %arg2[%c0_59, %c0_60, %c0_61, %c170] : memref<1x1x8x1408xbf16, #tpu.memory_space<vmem>>, vector<1x1x8x512xbf16>
    %39 = vector.shape_cast %38 : vector<1x1x8x512xbf16> to vector<8x512xbf16>
    %c0_62 = arith.constant 0 : index
    %c0_63 = arith.constant 0 : index
    %c0_64 = arith.constant 0 : index
    %c288 = arith.constant 288 : index
    %40 = vector.load %arg2[%c0_62, %c0_63, %c0_64, %c288] : memref<1x1x8x1408xbf16, #tpu.memory_space<vmem>>, vector<1x1x8x512xbf16>
    %41 = vector.shape_cast %40 : vector<1x1x8x512xbf16> to vector<8x512xbf16>
    %c0_65 = arith.constant 0 : index
    %c0_66 = arith.constant 0 : index
    %c0_67 = arith.constant 0 : index
    %c289 = arith.constant 289 : index
    %42 = vector.load %arg2[%c0_65, %c0_66, %c0_67, %c289] : memref<1x1x8x1408xbf16, #tpu.memory_space<vmem>>, vector<1x1x8x512xbf16>
    %43 = vector.shape_cast %42 : vector<1x1x8x512xbf16> to vector<8x512xbf16>
    %c0_68 = arith.constant 0 : index
    %c0_69 = arith.constant 0 : index
    %c0_70 = arith.constant 0 : index
    %c290 = arith.constant 290 : index
    %44 = vector.load %arg2[%c0_68, %c0_69, %c0_70, %c290] : memref<1x1x8x1408xbf16, #tpu.memory_space<vmem>>, vector<1x1x8x512xbf16>
    %45 = vector.shape_cast %44 : vector<1x1x8x512xbf16> to vector<8x512xbf16>
    %c0_71 = arith.constant 0 : index
    %c0_72 = arith.constant 0 : index
    %c0_73 = arith.constant 0 : index
    %c300 = arith.constant 300 : index
    %46 = vector.load %arg2[%c0_71, %c0_72, %c0_73, %c300] : memref<1x1x8x1408xbf16, #tpu.memory_space<vmem>>, vector<1x1x8x512xbf16>
    %47 = vector.shape_cast %46 : vector<1x1x8x512xbf16> to vector<8x512xbf16>
    %c0_74 = arith.constant 0 : index
    %c0_75 = arith.constant 0 : index
    %c0_76 = arith.constant 0 : index
    %c301 = arith.constant 301 : index
    %48 = vector.load %arg2[%c0_74, %c0_75, %c0_76, %c301] : memref<1x1x8x1408xbf16, #tpu.memory_space<vmem>>, vector<1x1x8x512xbf16>
    %49 = vector.shape_cast %48 : vector<1x1x8x512xbf16> to vector<8x512xbf16>
    %c0_77 = arith.constant 0 : index
    %c0_78 = arith.constant 0 : index
    %c0_79 = arith.constant 0 : index
    %c302 = arith.constant 302 : index
    %50 = vector.load %arg2[%c0_77, %c0_78, %c0_79, %c302] : memref<1x1x8x1408xbf16, #tpu.memory_space<vmem>>, vector<1x1x8x512xbf16>
    %51 = vector.shape_cast %50 : vector<1x1x8x512xbf16> to vector<8x512xbf16>
    %c0_80 = arith.constant 0 : index
    %c0_81 = arith.constant 0 : index
    %c0_82 = arith.constant 0 : index
    %c312 = arith.constant 312 : index
    %52 = vector.load %arg2[%c0_80, %c0_81, %c0_82, %c312] : memref<1x1x8x1408xbf16, #tpu.memory_space<vmem>>, vector<1x1x8x512xbf16>
    %53 = vector.shape_cast %52 : vector<1x1x8x512xbf16> to vector<8x512xbf16>
    %c0_83 = arith.constant 0 : index
    %c0_84 = arith.constant 0 : index
    %c0_85 = arith.constant 0 : index
    %c313 = arith.constant 313 : index
    %54 = vector.load %arg2[%c0_83, %c0_84, %c0_85, %c313] : memref<1x1x8x1408xbf16, #tpu.memory_space<vmem>>, vector<1x1x8x512xbf16>
    %55 = vector.shape_cast %54 : vector<1x1x8x512xbf16> to vector<8x512xbf16>
    %c0_86 = arith.constant 0 : index
    %c0_87 = arith.constant 0 : index
    %c0_88 = arith.constant 0 : index
    %c314 = arith.constant 314 : index
    %56 = vector.load %arg2[%c0_86, %c0_87, %c0_88, %c314] : memref<1x1x8x1408xbf16, #tpu.memory_space<vmem>>, vector<1x1x8x512xbf16>
    %57 = vector.shape_cast %56 : vector<1x1x8x512xbf16> to vector<8x512xbf16>
    %58 = tpu.concatenate %5, %7, %9, %11, %13, %15, %17, %19, %21, %23, %25, %27, %29, %31, %33, %35 in 0 : vector<8x512xbf16>, vector<8x512xbf16>, vector<8x512xbf16>, vector<8x512xbf16>, vector<8x512xbf16>, vector<8x512xbf16>, vector<8x512xbf16>, vector<8x512xbf16>, vector<8x512xbf16>, vector<8x512xbf16>, vector<8x512xbf16>, vector<8x512xbf16>, vector<8x512xbf16>, vector<8x512xbf16>, vector<8x512xbf16>, vector<8x512xbf16> -> vector<128x512xbf16>
    %59 = tpu.concatenate %37, %39, %41, %43, %45, %47, %49, %51, %53, %55, %57 in 0 : vector<8x512xbf16>, vector<8x512xbf16>, vector<8x512xbf16>, vector<8x512xbf16>, vector<8x512xbf16>, vector<8x512xbf16>, vector<8x512xbf16>, vector<8x512xbf16>, vector<8x512xbf16>, vector<8x512xbf16>, vector<8x512xbf16> -> vector<88x512xbf16>
    %60 = tpu.concatenate %58, %59 in 0 : vector<128x512xbf16>, vector<88x512xbf16> -> vector<216x512xbf16>
    %cst = arith.constant dense<0.000000e+00> : vector<32x512xf32>
    %61 = tpu.matmul %0, %60, %cst {dimension_numbers = #tpu.dot_dimension_numbers<[1], [0], [0], [1], [0, 0, 1, 1], [], []>} : vector<32x216xbf16>, vector<216x512xbf16>, vector<32x512xf32> -> vector<32x512xf32>
    %62 = vector.broadcast %2 : vector<32x1xf32> to vector<32x512xf32>
    %63 = arith.addf %61, %62 : vector<32x512xf32>
    %c0_89 = arith.constant 0 : index
    %c0_90 = arith.constant 0 : index
    %c0_91 = arith.constant 0 : index
    %64 = vector.load %arg3[%c0_89, %c0_90, %c0_91] : memref<1x1x1024xf32, #tpu.memory_space<vmem>>, vector<1x1x512xf32>
    %65 = vector.shape_cast %64 : vector<1x1x512xf32> to vector<1x512xf32>
    %66 = vector.broadcast %65 : vector<1x512xf32> to vector<32x512xf32>
    %67 = arith.mulf %63, %66 : vector<32x512xf32>
    %68 = arith.truncf %67 : vector<32x512xf32> to vector<32x512xbf16>
    %c0_92 = arith.constant 0 : index
    %c0_93 = arith.constant 0 : index
    %69 = vector.load %arg10[%c0_92, %c0_93] : memref<32x1024xbf16, #tpu.memory_space<vmem>>, vector<32x512xbf16>
    tpu.vector_store %arg10[%c0_92, %c0_93], %68 {strides = array<i32>} : memref<32x1024xbf16, #tpu.memory_space<vmem>>, vector<32x512xbf16>,
    %c0_94 = arith.constant 0 : index
    %c0_95 = arith.constant 0 : index
    %c0_96 = arith.constant 0 : index
    %c512 = arith.constant 512 : index
    %70 = vector.load %arg2[%c0_94, %c0_95, %c0_96, %c512] : memref<1x1x8x1408xbf16, #tpu.memory_space<vmem>>, vector<1x1x8x512xbf16>
    %71 = vector.shape_cast %70 : vector<1x1x8x512xbf16> to vector<8x512xbf16>
    %c0_97 = arith.constant 0 : index
    %c0_98 = arith.constant 0 : index
    %c0_99 = arith.constant 0 : index
    %c513 = arith.constant 513 : index
    %72 = vector.load %arg2[%c0_97, %c0_98, %c0_99, %c513] : memref<1x1x8x1408xbf16, #tpu.memory_space<vmem>>, vector<1x1x8x512xbf16>
    %73 = vector.shape_cast %72 : vector<1x1x8x512xbf16> to vector<8x512xbf16>
    %c0_100 = arith.constant 0 : index
    %c0_101 = arith.constant 0 : index
    %c0_102 = arith.constant 0 : index
    %c514 = arith.constant 514 : index
    %74 = vector.load %arg2[%c0_100, %c0_101, %c0_102, %c514] : memref<1x1x8x1408xbf16, #tpu.memory_space<vmem>>, vector<1x1x8x512xbf16>
    %75 = vector.shape_cast %74 : vector<1x1x8x512xbf16> to vector<8x512xbf16>
    %c0_103 = arith.constant 0 : index
    %c0_104 = arith.constant 0 : index
    %c0_105 = arith.constant 0 : index
    %c524 = arith.constant 524 : index
    %76 = vector.load %arg2[%c0_103, %c0_104, %c0_105, %c524] : memref<1x1x8x1408xbf16, #tpu.memory_space<vmem>>, vector<1x1x8x512xbf16>
    %77 = vector.shape_cast %76 : vector<1x1x8x512xbf16> to vector<8x512xbf16>
    %c0_106 = arith.constant 0 : index
    %c0_107 = arith.constant 0 : index
    %c0_108 = arith.constant 0 : index
    %c525 = arith.constant 525 : index
    %78 = vector.load %arg2[%c0_106, %c0_107, %c0_108, %c525] : memref<1x1x8x1408xbf16, #tpu.memory_space<vmem>>, vector<1x1x8x512xbf16>
    %79 = vector.shape_cast %78 : vector<1x1x8x512xbf16> to vector<8x512xbf16>
    %c0_109 = arith.constant 0 : index
    %c0_110 = arith.constant 0 : index
    %c0_111 = arith.constant 0 : index
    %c526 = arith.constant 526 : index
    %80 = vector.load %arg2[%c0_109, %c0_110, %c0_111, %c526] : memref<1x1x8x1408xbf16, #tpu.memory_space<vmem>>, vector<1x1x8x512xbf16>
    %81 = vector.shape_cast %80 : vector<1x1x8x512xbf16> to vector<8x512xbf16>
    %c0_112 = arith.constant 0 : index
    %c0_113 = arith.constant 0 : index
    %c0_114 = arith.constant 0 : index
    %c536 = arith.constant 536 : index
    %82 = vector.load %arg2[%c0_112, %c0_113, %c0_114, %c536] : memref<1x1x8x1408xbf16, #tpu.memory_space<vmem>>, vector<1x1x8x512xbf16>
    %83 = vector.shape_cast %82 : vector<1x1x8x512xbf16> to vector<8x512xbf16>
    %c0_115 = arith.constant 0 : index
    %c0_116 = arith.constant 0 : index
    %c0_117 = arith.constant 0 : index
    %c537 = arith.constant 537 : index
    %84 = vector.load %arg2[%c0_115, %c0_116, %c0_117, %c537] : memref<1x1x8x1408xbf16, #tpu.memory_space<vmem>>, vector<1x1x8x512xbf16>
    %85 = vector.shape_cast %84 : vector<1x1x8x512xbf16> to vector<8x512xbf16>
    %c0_118 = arith.constant 0 : index
    %c0_119 = arith.constant 0 : index
    %c0_120 = arith.constant 0 : index
    %c538 = arith.constant 538 : index
    %86 = vector.load %arg2[%c0_118, %c0_119, %c0_120, %c538] : memref<1x1x8x1408xbf16, #tpu.memory_space<vmem>>, vector<1x1x8x512xbf16>
    %87 = vector.shape_cast %86 : vector<1x1x8x512xbf16> to vector<8x512xbf16>
    %c0_121 = arith.constant 0 : index
    %c0_122 = arith.constant 0 : index
    %c0_123 = arith.constant 0 : index
    %c656 = arith.constant 656 : index
    %88 = vector.load %arg2[%c0_121, %c0_122, %c0_123, %c656] : memref<1x1x8x1408xbf16, #tpu.memory_space<vmem>>, vector<1x1x8x512xbf16>
    %89 = vector.shape_cast %88 : vector<1x1x8x512xbf16> to vector<8x512xbf16>
    %c0_124 = arith.constant 0 : index
    %c0_125 = arith.constant 0 : index
    %c0_126 = arith.constant 0 : index
    %c657 = arith.constant 657 : index
    %90 = vector.load %arg2[%c0_124, %c0_125, %c0_126, %c657] : memref<1x1x8x1408xbf16, #tpu.memory_space<vmem>>, vector<1x1x8x512xbf16>
    %91 = vector.shape_cast %90 : vector<1x1x8x512xbf16> to vector<8x512xbf16>
    %c0_127 = arith.constant 0 : index
    %c0_128 = arith.constant 0 : index
    %c0_129 = arith.constant 0 : index
    %c658 = arith.constant 658 : index
    %92 = vector.load %arg2[%c0_127, %c0_128, %c0_129, %c658] : memref<1x1x8x1408xbf16, #tpu.memory_space<vmem>>, vector<1x1x8x512xbf16>
    %93 = vector.shape_cast %92 : vector<1x1x8x512xbf16> to vector<8x512xbf16>
    %c0_130 = arith.constant 0 : index
    %c0_131 = arith.constant 0 : index
    %c0_132 = arith.constant 0 : index
    %c668 = arith.constant 668 : index
    %94 = vector.load %arg2[%c0_130, %c0_131, %c0_132, %c668] : memref<1x1x8x1408xbf16, #tpu.memory_space<vmem>>, vector<1x1x8x512xbf16>
    %95 = vector.shape_cast %94 : vector<1x1x8x512xbf16> to vector<8x512xbf16>
    %c0_133 = arith.constant 0 : index
    %c0_134 = arith.constant 0 : index
    %c0_135 = arith.constant 0 : index
    %c669 = arith.constant 669 : index
    %96 = vector.load %arg2[%c0_133, %c0_134, %c0_135, %c669] : memref<1x1x8x1408xbf16, #tpu.memory_space<vmem>>, vector<1x1x8x512xbf16>
    %97 = vector.shape_cast %96 : vector<1x1x8x512xbf16> to vector<8x512xbf16>
    %c0_136 = arith.constant 0 : index
    %c0_137 = arith.constant 0 : index
    %c0_138 = arith.constant 0 : index
    %c670 = arith.constant 670 : index
    %98 = vector.load %arg2[%c0_136, %c0_137, %c0_138, %c670] : memref<1x1x8x1408xbf16, #tpu.memory_space<vmem>>, vector<1x1x8x512xbf16>
    %99 = vector.shape_cast %98 : vector<1x1x8x512xbf16> to vector<8x512xbf16>
    %c0_139 = arith.constant 0 : index
    %c0_140 = arith.constant 0 : index
    %c0_141 = arith.constant 0 : index
    %c680 = arith.constant 680 : index
    %100 = vector.load %arg2[%c0_139, %c0_140, %c0_141, %c680] : memref<1x1x8x1408xbf16, #tpu.memory_space<vmem>>, vector<1x1x8x512xbf16>
    %101 = vector.shape_cast %100 : vector<1x1x8x512xbf16> to vector<8x512xbf16>
    %c0_142 = arith.constant 0 : index
    %c0_143 = arith.constant 0 : index
    %c0_144 = arith.constant 0 : index
    %c681 = arith.constant 681 : index
    %102 = vector.load %arg2[%c0_142, %c0_143, %c0_144, %c681] : memref<1x1x8x1408xbf16, #tpu.memory_space<vmem>>, vector<1x1x8x512xbf16>
    %103 = vector.shape_cast %102 : vector<1x1x8x512xbf16> to vector<8x512xbf16>
    %c0_145 = arith.constant 0 : index
    %c0_146 = arith.constant 0 : index
    %c0_147 = arith.constant 0 : index
    %c682 = arith.constant 682 : index
    %104 = vector.load %arg2[%c0_145, %c0_146, %c0_147, %c682] : memref<1x1x8x1408xbf16, #tpu.memory_space<vmem>>, vector<1x1x8x512xbf16>
    %105 = vector.shape_cast %104 : vector<1x1x8x512xbf16> to vector<8x512xbf16>
    %c0_148 = arith.constant 0 : index
    %c0_149 = arith.constant 0 : index
    %c0_150 = arith.constant 0 : index
    %c800 = arith.constant 800 : index
    %106 = vector.load %arg2[%c0_148, %c0_149, %c0_150, %c800] : memref<1x1x8x1408xbf16, #tpu.memory_space<vmem>>, vector<1x1x8x512xbf16>
    %107 = vector.shape_cast %106 : vector<1x1x8x512xbf16> to vector<8x512xbf16>
    %c0_151 = arith.constant 0 : index
    %c0_152 = arith.constant 0 : index
    %c0_153 = arith.constant 0 : index
    %c801 = arith.constant 801 : index
    %108 = vector.load %arg2[%c0_151, %c0_152, %c0_153, %c801] : memref<1x1x8x1408xbf16, #tpu.memory_space<vmem>>, vector<1x1x8x512xbf16>
    %109 = vector.shape_cast %108 : vector<1x1x8x512xbf16> to vector<8x512xbf16>
    %c0_154 = arith.constant 0 : index
    %c0_155 = arith.constant 0 : index
    %c0_156 = arith.constant 0 : index
    %c802 = arith.constant 802 : index
    %110 = vector.load %arg2[%c0_154, %c0_155, %c0_156, %c802] : memref<1x1x8x1408xbf16, #tpu.memory_space<vmem>>, vector<1x1x8x512xbf16>
    %111 = vector.shape_cast %110 : vector<1x1x8x512xbf16> to vector<8x512xbf16>
    %c0_157 = arith.constant 0 : index
    %c0_158 = arith.constant 0 : index
    %c0_159 = arith.constant 0 : index
    %c812 = arith.constant 812 : index
    %112 = vector.load %arg2[%c0_157, %c0_158, %c0_159, %c812] : memref<1x1x8x1408xbf16, #tpu.memory_space<vmem>>, vector<1x1x8x512xbf16>
    %113 = vector.shape_cast %112 : vector<1x1x8x512xbf16> to vector<8x512xbf16>
    %c0_160 = arith.constant 0 : index
    %c0_161 = arith.constant 0 : index
    %c0_162 = arith.constant 0 : index
    %c813 = arith.constant 813 : index
    %114 = vector.load %arg2[%c0_160, %c0_161, %c0_162, %c813] : memref<1x1x8x1408xbf16, #tpu.memory_space<vmem>>, vector<1x1x8x512xbf16>
    %115 = vector.shape_cast %114 : vector<1x1x8x512xbf16> to vector<8x512xbf16>
    %c0_163 = arith.constant 0 : index
    %c0_164 = arith.constant 0 : index
    %c0_165 = arith.constant 0 : index
    %c814 = arith.constant 814 : index
    %116 = vector.load %arg2[%c0_163, %c0_164, %c0_165, %c814] : memref<1x1x8x1408xbf16, #tpu.memory_space<vmem>>, vector<1x1x8x512xbf16>
    %117 = vector.shape_cast %116 : vector<1x1x8x512xbf16> to vector<8x512xbf16>
    %c0_166 = arith.constant 0 : index
    %c0_167 = arith.constant 0 : index
    %c0_168 = arith.constant 0 : index
    %c824 = arith.constant 824 : index
    %118 = vector.load %arg2[%c0_166, %c0_167, %c0_168, %c824] : memref<1x1x8x1408xbf16, #tpu.memory_space<vmem>>, vector<1x1x8x512xbf16>
    %119 = vector.shape_cast %118 : vector<1x1x8x512xbf16> to vector<8x512xbf16>
    %c0_169 = arith.constant 0 : index
    %c0_170 = arith.constant 0 : index
    %c0_171 = arith.constant 0 : index
    %c825 = arith.constant 825 : index
    %120 = vector.load %arg2[%c0_169, %c0_170, %c0_171, %c825] : memref<1x1x8x1408xbf16, #tpu.memory_space<vmem>>, vector<1x1x8x512xbf16>
    %121 = vector.shape_cast %120 : vector<1x1x8x512xbf16> to vector<8x512xbf16>
    %c0_172 = arith.constant 0 : index
    %c0_173 = arith.constant 0 : index
    %c0_174 = arith.constant 0 : index
    %c826 = arith.constant 826 : index
    %122 = vector.load %arg2[%c0_172, %c0_173, %c0_174, %c826] : memref<1x1x8x1408xbf16, #tpu.memory_space<vmem>>, vector<1x1x8x512xbf16>
    %123 = vector.shape_cast %122 : vector<1x1x8x512xbf16> to vector<8x512xbf16>
    %124 = tpu.concatenate %71, %73, %75, %77, %79, %81, %83, %85, %87, %89, %91, %93, %95, %97, %99, %101 in 0 : vector<8x512xbf16>, vector<8x512xbf16>, vector<8x512xbf16>, vector<8x512xbf16>, vector<8x512xbf16>, vector<8x512xbf16>, vector<8x512xbf16>, vector<8x512xbf16>, vector<8x512xbf16>, vector<8x512xbf16>, vector<8x512xbf16>, vector<8x512xbf16>, vector<8x512xbf16>, vector<8x512xbf16>, vector<8x512xbf16>, vector<8x512xbf16> -> vector<128x512xbf16>
    %125 = tpu.concatenate %103, %105, %107, %109, %111, %113, %115, %117, %119, %121, %123 in 0 : vector<8x512xbf16>, vector<8x512xbf16>, vector<8x512xbf16>, vector<8x512xbf16>, vector<8x512xbf16>, vector<8x512xbf16>, vector<8x512xbf16>, vector<8x512xbf16>, vector<8x512xbf16>, vector<8x512xbf16>, vector<8x512xbf16> -> vector<88x512xbf16>
    %126 = tpu.concatenate %124, %125 in 0 : vector<128x512xbf16>, vector<88x512xbf16> -> vector<216x512xbf16>
    %cst_175 = arith.constant dense<0.000000e+00> : vector<32x512xf32>
    %127 = tpu.matmul %0, %126, %cst_175 {dimension_numbers = #tpu.dot_dimension_numbers<[1], [0], [0], [1], [0, 0, 1, 1], [], []>} : vector<32x216xbf16>, vector<216x512xbf16>, vector<32x512xf32> -> vector<32x512xf32>
    %128 = vector.broadcast %2 : vector<32x1xf32> to vector<32x512xf32>
    %129 = arith.addf %127, %128 : vector<32x512xf32>
    %c0_176 = arith.constant 0 : index
    %c0_177 = arith.constant 0 : index
    %c512_178 = arith.constant 512 : index
    %130 = vector.load %arg3[%c0_176, %c0_177, %c512_178] : memref<1x1x1024xf32, #tpu.memory_space<vmem>>, vector<1x1x512xf32>
    %131 = vector.shape_cast %130 : vector<1x1x512xf32> to vector<1x512xf32>
    %132 = vector.broadcast %131 : vector<1x512xf32> to vector<32x512xf32>
    %133 = arith.mulf %129, %132 : vector<32x512xf32>
    %134 = arith.truncf %133 : vector<32x512xf32> to vector<32x512xbf16>
    %c0_179 = arith.constant 0 : index
    %c512_180 = arith.constant 512 : index
    %135 = vector.load %arg10[%c0_179, %c512_180] : memref<32x1024xbf16, #tpu.memory_space<vmem>>, vector<32x512xbf16>
    tpu.vector_store %arg10[%c0_179, %c512_180], %134 {strides = array<i32>} : memref<32x1024xbf16, #tpu.memory_space<vmem>>, vector<32x512xbf16>,
    %cst_181 = arith.constant 0.000000e+00 : f32
    %136 = vector.broadcast %cst_181 : f32 to vector<3x1xf32>
    %cst_182 = arith.constant 0.000000e+00 : f32
    %137 = vector.broadcast %cst_182 : f32 to vector<3x1xf32>
    %c0_183 = arith.constant 0 : index
    %c0_184 = arith.constant 0 : index
    %138 = vector.load %arg10[%c0_183, %c0_184] : memref<32x1024xbf16, #tpu.memory_space<vmem>>, vector<32x512xbf16>
    %c0_185 = arith.constant 0 : index
    %c1_186 = arith.constant 1 : index
    %139 = vector.load %arg10[%c0_185, %c1_186] : memref<32x1024xbf16, #tpu.memory_space<vmem>>, vector<32x512xbf16>
    %c0_187 = arith.constant 0 : index
    %c2_188 = arith.constant 2 : index
    %140 = vector.load %arg10[%c0_187, %c2_188] : memref<32x1024xbf16, #tpu.memory_space<vmem>>, vector<32x512xbf16>
    %c0_189 = arith.constant 0 : index
    %c12_190 = arith.constant 12 : index
    %141 = vector.load %arg10[%c0_189, %c12_190] : memref<32x1024xbf16, #tpu.memory_space<vmem>>, vector<32x512xbf16>
    %c0_191 = arith.constant 0 : index
    %c13_192 = arith.constant 13 : index
    %142 = vector.load %arg10[%c0_191, %c13_192] : memref<32x1024xbf16, #tpu.memory_space<vmem>>, vector<32x512xbf16>
    %c0_193 = arith.constant 0 : index
    %c14_194 = arith.constant 14 : index
    %143 = vector.load %arg10[%c0_193, %c14_194] : memref<32x1024xbf16, #tpu.memory_space<vmem>>, vector<32x512xbf16>
    %c0_195 = arith.constant 0 : index
    %c24_196 = arith.constant 24 : index
    %144 = vector.load %arg10[%c0_195, %c24_196] : memref<32x1024xbf16, #tpu.memory_space<vmem>>, vector<32x512xbf16>
    %c0_197 = arith.constant 0 : index
    %c25_198 = arith.constant 25 : index
    %145 = vector.load %arg10[%c0_197, %c25_198] : memref<32x1024xbf16, #tpu.memory_space<vmem>>, vector<32x512xbf16>
    %c0_199 = arith.constant 0 : index
    %c26_200 = arith.constant 26 : index
    %146 = vector.load %arg10[%c0_199, %c26_200] : memref<32x1024xbf16, #tpu.memory_space<vmem>>, vector<32x512xbf16>
    %c0_201 = arith.constant 0 : index
    %c144_202 = arith.constant 144 : index
    %147 = vector.load %arg10[%c0_201, %c144_202] : memref<32x1024xbf16, #tpu.memory_space<vmem>>, vector<32x512xbf16>
    %c0_203 = arith.constant 0 : index
    %c145_204 = arith.constant 145 : index
    %148 = vector.load %arg10[%c0_203, %c145_204] : memref<32x1024xbf16, #tpu.memory_space<vmem>>, vector<32x512xbf16>
    %c0_205 = arith.constant 0 : index
    %c146_206 = arith.constant 146 : index
    %149 = vector.load %arg10[%c0_205, %c146_206] : memref<32x1024xbf16, #tpu.memory_space<vmem>>, vector<32x512xbf16>
    %c0_207 = arith.constant 0 : index
    %c156_208 = arith.constant 156 : index
    %150 = vector.load %arg10[%c0_207, %c156_208] : memref<32x1024xbf16, #tpu.memory_space<vmem>>, vector<32x512xbf16>
    %c0_209 = arith.constant 0 : index
    %c157_210 = arith.constant 157 : index
    %151 = vector.load %arg10[%c0_209, %c157_210] : memref<32x1024xbf16, #tpu.memory_space<vmem>>, vector<32x512xbf16>
    %c0_211 = arith.constant 0 : index
    %c158_212 = arith.constant 158 : index
    %152 = vector.load %arg10[%c0_211, %c158_212] : memref<32x1024xbf16, #tpu.memory_space<vmem>>, vector<32x512xbf16>
    %c0_213 = arith.constant 0 : index
    %c168_214 = arith.constant 168 : index
    %153 = vector.load %arg10[%c0_213, %c168_214] : memref<32x1024xbf16, #tpu.memory_space<vmem>>, vector<32x512xbf16>
    %c0_215 = arith.constant 0 : index
    %c169_216 = arith.constant 169 : index
    %154 = vector.load %arg10[%c0_215, %c169_216] : memref<32x1024xbf16, #tpu.memory_space<vmem>>, vector<32x512xbf16>
    %c0_217 = arith.constant 0 : index
    %c170_218 = arith.constant 170 : index
    %155 = vector.load %arg10[%c0_217, %c170_218] : memref<32x1024xbf16, #tpu.memory_space<vmem>>, vector<32x512xbf16>
    %c0_219 = arith.constant 0 : index
    %c288_220 = arith.constant 288 : index
    %156 = vector.load %arg10[%c0_219, %c288_220] : memref<32x1024xbf16, #tpu.memory_space<vmem>>, vector<32x512xbf16>
    %c0_221 = arith.constant 0 : index
    %c289_222 = arith.constant 289 : index
    %157 = vector.load %arg10[%c0_221, %c289_222] : memref<32x1024xbf16, #tpu.memory_space<vmem>>, vector<32x512xbf16>
    %c0_223 = arith.constant 0 : index
    %c290_224 = arith.constant 290 : index
    %158 = vector.load %arg10[%c0_223, %c290_224] : memref<32x1024xbf16, #tpu.memory_space<vmem>>, vector<32x512xbf16>
    %c0_225 = arith.constant 0 : index
    %c300_226 = arith.constant 300 : index
    %159 = vector.load %arg10[%c0_225, %c300_226] : memref<32x1024xbf16, #tpu.memory_space<vmem>>, vector<32x512xbf16>
    %c0_227 = arith.constant 0 : index
    %c301_228 = arith.constant 301 : index
    %160 = vector.load %arg10[%c0_227, %c301_228] : memref<32x1024xbf16, #tpu.memory_space<vmem>>, vector<32x512xbf16>
    %c0_229 = arith.constant 0 : index
    %c302_230 = arith.constant 302 : index
    %161 = vector.load %arg10[%c0_229, %c302_230] : memref<32x1024xbf16, #tpu.memory_space<vmem>>, vector<32x512xbf16>
    %c0_231 = arith.constant 0 : index
    %c312_232 = arith.constant 312 : index
    %162 = vector.load %arg10[%c0_231, %c312_232] : memref<32x1024xbf16, #tpu.memory_space<vmem>>, vector<32x512xbf16>
    %c0_233 = arith.constant 0 : index
    %c313_234 = arith.constant 313 : index
    %163 = vector.load %arg10[%c0_233, %c313_234] : memref<32x1024xbf16, #tpu.memory_space<vmem>>, vector<32x512xbf16>
    %c0_235 = arith.constant 0 : index
    %c314_236 = arith.constant 314 : index
    %164 = vector.load %arg10[%c0_235, %c314_236] : memref<32x1024xbf16, #tpu.memory_space<vmem>>, vector<32x512xbf16>
    %165 = tpu.concatenate %138, %139, %140, %141, %142, %143, %144, %145, %146, %147, %148, %149, %150, %151, %152, %153 in 0 : vector<32x512xbf16>, vector<32x512xbf16>, vector<32x512xbf16>, vector<32x512xbf16>, vector<32x512xbf16>, vector<32x512xbf16>, vector<32x512xbf16>, vector<32x512xbf16>, vector<32x512xbf16>, vector<32x512xbf16>, vector<32x512xbf16>, vector<32x512xbf16>, vector<32x512xbf16>, vector<32x512xbf16>, vector<32x512xbf16>, vector<32x512xbf16> -> vector<512x512xbf16>
    %166 = tpu.concatenate %154, %155, %156, %157, %158, %159, %160, %161, %162, %163, %164 in 0 : vector<32x512xbf16>, vector<32x512xbf16>, vector<32x512xbf16>, vector<32x512xbf16>, vector<32x512xbf16>, vector<32x512xbf16>, vector<32x512xbf16>, vector<32x512xbf16>, vector<32x512xbf16>, vector<32x512xbf16>, vector<32x512xbf16> -> vector<352x512xbf16>
    %167 = tpu.concatenate %165, %166 in 0 : vector<512x512xbf16>, vector<352x512xbf16> -> vector<864x512xbf16>
    %cst_237 = arith.constant dense<0.000000e+00> : vector<3x512xf32>
    %168 = tpu.matmul %1, %167, %cst_237 {dimension_numbers = #tpu.dot_dimension_numbers<[1], [0], [0], [1], [0, 0, 1, 1], [], []>} : vector<3x864xbf16>, vector<864x512xbf16>, vector<3x512xf32> -> vector<3x512xf32>
    %169 = vector.broadcast %3 : vector<3x1xf32> to vector<3x512xf32>
    %170 = arith.addf %168, %169 : vector<3x512xf32>
    %171 = arith.truncf %170 : vector<3x512xf32> to vector<3x512xbf16>
    %c0_238 = arith.constant 0 : index
    %c0_239 = arith.constant 0 : index
    %c0_240 = arith.constant 0 : index
    %c0_241 = arith.constant 0 : index
    %172 = vector.load %arg8[%c0_238, %c0_239, %c0_240, %c0_241] : memref<1x1x3x640xbf16, #tpu.memory_space<vmem>>, vector<1x1x3x512xbf16>
    %173 = vector.shape_cast %172 : vector<1x1x3x512xbf16> to vector<3x512xbf16>
    %174 = vector.shape_cast %171 : vector<3x512xbf16> to vector<1x1x3x512xbf16>
    tpu.vector_store %arg8[%c0_238, %c0_239, %c0_240, %c0_241], %174 {strides = array<i32>} : memref<1x1x3x640xbf16, #tpu.memory_space<vmem>>, vector<1x1x3x512xbf16>,
    %c0_242 = arith.constant 0 : index
    %c0_243 = arith.constant 0 : index
    %c157_244 = arith.constant 157 : index
    %175 = vector.load %arg3[%c0_242, %c0_243, %c157_244] : memref<1x1x1024xf32, #tpu.memory_space<vmem>>, vector<1x1x512xf32>
    %176 = vector.shape_cast %175 : vector<1x1x512xf32> to vector<1x512xf32>
    %177 = tpu.iota {dimensions = array<i32: 1>} : vector<1x512xi32>
    %c0_i32 = arith.constant 0 : i32
    %178 = vector.broadcast %c0_i32 : i32 to vector<1x512xi32>
    %179 = arith.addi %177, %178 : vector<1x512xi32>
    %c576_i32 = arith.constant 576 : i32
    %180 = vector.broadcast %c576_i32 : i32 to vector<1x512xi32>
    %181 = arith.cmpi slt, %179, %180 : vector<1x512xi32>
    %182 = arith.extui %181 : vector<1x512xi1> to vector<1x512xi32>
    %183 = arith.sitofp %182 : vector<1x512xi32> to vector<1x512xf32>
    %184 = arith.mulf %176, %183 : vector<1x512xf32>
    %185 = vector.broadcast %184 : vector<1x512xf32> to vector<3x512xf32>
    %186 = arith.mulf %170, %185 : vector<3x512xf32>
    %cst_245 = arith.constant dense<0.000000e+00> : vector<3xf32>
    %187 = vector.multi_reduction <add>, %186, %cst_245 [1] : vector<3x512xf32> to vector<3xf32>
    %188 = vector.shape_cast %187 : vector<3xf32> to vector<3x1xf32>
    %189 = arith.addf %136, %188 : vector<3x1xf32>
    %190 = arith.mulf %186, %170 : vector<3x512xf32>
    %cst_246 = arith.constant dense<0.000000e+00> : vector<3xf32>
    %191 = vector.multi_reduction <add>, %190, %cst_246 [1] : vector<3x512xf32> to vector<3xf32>
    %192 = vector.shape_cast %191 : vector<3xf32> to vector<3x1xf32>
    %193 = arith.addf %137, %192 : vector<3x1xf32>
    %c0_247 = arith.constant 0 : index
    %c512_248 = arith.constant 512 : index
    %194 = vector.load %arg10[%c0_247, %c512_248] : memref<32x1024xbf16, #tpu.memory_space<vmem>>, vector<32x128xbf16>
    %c0_249 = arith.constant 0 : index
    %c513_250 = arith.constant 513 : index
    %195 = vector.load %arg10[%c0_249, %c513_250] : memref<32x1024xbf16, #tpu.memory_space<vmem>>, vector<32x128xbf16>
    %c0_251 = arith.constant 0 : index
    %c514_252 = arith.constant 514 : index
    %196 = vector.load %arg10[%c0_251, %c514_252] : memref<32x1024xbf16, #tpu.memory_space<vmem>>, vector<32x128xbf16>
    %c0_253 = arith.constant 0 : index
    %c524_254 = arith.constant 524 : index
    %197 = vector.load %arg10[%c0_253, %c524_254] : memref<32x1024xbf16, #tpu.memory_space<vmem>>, vector<32x128xbf16>
    %c0_255 = arith.constant 0 : index
    %c525_256 = arith.constant 525 : index
    %198 = vector.load %arg10[%c0_255, %c525_256] : memref<32x1024xbf16, #tpu.memory_space<vmem>>, vector<32x128xbf16>
    %c0_257 = arith.constant 0 : index
    %c526_258 = arith.constant 526 : index
    %199 = vector.load %arg10[%c0_257, %c526_258] : memref<32x1024xbf16, #tpu.memory_space<vmem>>, vector<32x128xbf16>
    %c0_259 = arith.constant 0 : index
    %c536_260 = arith.constant 536 : index
    %200 = vector.load %arg10[%c0_259, %c536_260] : memref<32x1024xbf16, #tpu.memory_space<vmem>>, vector<32x128xbf16>
    %c0_261 = arith.constant 0 : index
    %c537_262 = arith.constant 537 : index
    %201 = vector.load %arg10[%c0_261, %c537_262] : memref<32x1024xbf16, #tpu.memory_space<vmem>>, vector<32x128xbf16>
    %c0_263 = arith.constant 0 : index
    %c538_264 = arith.constant 538 : index
    %202 = vector.load %arg10[%c0_263, %c538_264] : memref<32x1024xbf16, #tpu.memory_space<vmem>>, vector<32x128xbf16>
    %c0_265 = arith.constant 0 : index
    %c656_266 = arith.constant 656 : index
    %203 = vector.load %arg10[%c0_265, %c656_266] : memref<32x1024xbf16, #tpu.memory_space<vmem>>, vector<32x128xbf16>
    %c0_267 = arith.constant 0 : index
    %c657_268 = arith.constant 657 : index
    %204 = vector.load %arg10[%c0_267, %c657_268] : memref<32x1024xbf16, #tpu.memory_space<vmem>>, vector<32x128xbf16>
    %c0_269 = arith.constant 0 : index
    %c658_270 = arith.constant 658 : index
    %205 = vector.load %arg10[%c0_269, %c658_270] : memref<32x1024xbf16, #tpu.memory_space<vmem>>, vector<32x128xbf16>
    %c0_271 = arith.constant 0 : index
    %c668_272 = arith.constant 668 : index
    %206 = vector.load %arg10[%c0_271, %c668_272] : memref<32x1024xbf16, #tpu.memory_space<vmem>>, vector<32x128xbf16>
    %c0_273 = arith.constant 0 : index
    %c669_274 = arith.constant 669 : index
    %207 = vector.load %arg10[%c0_273, %c669_274] : memref<32x1024xbf16, #tpu.memory_space<vmem>>, vector<32x128xbf16>
    %c0_275 = arith.constant 0 : index
    %c670_276 = arith.constant 670 : index
    %208 = vector.load %arg10[%c0_275, %c670_276] : memref<32x1024xbf16, #tpu.memory_space<vmem>>, vector<32x128xbf16>
    %c0_277 = arith.constant 0 : index
    %c680_278 = arith.constant 680 : index
    %209 = vector.load %arg10[%c0_277, %c680_278] : memref<32x1024xbf16, #tpu.memory_space<vmem>>, vector<32x128xbf16>
    %c0_279 = arith.constant 0 : index
    %c681_280 = arith.constant 681 : index
    %210 = vector.load %arg10[%c0_279, %c681_280] : memref<32x1024xbf16, #tpu.memory_space<vmem>>, vector<32x128xbf16>
    %c0_281 = arith.constant 0 : index
    %c682_282 = arith.constant 682 : index
    %211 = vector.load %arg10[%c0_281, %c682_282] : memref<32x1024xbf16, #tpu.memory_space<vmem>>, vector<32x128xbf16>
    %c0_283 = arith.constant 0 : index
    %c800_284 = arith.constant 800 : index
    %212 = vector.load %arg10[%c0_283, %c800_284] : memref<32x1024xbf16, #tpu.memory_space<vmem>>, vector<32x128xbf16>
    %c0_285 = arith.constant 0 : index
    %c801_286 = arith.constant 801 : index
    %213 = vector.load %arg10[%c0_285, %c801_286] : memref<32x1024xbf16, #tpu.memory_space<vmem>>, vector<32x128xbf16>
    %c0_287 = arith.constant 0 : index
    %c802_288 = arith.constant 802 : index
    %214 = vector.load %arg10[%c0_287, %c802_288] : memref<32x1024xbf16, #tpu.memory_space<vmem>>, vector<32x128xbf16>
    %c0_289 = arith.constant 0 : index
    %c812_290 = arith.constant 812 : index
    %215 = vector.load %arg10[%c0_289, %c812_290] : memref<32x1024xbf16, #tpu.memory_space<vmem>>, vector<32x128xbf16>
    %c0_291 = arith.constant 0 : index
    %c813_292 = arith.constant 813 : index
    %216 = vector.load %arg10[%c0_291, %c813_292] : memref<32x1024xbf16, #tpu.memory_space<vmem>>, vector<32x128xbf16>
    %c0_293 = arith.constant 0 : index
    %c814_294 = arith.constant 814 : index
    %217 = vector.load %arg10[%c0_293, %c814_294] : memref<32x1024xbf16, #tpu.memory_space<vmem>>, vector<32x128xbf16>
    %c0_295 = arith.constant 0 : index
    %c824_296 = arith.constant 824 : index
    %218 = vector.load %arg10[%c0_295, %c824_296] : memref<32x1024xbf16, #tpu.memory_space<vmem>>, vector<32x128xbf16>
    %c0_297 = arith.constant 0 : index
    %c825_298 = arith.constant 825 : index
    %219 = vector.load %arg10[%c0_297, %c825_298] : memref<32x1024xbf16, #tpu.memory_space<vmem>>, vector<32x128xbf16>
    %c0_299 = arith.constant 0 : index
    %c826_300 = arith.constant 826 : index
    %220 = vector.load %arg10[%c0_299, %c826_300] : memref<32x1024xbf16, #tpu.memory_space<vmem>>, vector<32x128xbf16>
    %221 = tpu.concatenate %194, %195, %196, %197, %198, %199, %200, %201, %202, %203, %204, %205, %206, %207, %208, %209 in 0 : vector<32x128xbf16>, vector<32x128xbf16>, vector<32x128xbf16>, vector<32x128xbf16>, vector<32x128xbf16>, vector<32x128xbf16>, vector<32x128xbf16>, vector<32x128xbf16>, vector<32x128xbf16>, vector<32x128xbf16>, vector<32x128xbf16>, vector<32x128xbf16>, vector<32x128xbf16>, vector<32x128xbf16>, vector<32x128xbf16>, vector<32x128xbf16> -> vector<512x128xbf16>
    %222 = tpu.concatenate %210, %211, %212, %213, %214, %215, %216, %217, %218, %219, %220 in 0 : vector<32x128xbf16>, vector<32x128xbf16>, vector<32x128xbf16>, vector<32x128xbf16>, vector<32x128xbf16>, vector<32x128xbf16>, vector<32x128xbf16>, vector<32x128xbf16>, vector<32x128xbf16>, vector<32x128xbf16>, vector<32x128xbf16> -> vector<352x128xbf16>
    %223 = tpu.concatenate %221, %222 in 0 : vector<512x128xbf16>, vector<352x128xbf16> -> vector<864x128xbf16>
    %cst_301 = arith.constant dense<0.000000e+00> : vector<3x128xf32>
    %224 = tpu.matmul %1, %223, %cst_301 {dimension_numbers = #tpu.dot_dimension_numbers<[1], [0], [0], [1], [0, 0, 1, 1], [], []>} : vector<3x864xbf16>, vector<864x128xbf16>, vector<3x128xf32> -> vector<3x128xf32>
    %225 = vector.broadcast %3 : vector<3x1xf32> to vector<3x128xf32>
    %226 = arith.addf %224, %225 : vector<3x128xf32>
    %227 = arith.truncf %226 : vector<3x128xf32> to vector<3x128xbf16>
    %c0_302 = arith.constant 0 : index
    %c0_303 = arith.constant 0 : index
    %c0_304 = arith.constant 0 : index
    %c512_305 = arith.constant 512 : index
    %228 = vector.load %arg8[%c0_302, %c0_303, %c0_304, %c512_305] : memref<1x1x3x640xbf16, #tpu.memory_space<vmem>>, vector<1x1x3x128xbf16>
    %229 = vector.shape_cast %228 : vector<1x1x3x128xbf16> to vector<3x128xbf16>
    %230 = vector.shape_cast %227 : vector<3x128xbf16> to vector<1x1x3x128xbf16>
    tpu.vector_store %arg8[%c0_302, %c0_303, %c0_304, %c512_305], %230 {strides = array<i32>} : memref<1x1x3x640xbf16, #tpu.memory_space<vmem>>, vector<1x1x3x128xbf16>,
    %c0_306 = arith.constant 0 : index
    %c0_307 = arith.constant 0 : index
    %c669_308 = arith.constant 669 : index
    %231 = vector.load %arg3[%c0_306, %c0_307, %c669_308] : memref<1x1x1024xf32, #tpu.memory_space<vmem>>, vector<1x1x128xf32>
    %232 = vector.shape_cast %231 : vector<1x1x128xf32> to vector<1x128xf32>
    %233 = tpu.iota {dimensions = array<i32: 1>} : vector<1x128xi32>
    %c512_i32 = arith.constant 512 : i32
    %234 = vector.broadcast %c512_i32 : i32 to vector<1x128xi32>
    %235 = arith.addi %233, %234 : vector<1x128xi32>
    %c576_i32_309 = arith.constant 576 : i32
    %236 = vector.broadcast %c576_i32_309 : i32 to vector<1x128xi32>
    %237 = arith.cmpi slt, %235, %236 : vector<1x128xi32>
    %238 = arith.extui %237 : vector<1x128xi1> to vector<1x128xi32>
    %239 = arith.sitofp %238 : vector<1x128xi32> to vector<1x128xf32>
    %240 = arith.mulf %232, %239 : vector<1x128xf32>
    %241 = vector.broadcast %240 : vector<1x128xf32> to vector<3x128xf32>
    %242 = arith.mulf %226, %241 : vector<3x128xf32>
    %cst_310 = arith.constant dense<0.000000e+00> : vector<3xf32>
    %243 = vector.multi_reduction <add>, %242, %cst_310 [1] : vector<3x128xf32> to vector<3xf32>
    %244 = vector.shape_cast %243 : vector<3xf32> to vector<3x1xf32>
    %245 = arith.addf %189, %244 : vector<3x1xf32>
    %246 = arith.mulf %242, %226 : vector<3x128xf32>
    %cst_311 = arith.constant dense<0.000000e+00> : vector<3xf32>
    %247 = vector.multi_reduction <add>, %246, %cst_311 [1] : vector<3x128xf32> to vector<3xf32>
    %248 = vector.shape_cast %247 : vector<3xf32> to vector<3x1xf32>
    %249 = arith.addf %193, %248 : vector<3x1xf32>
    %250 = tpu.concatenate %245, %249 in 1 : vector<3x1xf32>, vector<3x1xf32> -> vector<3x2xf32>
    %c0_312 = arith.constant 0 : index
    %c0_313 = arith.constant 0 : index
    %c0_314 = arith.constant 0 : index
    %c0_315 = arith.constant 0 : index
    %251 = vector.load %arg9[%c0_312, %c0_313, %c0_314, %c0_315] : memref<1x1x3x2xf32, #tpu.memory_space<vmem>>, vector<1x1x3x2xf32>
    %252 = vector.shape_cast %251 : vector<1x1x3x2xf32> to vector<3x2xf32>
    %253 = vector.shape_cast %250 : vector<3x2xf32> to vector<1x1x3x2xf32>
    tpu.vector_store %arg9[%c0_312, %c0_313, %c0_314, %c0_315], %253 {strides = array<i32>} : memref<1x1x3x2xf32, #tpu.memory_space<vmem>>, vector<1x1x3x2xf32>,
    return
  }
  func.func @transform_0(%arg0: i32, %arg1: i32) -> (i32, i32, i32, i32) {
    %c0_i32 = arith.constant 0 : i32
    %c0_i32_0 = arith.constant 0 : i32
    %c0_i32_1 = arith.constant 0 : i32
    return %arg0, %arg1, %c0_i32, %c0_i32_0 : i32, i32, i32, i32
  }
  func.func @transform_1(%arg0: i32, %arg1: i32) -> (i32, i32, i32) {
    %c0_i32 = arith.constant 0 : i32
    %c0_i32_0 = arith.constant 0 : i32
    %c0_i32_1 = arith.constant 0 : i32
    return %arg1, %c0_i32, %c0_i32_0 : i32, i32, i32
  }
  func.func @transform_2(%arg0: i32, %arg1: i32) -> (i32, i32) {
    %c0_i32 = arith.constant 0 : i32
    %c0_i32_0 = arith.constant 0 : i32
    %c0_i32_1 = arith.constant 0 : i32
    return %c0_i32, %c0_i32_0 : i32, i32
  }
  func.func @transform_3(%arg0: i32, %arg1: i32) -> (i32, i32) {
    %c0_i32 = arith.constant 0 : i32
    %c0_i32_0 = arith.constant 0 : i32
    %c0_i32_1 = arith.constant 0 : i32
    return %c0_i32, %c0_i32_0 : i32, i32
  }
  func.func @transform_4(%arg0: i32, %arg1: i32) -> (i32, i32) {
    %c0_i32 = arith.constant 0 : i32
    %c0_i32_0 = arith.constant 0 : i32
    %c0_i32_1 = arith.constant 0 : i32
    return %c0_i32, %c0_i32_0 : i32, i32
  }
  func.func @transform_5(%arg0: i32, %arg1: i32) -> (i32, i32) {
    %c0_i32 = arith.constant 0 : i32
    %c0_i32_0 = arith.constant 0 : i32
    %c0_i32_1 = arith.constant 0 : i32
    return %c0_i32, %c0_i32_0 : i32, i32
  }
  func.func @transform_6(%arg0: i32, %arg1: i32) -> (i32, i32, i32, i32) {
    %c0_i32 = arith.constant 0 : i32
    %c0_i32_0 = arith.constant 0 : i32
    %c0_i32_1 = arith.constant 0 : i32
    return %arg0, %arg1, %c0_i32, %c0_i32_0 : i32, i32, i32, i32
  }
  func.func @transform_7(%arg0: i32, %arg1: i32) -> (i32, i32, i32, i32) {
    %c0_i32 = arith.constant 0 : i32
    %c0_i32_0 = arith.constant 0 : i32
    %c0_i32_1 = arith.constant 0 : i32
    return %arg0, %arg1, %c0_i32, %c0_i32_0 : i32, i32, i32, i32
  }
}

</mosaic_0001>

<llo_original>
// kernel: conv_ins_block_forward.3
$region0: #{conv_ins_block_forward.3}
  #allocation0 [shape = 'u32[]', space=smem, size = 0x4, offset = 0x4, fixed_abs, tag = 'smem constant byte address 0x4 - core index']
  #allocation1 [shape = 'u32[144,128]{1,0:T(1,128)}', space=vmem, size = 0x12000, scoped, tag = 'internal scratch']
  %s0 = inlined_call_operand.vmem [shape: bf16[2,2,3,640], index: 0, kind: input, shape index: {}]
  %s1 = inlined_call_operand.vmem [shape: f32[2,3,1], index: 1, kind: input, shape index: {}]
  %s2 = inlined_call_operand.vmem [shape: f32[2,3,1], index: 2, kind: input, shape index: {}]
  %s3 = inlined_call_operand.vmem [shape: f32[2,2,3,640], index: 3, kind: output, shape index: {}]
  %s4 = sld [smem:[#allocation0]]
  $region45: #{conv_ins_block_forward.3} parent=0
    _
  %s6 = ssub.s32 1, %s4
  %s7 = scalar_select 0, %s6, %s4
  loop: start=0, step=1, limit=6
  $region2: #{conv_ins_block_forward.3} parent=0 // loop_pre_header
    _
  $region3: #{conv_ins_block_forward.3} parent=0 // loop_header
    %s9 = sphi 0, %s13
    %p10 = scmp.ge.s32.totalorder %s9, 6
    %s16 = sphi 0, %s28
    %s17 = sphi 0, %s24
    %s18 = sphi 0, %s16
    %s19 = sphi 0, %s17
    %s20 = sphi 0, %s18
    %s21 = sphi 0, %s19
    %s33 = sphi 0, %s35
    %s36 = sphi 0, %s33
    %s37 = sphi 0, %s36
    %s53 = sphi 0, %s37
    %s59 = sphi 0, %s61
    %s62 = sphi 0, %s59
    %s63 = sphi 0, %s62
    %s79 = sphi 0, %s63
    %s85 = sphi 0, %s87
    %s88 = sphi 0, %s85
    %s89 = sphi 0, %s88
    %s105 = sphi 0, %s89
    %s113 = sphi 0, %s115
    %s116 = sphi 0, %s113
    %s117 = sphi 0, %s116
    %s133 = sphi 0, %s117
  $region4: #{conv_ins_block_forward.3} parent=0 // loop_header_branch
    %12 = sbr.rel (%p10) target = $region8
  $region5: #{conv_ins_block_forward.3} parent=0 // loop_body
    %s14 = ssub.s32 %s9, 1
    %s15 = ssub.s32 %s9, 2
    %s22 = sadd.s32 1, %s17
    %p23 = scmp.ge.s32.totalorder %s22, 2
    %s24 = scalar_select %p23, 0, %s22
    %s25 = sadd.s32 1, %s16
    %s26 = scalar_select %p23, %s25, %s16
    %p27 = scmp.ge.s32.totalorder %s26, 2
    %s28 = scalar_select %p27, 0, %s26
    %s29 = ssub.s32 %s16, %s28
    %s30 = ssub.s32 %s17, %s24
    %s31 = sor.u32 %s29, %s30
    %p32 = scmp.eq.s32.totalorder %s31, 0
    %s34 = sadd.s32 %s33, 1
    %s35 = scalar_select %p32, %s33, %s34
    %p38 = pneg %p32
    %p39 = scmp.eq.s32.totalorder %s9, 3
    %p40 = por %p38, %p39
    %p41 = scmp.ne.s32.totalorder %s33, %s36
    %p42 = scmp.eq.s32.totalorder %s9, 0
    %p43 = por %p41, %p42
    %p44 = scmp.ne.s32.totalorder %s33, %s36
    %p45 = scmp.eq.s32.totalorder %s14, 3
    %p46 = por %p44, %p45
    %p47 = scmp.ne.s32.totalorder %s36, %s37
    %p48 = scmp.eq.s32.totalorder %s14, 0
    %p49 = por %p47, %p48
    %p50 = scmp.ne.s32.totalorder %s36, %s37
    %p51 = scmp.eq.s32.totalorder %s15, 3
    %p52 = por %p50, %p51
    %p54 = scmp.ne.s32.totalorder %s37, %s53
    %p55 = scmp.eq.s32.totalorder %s15, 0
    %p56 = por %p54, %p55
    %s57 = ssub.s32 %s16, %s28
    %p58 = scmp.eq.s32.totalorder %s57, 0
    %s60 = sadd.s32 %s59, 1
    %s61 = scalar_select %p58, %s59, %s60
    %p64 = pneg %p58
    %p65 = scmp.eq.s32.totalorder %s9, 3
    %p66 = por %p64, %p65
    %p67 = scmp.ne.s32.totalorder %s59, %s62
    %p68 = scmp.eq.s32.totalorder %s9, 0
    %p69 = por %p67, %p68
    %p70 = scmp.ne.s32.totalorder %s59, %s62
    %p71 = scmp.eq.s32.totalorder %s14, 3
    %p72 = por %p70, %p71
    %p73 = scmp.ne.s32.totalorder %s62, %s63
    %p74 = scmp.eq.s32.totalorder %s14, 0
    %p75 = por %p73, %p74
    %p76 = scmp.ne.s32.totalorder %s62, %s63
    %p77 = scmp.eq.s32.totalorder %s15, 3
    %p78 = por %p76, %p77
    %p80 = scmp.ne.s32.totalorder %s63, %s79
    %p81 = scmp.eq.s32.totalorder %s15, 0
    %p82 = por %p80, %p81
    %s83 = ssub.s32 %s16, %s28
    %p84 = scmp.eq.s32.totalorder %s83, 0
    %s86 = sadd.s32 %s85, 1
    %s87 = scalar_select %p84, %s85, %s86
    %p90 = pneg %p84
    %p91 = scmp.eq.s32.totalorder %s9, 3
    %p92 = por %p90, %p91
    %p93 = scmp.ne.s32.totalorder %s85, %s88
    %p94 = scmp.eq.s32.totalorder %s9, 0
    %p95 = por %p93, %p94
    %p96 = scmp.ne.s32.totalorder %s85, %s88
    %p97 = scmp.eq.s32.totalorder %s14, 3
    %p98 = por %p96, %p97
    %p99 = scmp.ne.s32.totalorder %s88, %s89
    %p100 = scmp.eq.s32.totalorder %s14, 0
    %p101 = por %p99, %p100
    %p102 = scmp.ne.s32.totalorder %s88, %s89
    %p103 = scmp.eq.s32.totalorder %s15, 3
    %p104 = por %p102, %p103
    %p106 = scmp.ne.s32.totalorder %s89, %s105
    %p107 = scmp.eq.s32.totalorder %s15, 0
    %p108 = por %p106, %p107
    %s109 = ssub.s32 %s16, %s28
    %s110 = ssub.s32 %s17, %s24
    %s111 = sor.u32 %s109, %s110
    %p112 = scmp.eq.s32.totalorder %s111, 0
    %s114 = sadd.s32 %s113, 1
    %s115 = scalar_select %p112, %s113, %s114
    %p118 = pneg %p112
    %p119 = scmp.eq.s32.totalorder %s9, 3
    %p120 = por %p118, %p119
    %p121 = scmp.ne.s32.totalorder %s113, %s116
    %p122 = scmp.eq.s32.totalorder %s9, 0
    %p123 = por %p121, %p122
    %p124 = scmp.ne.s32.totalorder %s113, %s116
    %p125 = scmp.eq.s32.totalorder %s14, 3
    %p126 = por %p124, %p125
    %p127 = scmp.ne.s32.totalorder %s116, %s117
    %p128 = scmp.eq.s32.totalorder %s14, 0
    %p129 = por %p127, %p128
    %p130 = scmp.ne.s32.totalorder %s116, %s117
    %p131 = scmp.eq.s32.totalorder %s15, 3
    %p132 = por %p130, %p131
    %p134 = scmp.ne.s32.totalorder %s117, %s133
    %p135 = scmp.eq.s32.totalorder %s15, 0
    %p136 = por %p134, %p135
    %p137 = scmp.le.s32.totalorder 1, %s9
    %p138 = scmp.lt.s32.totalorder %s9, 5
    %p139 = pnand %p137, %p138
    %p140 = pneg %p139
    // Predicated region
    $region9: #{conv_ins_block_forward.3} parent=5 // pred_check
      _
    $region10: #{conv_ins_block_forward.3} parent=5 // pred_check_branch
      %142 = sbr.rel (%p139) target = $region12
    $region11: #{conv_ins_block_forward.3} parent=5 // pred_region
      %s143 = ssub.s32 %s9, 1
    $region12: #{conv_ins_block_forward.3} parent=5 // pred_fallthru
      _
    %p144 = scmp.lt.s32.totalorder %s9, 4
    // Predicated region
    $region13: #{conv_ins_block_forward.3} parent=5 // pred_check
      %p145 = pneg %p144
    $region14: #{conv_ins_block_forward.3} parent=5 // pred_check_branch
      %147 = sbr.rel (%p145) target = $region16
    $region15: #{conv_ins_block_forward.3} parent=5 // pred_region
      // Predicated region
      $region17: #{conv_ins_block_forward.3} parent=15 // pred_check
        %p148 = pneg %p43
      $region18: #{conv_ins_block_forward.3} parent=15 // pred_check_branch
        %150 = sbr.rel (%p148) target = $region20
      $region19: #{conv_ins_block_forward.3} parent=15 // pred_region
        %p151 = scmp.lt.s32.totalorder %s16, 1
        %s152 = scalar_select %p151, %s16, 1
        %p153 = scmp.lt.s32.totalorder %s17, 1
        %s154 = scalar_select %p153, %s17, 1
        %s155 = smul.addr %s154, 5
        %s156 = smul.addr %s152, 10
        %s157 = sadd.s32 %s155, %s156
        %s158 = smul.addr %s157, 2
        %s159 = scalar_lea.vmem %s0, %s158
      $region20: #{conv_ins_block_forward.3} parent=15 // pred_fallthru
        _
      // Predicated region
      $region21: #{conv_ins_block_forward.3} parent=15 // pred_check
        %p160 = pneg %p69
      $region22: #{conv_ins_block_forward.3} parent=15 // pred_check_branch
        %162 = sbr.rel (%p160) target = $region24
      $region23: #{conv_ins_block_forward.3} parent=15 // pred_region
        %p163 = scmp.lt.s32.totalorder %s16, 1
        %s164 = scalar_select %p163, %s16, 1
        %s165 = smul.addr %s164, 4
        %s166 = scalar_lea.vmem %s1, %s165
      $region24: #{conv_ins_block_forward.3} parent=15 // pred_fallthru
        _
      // Predicated region
      $region25: #{conv_ins_block_forward.3} parent=15 // pred_check
        %p167 = pneg %p95
      $region26: #{conv_ins_block_forward.3} parent=15 // pred_check_branch
        %169 = sbr.rel (%p167) target = $region28
      $region27: #{conv_ins_block_forward.3} parent=15 // pred_region
        %p170 = scmp.lt.s32.totalorder %s16, 1
        %s171 = scalar_select %p170, %s16, 1
        %s172 = smul.addr %s171, 4
        %s173 = scalar_lea.vmem %s2, %s172
      $region28: #{conv_ins_block_forward.3} parent=15 // pred_fallthru
        _
    $region16: #{conv_ins_block_forward.3} parent=5 // pred_fallthru
      _
    %p174 = scmp.le.s32.totalorder 1, %s9
    %p175 = scmp.lt.s32.totalorder %s9, 5
    %p176 = pnand %p174, %p175
    %p177 = pneg %p176
    // Predicated region
    $region29: #{conv_ins_block_forward.3} parent=5 // pred_check
      _
    $region30: #{conv_ins_block_forward.3} parent=5 // pred_check_branch
      %179 = sbr.rel (%p176) target = $region32
    $region31: #{conv_ins_block_forward.3} parent=5 // pred_region
      %s180 = ssub.s32 %s9, 1
      %p181 = scmp.lt.s32.totalorder %s18, 1
      %s182 = scalar_select %p181, %s18, 1
      %p183 = scmp.lt.s32.totalorder %s19, 1
      %s184 = scalar_select %p183, %s19, 1
      %s185 = smul.addr %s184, 5
      %s186 = smul.addr %s182, 10
      %s187 = sadd.s32 %s185, %s186
      %s188 = smul.addr %s187, 2
      %s189 = scalar_lea.vmem %s0, %s188
      %p190 = pneg %p49
      %p191 = pneg %p46
      %p192 = scmp.lt.s32.totalorder %s18, 1
      %s193 = scalar_select %p192, %s18, 1
      %s194 = smul.addr %s193, 4
      %s195 = scalar_lea.vmem %s1, %s194
      %p196 = pneg %p75
      %p197 = pneg %p72
      %p198 = scmp.lt.s32.totalorder %s18, 1
      %s199 = scalar_select %p198, %s18, 1
      %s200 = smul.addr %s199, 4
      %s201 = scalar_lea.vmem %s2, %s200
      %p202 = pneg %p101
      %p203 = pneg %p98
      %p204 = pneg %p129
      %p205 = pneg %p126
      %p206 = scmp.lt.s32.totalorder %s18, 1
      %s207 = scalar_select %p206, %s18, 1
      %p208 = scmp.lt.s32.totalorder %s19, 1
      %s209 = scalar_select %p208, %s19, 1
      %s210 = smul.addr %s209, 5
      %s211 = smul.addr %s207, 10
      %s212 = sadd.s32 %s210, %s211
      %s213 = smul.addr %s212, 4
      %s214 = scalar_lea.vmem %s3, %s213
      %p215 = scmp.lt.s32.totalorder %s18, 1
      %s216 = scalar_select %p215, %s18, 1
      %p217 = scmp.lt.s32.totalorder %s19, 1
      %s218 = scalar_select %p217, %s19, 1
      %s219 = smul.addr %s218, 5
      %s220 = smul.addr %s216, 10
      %s221 = sadd.s32 %s219, %s220
      %s222 = smul.addr %s221, 2
      %s223 = scalar_lea.vmem %s0, %s222
      %p224 = scmp.lt.s32.totalorder %s18, 1
      %s225 = scalar_select %p224, %s18, 1
      %s226 = smul.addr %s225, 4
      %s227 = scalar_lea.vmem %s1, %s226
      %p228 = scmp.lt.s32.totalorder %s18, 1
      %s229 = scalar_select %p228, %s18, 1
      %s230 = smul.addr %s229, 4
      %s231 = scalar_lea.vmem %s2, %s230
      %p232 = scmp.lt.s32.totalorder %s18, 1
      %s233 = scalar_select %p232, %s18, 1
      %p234 = scmp.lt.s32.totalorder %s19, 1
      %s235 = scalar_select %p234, %s19, 1
      %s236 = smul.addr %s235, 5
      %s237 = smul.addr %s233, 10
      %s238 = sadd.s32 %s236, %s237
      %s239 = smul.addr %s238, 4
      %s240 = scalar_lea.vmem %s3, %s239
      %v241 = vld [vmem:[%s223] sm:$0xff]
      %v242 = vld [vmem:[%s223 + $0x8] sm:$0x3]
      %v243 = vunpack.c.l.bf16 %v241
      %v244 = vunpack.c.h.bf16 %v241
      %v245 = vunpack.c.l.bf16 %v242
      %v246 = vld [vmem:[%s227] sm:$0x7]
      %248 = vset.pattern.permute.xlu0 0
      %249 = vperm.xlu0 %248, %v246
      %v250 = vpop.permute.xlu0 %249
      %v252 = vunpack.c.l.s4 839922192
      %v253 = vunpack.c.0.s8 %v252
      %v254 = vlaneseq
      %v255 = vshrl.u32 %v254, 7
      %v256 = vsub.s32 %v253, %v255
      %v257 = vrot.slane %v250, %v256
      %v259 = vsub.f32 %v243, %v257
      %v260 = vsub.f32 %v244, %v257
      %v261 = vsub.f32 %v245, %v257
      %v262 = vld [vmem:[%s231] sm:$0x7]
      %264 = vset.pattern.permute.xlu0 0
      %265 = vperm.xlu0 %264, %v262
      %v266 = vpop.permute.xlu0 %265
      %v268 = vunpack.c.l.s4 839922192
      %v269 = vunpack.c.0.s8 %v268
      %v270 = vlaneseq
      %v271 = vshrl.u32 %v270, 7
      %v272 = vsub.s32 %v269, %v271
      %v273 = vrot.slane %v266, %v272
      %v275 = vmul.f32 %v259, %v273
      %v276 = vmul.f32 %v260, %v273
      %v277 = vmul.f32 %v261, %v273
      %vm278 = vcmp.gt.f32.partialorder %v275, 0.0
      %vm279 = vcmp.gt.f32.partialorder %v276, 0.0
      %vm280 = vcmp.gt.f32.partialorder %v277, 0.0
      %v281 = vmul.f32 %v275, 0.1
      %v282 = vmul.f32 %v276, 0.1
      %v283 = vmul.f32 %v277, 0.1
      %v284 = vsel %vm278, %v275, %v281
      %v285 = vsel %vm279, %v276, %v282
      %v286 = vsel %vm280, %v277, %v283
      %287 = vst [vmem:[%s240] sm:$0x77] %v284
      %288 = vst [vmem:[%s240 + $0x8] sm:$0x77] %v285
      %289 = vst [vmem:[%s240 + $0x10] sm:$0x7] %v286
      %p290 = scmp.lt.s32.totalorder %s18, 1
      %s291 = scalar_select %p290, %s18, 1
      %p292 = scmp.lt.s32.totalorder %s19, 1
      %s293 = scalar_select %p292, %s19, 1
      %s294 = smul.addr %s293, 5
      %s295 = smul.addr %s291, 10
      %s296 = sadd.s32 %s294, %s295
      %s297 = smul.addr %s296, 4
      %s298 = scalar_lea.vmem %s3, %s297
      // Predicated region
      $region33: #{conv_ins_block_forward.3} parent=31 // pred_check
        %p299 = pneg %p126
      $region34: #{conv_ins_block_forward.3} parent=31 // pred_check_branch
        %301 = sbr.rel (%p299) target = $region36
      $region35: #{conv_ins_block_forward.3} parent=31 // pred_region
        _
      $region36: #{conv_ins_block_forward.3} parent=31 // pred_fallthru
        _
    $region32: #{conv_ins_block_forward.3} parent=5 // pred_fallthru
      _
    %p302 = scmp.le.s32.totalorder 2, %s9
    // Predicated region
    $region37: #{conv_ins_block_forward.3} parent=5 // pred_check
      %p303 = pneg %p302
    $region38: #{conv_ins_block_forward.3} parent=5 // pred_check_branch
      %305 = sbr.rel (%p303) target = $region40
    $region39: #{conv_ins_block_forward.3} parent=5 // pred_region
      %s306 = ssub.s32 %s9, 2
      // Predicated region
      $region41: #{conv_ins_block_forward.3} parent=39 // pred_check
        %p307 = pneg %p132
      $region42: #{conv_ins_block_forward.3} parent=39 // pred_check_branch
        %309 = sbr.rel (%p307) target = $region44
      $region43: #{conv_ins_block_forward.3} parent=39 // pred_region
        %p310 = scmp.lt.s32.totalorder %s20, 1
        %s311 = scalar_select %p310, %s20, 1
        %p312 = scmp.lt.s32.totalorder %s21, 1
        %s313 = scalar_select %p312, %s21, 1
        %s314 = smul.addr %s313, 5
        %s315 = smul.addr %s311, 10
        %s316 = sadd.s32 %s314, %s315
        %s317 = smul.addr %s316, 4
        %s318 = scalar_lea.vmem %s3, %s317
      $region44: #{conv_ins_block_forward.3} parent=39 // pred_fallthru
        _
    $region40: #{conv_ins_block_forward.3} parent=5 // pred_fallthru
      _
  $region6: #{conv_ins_block_forward.3} parent=0 // loop_footer
    %s13 = sadd.s32 1, %s9
  $region7: #{conv_ins_block_forward.3} parent=0 // loop_footer_branch
    %8 = sbr.rel target = $region3
  $region8: #{conv_ins_block_forward.3} parent=0 // loop_exit
    _

// kernel: conv_ins_block_forward.2
$region0: #{conv_ins_block_forward.2}
  #allocation0 [shape = 'u32[]', space=smem, size = 0x4, offset = 0x4, fixed_abs, tag = 'smem constant byte address 0x4 - core index']
  #allocation1 [shape = 'u32[144,128]{1,0:T(1,128)}', space=vmem, size = 0x12000, scoped, tag = 'internal scratch']
  #allocation2 [shape = 'bf16[32,1024]{1,0:T(16,128)(2,1)}', space=vmem, size = 0x10000, scoped, tag = 'scratch operand']
  %s0 = inlined_call_operand.vmem [shape: bf16[2,2,8,1408], index: 0, kind: input, shape index: {}]
  %s1 = inlined_call_operand.vmem [shape: f32[2,1,1024], index: 1, kind: input, shape index: {}]
  %s2 = inlined_call_operand.vmem [shape: bf16[32,216], index: 2, kind: input, shape index: {}]
  %s3 = inlined_call_operand.vmem [shape: f32[32,1], index: 3, kind: input, shape index: {}]
  %s4 = inlined_call_operand.vmem [shape: bf16[3,864], index: 4, kind: input, shape index: {}]
  %s5 = inlined_call_operand.vmem [shape: f32[3,1], index: 5, kind: input, shape index: {}]
  %s6 = inlined_call_operand.vmem [shape: bf16[2,2,3,640], index: 6, kind: output, shape index: {0}]
  %s7 = inlined_call_operand.vmem [shape: f32[2,2,3,2], index: 7, kind: output, shape index: {1}]
  %8 = xla_tuple %s6, %s7
  %s9 = sld [smem:[#allocation0]]
  $region65: #{conv_ins_block_forward.2} parent=0
    _
  %s11 = ssub.s32 1, %s9
  %s12 = scalar_select 0, %s11, %s9
  loop: start=0, step=1, limit=6
  $region2: #{conv_ins_block_forward.2} parent=0 // loop_pre_header
    _
  $region3: #{conv_ins_block_forward.2} parent=0 // loop_header
    %s14 = sphi 0, %s18
    %p15 = scmp.ge.s32.totalorder %s14, 6
    %s21 = sphi 0, %s33
    %s22 = sphi 0, %s29
    %s23 = sphi 0, %s21
    %s24 = sphi 0, %s22
    %s25 = sphi 0, %s23
    %s26 = sphi 0, %s24
    %s38 = sphi 0, %s40
    %s41 = sphi 0, %s38
    %s42 = sphi 0, %s41
    %s58 = sphi 0, %s42
    %s64 = sphi 0, %s66
    %s67 = sphi 0, %s64
    %s68 = sphi 0, %s67
    %s84 = sphi 0, %s68
    %s88 = sphi 0, %s88
    %s90 = sphi 0, %s88
    %s91 = sphi 0, %s90
    %s105 = sphi 0, %s91
    %s109 = sphi 0, %s109
    %s111 = sphi 0, %s109
    %s112 = sphi 0, %s111
    %s126 = sphi 0, %s112
    %s130 = sphi 0, %s130
    %s132 = sphi 0, %s130
    %s133 = sphi 0, %s132
    %s147 = sphi 0, %s133
    %s151 = sphi 0, %s151
    %s153 = sphi 0, %s151
    %s154 = sphi 0, %s153
    %s168 = sphi 0, %s154
    %s176 = sphi 0, %s178
    %s179 = sphi 0, %s176
    %s180 = sphi 0, %s179
    %s196 = sphi 0, %s180
    %s204 = sphi 0, %s206
    %s207 = sphi 0, %s204
    %s208 = sphi 0, %s207
    %s224 = sphi 0, %s208
  $region4: #{conv_ins_block_forward.2} parent=0 // loop_header_branch
    %17 = sbr.rel (%p15) target = $region8
  $region5: #{conv_ins_block_forward.2} parent=0 // loop_body
    %s19 = ssub.s32 %s14, 1
    %s20 = ssub.s32 %s14, 2
    %s27 = sadd.s32 1, %s22
    %p28 = scmp.ge.s32.totalorder %s27, 2
    %s29 = scalar_select %p28, 0, %s27
    %s30 = sadd.s32 1, %s21
    %s31 = scalar_select %p28, %s30, %s21
    %p32 = scmp.ge.s32.totalorder %s31, 2
    %s33 = scalar_select %p32, 0, %s31
    %s34 = ssub.s32 %s21, %s33
    %s35 = ssub.s32 %s22, %s29
    %s36 = sor.u32 %s34, %s35
    %p37 = scmp.eq.s32.totalorder %s36, 0
    %s39 = sadd.s32 %s38, 1
    %s40 = scalar_select %p37, %s38, %s39
    %p43 = pneg %p37
    %p44 = scmp.eq.s32.totalorder %s14, 3
    %p45 = por %p43, %p44
    %p46 = scmp.ne.s32.totalorder %s38, %s41
    %p47 = scmp.eq.s32.totalorder %s14, 0
    %p48 = por %p46, %p47
    %p49 = scmp.ne.s32.totalorder %s38, %s41
    %p50 = scmp.eq.s32.totalorder %s19, 3
    %p51 = por %p49, %p50
    %p52 = scmp.ne.s32.totalorder %s41, %s42
    %p53 = scmp.eq.s32.totalorder %s19, 0
    %p54 = por %p52, %p53
    %p55 = scmp.ne.s32.totalorder %s41, %s42
    %p56 = scmp.eq.s32.totalorder %s20, 3
    %p57 = por %p55, %p56
    %p59 = scmp.ne.s32.totalorder %s42, %s58
    %p60 = scmp.eq.s32.totalorder %s20, 0
    %p61 = por %p59, %p60
    %s62 = ssub.s32 %s22, %s29
    %p63 = scmp.eq.s32.totalorder %s62, 0
    %s65 = sadd.s32 %s64, 1
    %s66 = scalar_select %p63, %s64, %s65
    %p69 = pneg %p63
    %p70 = scmp.eq.s32.totalorder %s14, 3
    %p71 = por %p69, %p70
    %p72 = scmp.ne.s32.totalorder %s64, %s67
    %p73 = scmp.eq.s32.totalorder %s14, 0
    %p74 = por %p72, %p73
    %p75 = scmp.ne.s32.totalorder %s64, %s67
    %p76 = scmp.eq.s32.totalorder %s19, 3
    %p77 = por %p75, %p76
    %p78 = scmp.ne.s32.totalorder %s67, %s68
    %p79 = scmp.eq.s32.totalorder %s19, 0
    %p80 = por %p78, %p79
    %p81 = scmp.ne.s32.totalorder %s67, %s68
    %p82 = scmp.eq.s32.totalorder %s20, 3
    %p83 = por %p81, %p82
    %p85 = scmp.ne.s32.totalorder %s68, %s84
    %p86 = scmp.eq.s32.totalorder %s20, 0
    %p87 = por %p85, %p86
    %s89 = sadd.s32 %s88, 1
    %p92 = scmp.eq.s32.totalorder %s14, 3
    %p93 = scmp.ne.s32.totalorder %s88, %s90
    %p94 = scmp.eq.s32.totalorder %s14, 0
    %p95 = por %p93, %p94
    %p96 = scmp.ne.s32.totalorder %s88, %s90
    %p97 = scmp.eq.s32.totalorder %s19, 3
    %p98 = por %p96, %p97
    %p99 = scmp.ne.s32.totalorder %s90, %s91
    %p100 = scmp.eq.s32.totalorder %s19, 0
    %p101 = por %p99, %p100
    %p102 = scmp.ne.s32.totalorder %s90, %s91
    %p103 = scmp.eq.s32.totalorder %s20, 3
    %p104 = por %p102, %p103
    %p106 = scmp.ne.s32.totalorder %s91, %s105
    %p107 = scmp.eq.s32.totalorder %s20, 0
    %p108 = por %p106, %p107
    %s110 = sadd.s32 %s109, 1
    %p113 = scmp.eq.s32.totalorder %s14, 3
    %p114 = scmp.ne.s32.totalorder %s109, %s111
    %p115 = scmp.eq.s32.totalorder %s14, 0
    %p116 = por %p114, %p115
    %p117 = scmp.ne.s32.totalorder %s109, %s111
    %p118 = scmp.eq.s32.totalorder %s19, 3
    %p119 = por %p117, %p118
    %p120 = scmp.ne.s32.totalorder %s111, %s112
    %p121 = scmp.eq.s32.totalorder %s19, 0
    %p122 = por %p120, %p121
    %p123 = scmp.ne.s32.totalorder %s111, %s112
    %p124 = scmp.eq.s32.totalorder %s20, 3
    %p125 = por %p123, %p124
    %p127 = scmp.ne.s32.totalorder %s112, %s126
    %p128 = scmp.eq.s32.totalorder %s20, 0
    %p129 = por %p127, %p128
    %s131 = sadd.s32 %s130, 1
    %p134 = scmp.eq.s32.totalorder %s14, 3
    %p135 = scmp.ne.s32.totalorder %s130, %s132
    %p136 = scmp.eq.s32.totalorder %s14, 0
    %p137 = por %p135, %p136
    %p138 = scmp.ne.s32.totalorder %s130, %s132
    %p139 = scmp.eq.s32.totalorder %s19, 3
    %p140 = por %p138, %p139
    %p141 = scmp.ne.s32.totalorder %s132, %s133
    %p142 = scmp.eq.s32.totalorder %s19, 0
    %p143 = por %p141, %p142
    %p144 = scmp.ne.s32.totalorder %s132, %s133
    %p145 = scmp.eq.s32.totalorder %s20, 3
    %p146 = por %p144, %p145
    %p148 = scmp.ne.s32.totalorder %s133, %s147
    %p149 = scmp.eq.s32.totalorder %s20, 0
    %p150 = por %p148, %p149
    %s152 = sadd.s32 %s151, 1
    %p155 = scmp.eq.s32.totalorder %s14, 3
    %p156 = scmp.ne.s32.totalorder %s151, %s153
    %p157 = scmp.eq.s32.totalorder %s14, 0
    %p158 = por %p156, %p157
    %p159 = scmp.ne.s32.totalorder %s151, %s153
    %p160 = scmp.eq.s32.totalorder %s19, 3
    %p161 = por %p159, %p160
    %p162 = scmp.ne.s32.totalorder %s153, %s154
    %p163 = scmp.eq.s32.totalorder %s19, 0
    %p164 = por %p162, %p163
    %p165 = scmp.ne.s32.totalorder %s153, %s154
    %p166 = scmp.eq.s32.totalorder %s20, 3
    %p167 = por %p165, %p166
    %p169 = scmp.ne.s32.totalorder %s154, %s168
    %p170 = scmp.eq.s32.totalorder %s20, 0
    %p171 = por %p169, %p170
    %s172 = ssub.s32 %s21, %s33
    %s173 = ssub.s32 %s22, %s29
    %s174 = sor.u32 %s172, %s173
    %p175 = scmp.eq.s32.totalorder %s174, 0
    %s177 = sadd.s32 %s176, 1
    %s178 = scalar_select %p175, %s176, %s177
    %p181 = pneg %p175
    %p182 = scmp.eq.s32.totalorder %s14, 3
    %p183 = por %p181, %p182
    %p184 = scmp.ne.s32.totalorder %s176, %s179
    %p185 = scmp.eq.s32.totalorder %s14, 0
    %p186 = por %p184, %p185
    %p187 = scmp.ne.s32.totalorder %s176, %s179
    %p188 = scmp.eq.s32.totalorder %s19, 3
    %p189 = por %p187, %p188
    %p190 = scmp.ne.s32.totalorder %s179, %s180
    %p191 = scmp.eq.s32.totalorder %s19, 0
    %p192 = por %p190, %p191
    %p193 = scmp.ne.s32.totalorder %s179, %s180
    %p194 = scmp.eq.s32.totalorder %s20, 3
    %p195 = por %p193, %p194
    %p197 = scmp.ne.s32.totalorder %s180, %s196
    %p198 = scmp.eq.s32.totalorder %s20, 0
    %p199 = por %p197, %p198
    %s200 = ssub.s32 %s21, %s33
    %s201 = ssub.s32 %s22, %s29
    %s202 = sor.u32 %s200, %s201
    %p203 = scmp.eq.s32.totalorder %s202, 0
    %s205 = sadd.s32 %s204, 1
    %s206 = scalar_select %p203, %s204, %s205
    %p209 = pneg %p203
    %p210 = scmp.eq.s32.totalorder %s14, 3
    %p211 = por %p209, %p210
    %p212 = scmp.ne.s32.totalorder %s204, %s207
    %p213 = scmp.eq.s32.totalorder %s14, 0
    %p214 = por %p212, %p213
    %p215 = scmp.ne.s32.totalorder %s204, %s207
    %p216 = scmp.eq.s32.totalorder %s19, 3
    %p217 = por %p215, %p216
    %p218 = scmp.ne.s32.totalorder %s207, %s208
    %p219 = scmp.eq.s32.totalorder %s19, 0
    %p220 = por %p218, %p219
    %p221 = scmp.ne.s32.totalorder %s207, %s208
    %p222 = scmp.eq.s32.totalorder %s20, 3
    %p223 = por %p221, %p222
    %p225 = scmp.ne.s32.totalorder %s208, %s224
    %p226 = scmp.eq.s32.totalorder %s20, 0
    %p227 = por %p225, %p226
    %p228 = scmp.le.s32.totalorder 1, %s14
    %p229 = scmp.lt.s32.totalorder %s14, 5
    %p230 = pnand %p228, %p229
    %p231 = pneg %p230
    // Predicated region
    $region9: #{conv_ins_block_forward.2} parent=5 // pred_check
      _
    $region10: #{conv_ins_block_forward.2} parent=5 // pred_check_branch
      %233 = sbr.rel (%p230) target = $region12
    $region11: #{conv_ins_block_forward.2} parent=5 // pred_region
      %s234 = ssub.s32 %s14, 1
      // Predicated region
      $region13: #{conv_ins_block_forward.2} parent=11 // pred_check
        %p235 = pneg %p101
      $region14: #{conv_ins_block_forward.2} parent=11 // pred_check_branch
        %237 = sbr.rel (%p235) target = $region16
      $region15: #{conv_ins_block_forward.2} parent=11 // pred_region
        _
      $region16: #{conv_ins_block_forward.2} parent=11 // pred_fallthru
        _
      // Predicated region
      $region17: #{conv_ins_block_forward.2} parent=11 // pred_check
        %p238 = pneg %p122
      $region18: #{conv_ins_block_forward.2} parent=11 // pred_check_branch
        %240 = sbr.rel (%p238) target = $region20
      $region19: #{conv_ins_block_forward.2} parent=11 // pred_region
        _
      $region20: #{conv_ins_block_forward.2} parent=11 // pred_fallthru
        _
      // Predicated region
      $region21: #{conv_ins_block_forward.2} parent=11 // pred_check
        %p241 = pneg %p143
      $region22: #{conv_ins_block_forward.2} parent=11 // pred_check_branch
        %243 = sbr.rel (%p241) target = $region24
      $region23: #{conv_ins_block_forward.2} parent=11 // pred_region
        _
      $region24: #{conv_ins_block_forward.2} parent=11 // pred_fallthru
        _
      // Predicated region
      $region25: #{conv_ins_block_forward.2} parent=11 // pred_check
        %p244 = pneg %p164
      $region26: #{conv_ins_block_forward.2} parent=11 // pred_check_branch
        %246 = sbr.rel (%p244) target = $region28
      $region27: #{conv_ins_block_forward.2} parent=11 // pred_region
        _
      $region28: #{conv_ins_block_forward.2} parent=11 // pred_fallthru
        _
    $region12: #{conv_ins_block_forward.2} parent=5 // pred_fallthru
      _
    %p247 = scmp.lt.s32.totalorder %s14, 4
    // Predicated region
    $region29: #{conv_ins_block_forward.2} parent=5 // pred_check
      %p248 = pneg %p247
    $region30: #{conv_ins_block_forward.2} parent=5 // pred_check_branch
      %250 = sbr.rel (%p248) target = $region32
    $region31: #{conv_ins_block_forward.2} parent=5 // pred_region
      // Predicated region
      $region33: #{conv_ins_block_forward.2} parent=31 // pred_check
        %p251 = pneg %p48
      $region34: #{conv_ins_block_forward.2} parent=31 // pred_check_branch
        %253 = sbr.rel (%p251) target = $region36
      $region35: #{conv_ins_block_forward.2} parent=31 // pred_region
        %p254 = scmp.lt.s32.totalorder %s21, 1
        %s255 = scalar_select %p254, %s21, 1
        %p256 = scmp.lt.s32.totalorder %s22, 1
        %s257 = scalar_select %p256, %s22, 1
        %s258 = smul.addr %s257, 11
        %s259 = smul.addr %s255, 22
        %s260 = sadd.s32 %s258, %s259
        %s261 = smul.addr %s260, 4
        %s262 = scalar_lea.vmem %s0, %s261
      $region36: #{conv_ins_block_forward.2} parent=31 // pred_fallthru
        _
      // Predicated region
      $region37: #{conv_ins_block_forward.2} parent=31 // pred_check
        %p263 = pneg %p74
      $region38: #{conv_ins_block_forward.2} parent=31 // pred_check_branch
        %265 = sbr.rel (%p263) target = $region40
      $region39: #{conv_ins_block_forward.2} parent=31 // pred_region
        %p266 = scmp.lt.s32.totalorder %s22, 1
        %s267 = scalar_select %p266, %s22, 1
        %s268 = smul.addr %s267, 8
        %s269 = scalar_lea.vmem %s1, %s268
      $region40: #{conv_ins_block_forward.2} parent=31 // pred_fallthru
        _
    $region32: #{conv_ins_block_forward.2} parent=5 // pred_fallthru
      _
    %p270 = scmp.le.s32.totalorder 1, %s14
    %p271 = scmp.lt.s32.totalorder %s14, 5
    %p272 = pnand %p270, %p271
    %p273 = pneg %p272
    // Predicated region
    $region41: #{conv_ins_block_forward.2} parent=5 // pred_check
      _
    $region42: #{conv_ins_block_forward.2} parent=5 // pred_check_branch
      %275 = sbr.rel (%p272) target = $region44
    $region43: #{conv_ins_block_forward.2} parent=5 // pred_region
      %s276 = ssub.s32 %s14, 1
      %p277 = scmp.lt.s32.totalorder %s23, 1
      %s278 = scalar_select %p277, %s23, 1
      %p279 = scmp.lt.s32.totalorder %s24, 1
      %s280 = scalar_select %p279, %s24, 1
      %s281 = smul.addr %s280, 11
      %s282 = smul.addr %s278, 22
      %s283 = sadd.s32 %s281, %s282
      %s284 = smul.addr %s283, 4
      %s285 = scalar_lea.vmem %s0, %s284
      %p286 = pneg %p54
      %p287 = pneg %p51
      %p288 = scmp.lt.s32.totalorder %s24, 1
      %s289 = scalar_select %p288, %s24, 1
      %s290 = smul.addr %s289, 8
      %s291 = scalar_lea.vmem %s1, %s290
      %p292 = pneg %p80
      %p293 = pneg %p77
      %p294 = pneg %p101
      %p295 = pneg %p98
      %p296 = pneg %p122
      %p297 = pneg %p119
      %p298 = pneg %p143
      %p299 = pneg %p140
      %p300 = pneg %p164
      %p301 = pneg %p161
      %p302 = pneg %p192
      %p303 = pneg %p189
      %p304 = scmp.lt.s32.totalorder %s23, 1
      %s305 = scalar_select %p304, %s23, 1
      %p306 = scmp.lt.s32.totalorder %s24, 1
      %s307 = scalar_select %p306, %s24, 1
      %s308 = smul.addr %s307, 5
      %s309 = smul.addr %s305, 10
      %s310 = sadd.s32 %s308, %s309
      %s311 = smul.addr %s310, 2
      %s312 = scalar_lea.vmem %s6, %s311
      %p313 = pneg %p220
      %p314 = pneg %p217
      %p315 = scmp.lt.s32.totalorder %s23, 1
      %s316 = scalar_select %p315, %s23, 1
      %p317 = scmp.lt.s32.totalorder %s24, 1
      %s318 = scalar_select %p317, %s24, 1
      %s319 = smul.addr %s316, 2
      %s320 = sadd.s32 %s318, %s319
      %s321 = smul.addr %s320, 4
      %s322 = scalar_lea.vmem %s7, %s321
      %p323 = scmp.lt.s32.totalorder %s23, 1
      %s324 = scalar_select %p323, %s23, 1
      %p325 = scmp.lt.s32.totalorder %s24, 1
      %s326 = scalar_select %p325, %s24, 1
      %s327 = smul.addr %s326, 11
      %s328 = smul.addr %s324, 22
      %s329 = sadd.s32 %s327, %s328
      %s330 = smul.addr %s329, 4
      %s331 = scalar_lea.vmem %s0, %s330
      %p332 = scmp.lt.s32.totalorder %s24, 1
      %s333 = scalar_select %p332, %s24, 1
      %s334 = smul.addr %s333, 8
      %s335 = scalar_lea.vmem %s1, %s334
      %p336 = scmp.lt.s32.totalorder %s23, 1
      %s337 = scalar_select %p336, %s23, 1
      %p338 = scmp.lt.s32.totalorder %s24, 1
      %s339 = scalar_select %p338, %s24, 1
      %s340 = smul.addr %s339, 5
      %s341 = smul.addr %s337, 10
      %s342 = sadd.s32 %s340, %s341
      %s343 = smul.addr %s342, 2
      %s344 = scalar_lea.vmem %s6, %s343
      %p345 = scmp.lt.s32.totalorder %s23, 1
      %s346 = scalar_select %p345, %s23, 1
      %p347 = scmp.lt.s32.totalorder %s24, 1
      %s348 = scalar_select %p347, %s24, 1
      %s349 = smul.addr %s346, 2
      %s350 = sadd.s32 %s348, %s349
      %s351 = smul.addr %s350, 4
      %s352 = scalar_lea.vmem %s7, %s351
      %v354 = vld [vmem:[%s2] sm:$0xff]
      %v355 = vld [vmem:[%s2 + $0x8] sm:$0xff]
      %v356 = vld [vmem:[%s2 + $0x10] sm:$0xff]
      %v357 = vld [vmem:[%s2 + $0x18] sm:$0xff]
      %v358 = vld [vmem:[%s4] sm:$0xff]
      %v359 = vld [vmem:[%s4 + $0x8] sm:$0x3f]
      %v360 = vld [vmem:[%s3] sm:$0xff]
      %v361 = vld [vmem:[%s3 + $0x8] sm:$0xff]
      %v362 = vld [vmem:[%s3 + $0x10] sm:$0xff]
      %v363 = vld [vmem:[%s3 + $0x18] sm:$0xff]
      %v364 = vld [vmem:[%s5] sm:$0x7]
      %v365 = vld [vmem:[%s331] sm:$0xff]
      %v366 = vld [vmem:[%s331 + $0x8] sm:$0xff]
      %v367 = vld [vmem:[%s331 + $0x10] sm:$0xf]
      %v368 = vld [vmem:[%s331 + $0x4] sm:$0xff]
      %v369 = vld [vmem:[%s331 + $0xc] sm:$0xff]
      %v370 = vld [vmem:[%s331 + $0x14] sm:$0xf]
      %v371 = vld [vmem:[%s331 + $0x10] sm:$0xff]
      %v372 = vld [vmem:[%s331 + $0x18] sm:$0xf]
      %v375 = vunpack.c.l.b16 %v365
      %v376 = vunpack.c.h.b16 %v365
      %v377 = vunpack.c.l.b16 %v366
      %v378 = vunpack.c.h.b16 %v366
      %v379 = vpack.c.b16 %v375, %v375
      %v380 = vpack.c.b16 %v376, %v376
      %v381 = vpack.c.b16 %v377, %v377
      %v382 = vpack.c.b16 %v378, %v378
      %v384 = vunpack.c.l.b16 %v367
      %v385 = vpack.c.b16 %v384, %v384
      %386 = vrot.lane.b32.xlu0 %v379, 127
      %v387 = vpop.permute.xlu0 %386
      %388 = vrot.lane.b32.xlu0 %v380, 127
      %v389 = vpop.permute.xlu0 %388
      %390 = vrot.lane.b32.xlu0 %v381, 127
      %v391 = vpop.permute.xlu0 %390
      %392 = vrot.lane.b32.xlu0 %v382, 127
      %v393 = vpop.permute.xlu0 %392
      %394 = vrot.lane.b32.xlu0 %v385, 127
      %v395 = vpop.permute.xlu0 %394
      %vm396 = vcmask 1039360
      %v397 = vsel %vm396, %v387, %v389
      %v398 = vsel %vm396, %v389, %v391
      %v399 = vsel %vm396, %v391, %v393
      %v400 = vsel %vm396, %v393, %v395
      %401 = vrot.lane.b32.xlu0 %v379, 126
      %v402 = vpop.permute.xlu0 %401
      %403 = vrot.lane.b32.xlu0 %v380, 126
      %v404 = vpop.permute.xlu0 %403
      %405 = vrot.lane.b32.xlu0 %v381, 126
      %v406 = vpop.permute.xlu0 %405
      %407 = vrot.lane.b32.xlu0 %v382, 126
      %v408 = vpop.permute.xlu0 %407
      %409 = vrot.lane.b32.xlu0 %v385, 126
      %v410 = vpop.permute.xlu0 %409
      %vm411 = vcmask 1031168
      %v412 = vsel %vm411, %v402, %v404
      %v413 = vsel %vm411, %v404, %v406
      %v414 = vsel %vm411, %v406, %v408
      %v415 = vsel %vm411, %v408, %v410
      %416 = vrot.lane.b32.xlu0 %v379, 116
      %v417 = vpop.permute.xlu0 %416
      %418 = vrot.lane.b32.xlu0 %v380, 116
      %v419 = vpop.permute.xlu0 %418
      %420 = vrot.lane.b32.xlu0 %v381, 116
      %v421 = vpop.permute.xlu0 %420
      %422 = vrot.lane.b32.xlu0 %v382, 116
      %v423 = vpop.permute.xlu0 %422
      %424 = vrot.lane.b32.xlu0 %v385, 116
      %v425 = vpop.permute.xlu0 %424
      %vm426 = vcmask 949248
      %v427 = vsel %vm426, %v417, %v419
      %v428 = vsel %vm426, %v419, %v421
      %v429 = vsel %vm426, %v421, %v423
      %v430 = vsel %vm426, %v423, %v425
      %431 = vrot.lane.b32.xlu0 %v379, 115
      %v432 = vpop.permute.xlu0 %431
      %433 = vrot.lane.b32.xlu0 %v380, 115
      %v434 = vpop.permute.xlu0 %433
      %435 = vrot.lane.b32.xlu0 %v381, 115
      %v436 = vpop.permute.xlu0 %435
      %437 = vrot.lane.b32.xlu0 %v382, 115
      %v438 = vpop.permute.xlu0 %437
      %439 = vrot.lane.b32.xlu0 %v385, 115
      %v440 = vpop.permute.xlu0 %439
      %vm441 = vcmask 941056
      %v442 = vsel %vm441, %v432, %v434
      %v443 = vsel %vm441, %v434, %v436
      %v444 = vsel %vm441, %v436, %v438
      %v445 = vsel %vm441, %v438, %v440
      %446 = vrot.lane.b32.xlu0 %v379, 114
      %v447 = vpop.permute.xlu0 %446
      %448 = vrot.lane.b32.xlu0 %v380, 114
      %v449 = vpop.permute.xlu0 %448
      %450 = vrot.lane.b32.xlu0 %v381, 114
      %v451 = vpop.permute.xlu0 %450
      %452 = vrot.lane.b32.xlu0 %v382, 114
      %v453 = vpop.permute.xlu0 %452
      %454 = vrot.lane.b32.xlu0 %v385, 114
      %v455 = vpop.permute.xlu0 %454
      %vm456 = vcmask 932864
      %v457 = vsel %vm456, %v447, %v449
      %v458 = vsel %vm456, %v449, %v451
      %v459 = vsel %vm456, %v451, %v453
      %v460 = vsel %vm456, %v453, %v455
      %461 = vrot.lane.b32.xlu0 %v379, 104
      %v462 = vpop.permute.xlu0 %461
      %463 = vrot.lane.b32.xlu0 %v380, 104
      %v464 = vpop.permute.xlu0 %463
      %465 = vrot.lane.b32.xlu0 %v381, 104
      %v466 = vpop.permute.xlu0 %465
      %467 = vrot.lane.b32.xlu0 %v382, 104
      %v468 = vpop.permute.xlu0 %467
      %469 = vrot.lane.b32.xlu0 %v385, 104
      %v470 = vpop.permute.xlu0 %469
      %vm471 = vcmask 850944
      %v472 = vsel %vm471, %v462, %v464
      %v473 = vsel %vm471, %v464, %v466
      %v474 = vsel %vm471, %v466, %v468
      %v475 = vsel %vm471, %v468, %v470
      %476 = vrot.lane.b32.xlu0 %v379, 103
      %v477 = vpop.permute.xlu0 %476
      %478 = vrot.lane.b32.xlu0 %v380, 103
      %v479 = vpop.permute.xlu0 %478
      %480 = vrot.lane.b32.xlu0 %v381, 103
      %v481 = vpop.permute.xlu0 %480
      %482 = vrot.lane.b32.xlu0 %v382, 103
      %v483 = vpop.permute.xlu0 %482
      %484 = vrot.lane.b32.xlu0 %v385, 103
      %v485 = vpop.permute.xlu0 %484
      %vm486 = vcmask 842752
      %v487 = vsel %vm486, %v477, %v479
      %v488 = vsel %vm486, %v479, %v481
      %v489 = vsel %vm486, %v481, %v483
      %v490 = vsel %vm486, %v483, %v485
      %491 = vrot.lane.b32.xlu0 %v379, 102
      %v492 = vpop.permute.xlu0 %491
      %493 = vrot.lane.b32.xlu0 %v380, 102
      %v494 = vpop.permute.xlu0 %493
      %495 = vrot.lane.b32.xlu0 %v381, 102
      %v496 = vpop.permute.xlu0 %495
      %497 = vrot.lane.b32.xlu0 %v382, 102
      %v498 = vpop.permute.xlu0 %497
      %499 = vrot.lane.b32.xlu0 %v385, 102
      %v500 = vpop.permute.xlu0 %499
      %vm501 = vcmask 834560
      %v502 = vsel %vm501, %v492, %v494
      %v503 = vsel %vm501, %v494, %v496
      %v504 = vsel %vm501, %v496, %v498
      %v505 = vsel %vm501, %v498, %v500
      %v509 = vunpack.c.l.b16 %v368
      %v510 = vunpack.c.h.b16 %v368
      %v511 = vunpack.c.l.b16 %v369
      %v512 = vunpack.c.h.b16 %v369
      %v513 = vunpack.c.l.b16 %v370
      %v514 = vpack.c.b16 %v509, %v509
      %v515 = vpack.c.b16 %v510, %v510
      %v516 = vpack.c.b16 %v511, %v511
      %v517 = vpack.c.b16 %v512, %v512
      %v518 = vpack.c.b16 %v513, %v513
      %519 = vrot.lane.b32.xlu0 %v514, 112
      %v520 = vpop.permute.xlu0 %519
      %521 = vrot.lane.b32.xlu0 %v515, 112
      %v522 = vpop.permute.xlu0 %521
      %523 = vrot.lane.b32.xlu0 %v516, 112
      %v524 = vpop.permute.xlu0 %523
      %525 = vrot.lane.b32.xlu0 %v517, 112
      %v526 = vpop.permute.xlu0 %525
      %527 = vrot.lane.b32.xlu0 %v518, 112
      %v528 = vpop.permute.xlu0 %527
      %vm529 = vcmask 916480
      %v530 = vsel %vm529, %v520, %v522
      %v531 = vsel %vm529, %v522, %v524
      %v532 = vsel %vm529, %v524, %v526
      %v533 = vsel %vm529, %v526, %v528
      %534 = vrot.lane.b32.xlu0 %v514, 111
      %v535 = vpop.permute.xlu0 %534
      %536 = vrot.lane.b32.xlu0 %v515, 111
      %v537 = vpop.permute.xlu0 %536
      %538 = vrot.lane.b32.xlu0 %v516, 111
      %v539 = vpop.permute.xlu0 %538
      %540 = vrot.lane.b32.xlu0 %v517, 111
      %v541 = vpop.permute.xlu0 %540
      %542 = vrot.lane.b32.xlu0 %v518, 111
      %v543 = vpop.permute.xlu0 %542
      %vm544 = vcmask 908288
      %v545 = vsel %vm544, %v535, %v537
      %v546 = vsel %vm544, %v537, %v539
      %v547 = vsel %vm544, %v539, %v541
      %v548 = vsel %vm544, %v541, %v543
      %549 = vrot.lane.b32.xlu0 %v514, 110
      %v550 = vpop.permute.xlu0 %549
      %551 = vrot.lane.b32.xlu0 %v515, 110
      %v552 = vpop.permute.xlu0 %551
      %553 = vrot.lane.b32.xlu0 %v516, 110
      %v554 = vpop.permute.xlu0 %553
      %555 = vrot.lane.b32.xlu0 %v517, 110
      %v556 = vpop.permute.xlu0 %555
      %557 = vrot.lane.b32.xlu0 %v518, 110
      %v558 = vpop.permute.xlu0 %557
      %vm559 = vcmask 900096
      %v560 = vsel %vm559, %v550, %v552
      %v561 = vsel %vm559, %v552, %v554
      %v562 = vsel %vm559, %v554, %v556
      %v563 = vsel %vm559, %v556, %v558
      %564 = vrot.lane.b32.xlu0 %v514, 100
      %v565 = vpop.permute.xlu0 %564
      %566 = vrot.lane.b32.xlu0 %v515, 100
      %v567 = vpop.permute.xlu0 %566
      %568 = vrot.lane.b32.xlu0 %v516, 100
      %v569 = vpop.permute.xlu0 %568
      %570 = vrot.lane.b32.xlu0 %v517, 100
      %v571 = vpop.permute.xlu0 %570
      %572 = vrot.lane.b32.xlu0 %v518, 100
      %v573 = vpop.permute.xlu0 %572
      %vm574 = vcmask 818176
      %v575 = vsel %vm574, %v565, %v567
      %v576 = vsel %vm574, %v567, %v569
      %v577 = vsel %vm574, %v569, %v571
      %v578 = vsel %vm574, %v571, %v573
      %579 = vrot.lane.b32.xlu0 %v514, 99
      %v580 = vpop.permute.xlu0 %579
      %581 = vrot.lane.b32.xlu0 %v515, 99
      %v582 = vpop.permute.xlu0 %581
      %583 = vrot.lane.b32.xlu0 %v516, 99
      %v584 = vpop.permute.xlu0 %583
      %585 = vrot.lane.b32.xlu0 %v517, 99
      %v586 = vpop.permute.xlu0 %585
      %587 = vrot.lane.b32.xlu0 %v518, 99
      %v588 = vpop.permute.xlu0 %587
      %vm589 = vcmask 809984
      %v590 = vsel %vm589, %v580, %v582
      %v591 = vsel %vm589, %v582, %v584
      %v592 = vsel %vm589, %v584, %v586
      %v593 = vsel %vm589, %v586, %v588
      %594 = vrot.lane.b32.xlu0 %v514, 98
      %v595 = vpop.permute.xlu0 %594
      %596 = vrot.lane.b32.xlu0 %v515, 98
      %v597 = vpop.permute.xlu0 %596
      %598 = vrot.lane.b32.xlu0 %v516, 98
      %v599 = vpop.permute.xlu0 %598
      %600 = vrot.lane.b32.xlu0 %v517, 98
      %v601 = vpop.permute.xlu0 %600
      %602 = vrot.lane.b32.xlu0 %v518, 98
      %v603 = vpop.permute.xlu0 %602
      %vm604 = vcmask 801792
      %v605 = vsel %vm604, %v595, %v597
      %v606 = vsel %vm604, %v597, %v599
      %v607 = vsel %vm604, %v599, %v601
      %v608 = vsel %vm604, %v601, %v603
      %609 = vrot.lane.b32.xlu0 %v514, 88
      %v610 = vpop.permute.xlu0 %609
      %611 = vrot.lane.b32.xlu0 %v515, 88
      %v612 = vpop.permute.xlu0 %611
      %613 = vrot.lane.b32.xlu0 %v516, 88
      %v614 = vpop.permute.xlu0 %613
      %615 = vrot.lane.b32.xlu0 %v517, 88
      %v616 = vpop.permute.xlu0 %615
      %617 = vrot.lane.b32.xlu0 %v518, 88
      %v618 = vpop.permute.xlu0 %617
      %vm619 = vcmask 719872
      %v620 = vsel %vm619, %v610, %v612
      %v621 = vsel %vm619, %v612, %v614
      %v622 = vsel %vm619, %v614, %v616
      %v623 = vsel %vm619, %v616, %v618
      %vm624 = vcmask 1043456
      %v627 = vsel %vm624, %v379, %v397
      %v631 = vsel %vm624, %v380, %v398
      %v635 = vsel %vm624, %v381, %v399
      %v639 = vsel %vm624, %v382, %v400
      %v643 = vsel %vm624, %v412, %v427
      %v647 = vsel %vm624, %v413, %v428
      %v651 = vsel %vm624, %v414, %v429
      %v655 = vsel %vm624, %v415, %v430
      %v659 = vsel %vm624, %v442, %v457
      %v663 = vsel %vm624, %v443, %v458
      %v667 = vsel %vm624, %v444, %v459
      %v671 = vsel %vm624, %v445, %v460
      %v675 = vsel %vm624, %v472, %v487
      %v679 = vsel %vm624, %v473, %v488
      %v683 = vsel %vm624, %v474, %v489
      %v687 = vsel %vm624, %v475, %v490
      %v691 = vsel %vm624, %v502, %v530
      %v695 = vsel %vm624, %v503, %v531
      %v699 = vsel %vm624, %v504, %v532
      %v703 = vsel %vm624, %v505, %v533
      %v707 = vsel %vm624, %v545, %v560
      %v711 = vsel %vm624, %v546, %v561
      %v715 = vsel %vm624, %v547, %v562
      %v719 = vsel %vm624, %v548, %v563
      %v723 = vsel %vm624, %v575, %v590
      %v727 = vsel %vm624, %v576, %v591
      %v731 = vsel %vm624, %v577, %v592
      %v735 = vsel %vm624, %v578, %v593
      %v739 = vsel %vm624, %v605, %v620
      %v743 = vsel %vm624, %v606, %v621
      %v747 = vsel %vm624, %v607, %v622
      %v751 = vsel %vm624, %v608, %v623
      %753 = vrot.lane.b32.xlu0 %v514, 127
      %v754 = vpop.permute.xlu0 %753
      %755 = vrot.lane.b32.xlu0 %v515, 127
      %v756 = vpop.permute.xlu0 %755
      %757 = vrot.lane.b32.xlu0 %v516, 127
      %v758 = vpop.permute.xlu0 %757
      %759 = vrot.lane.b32.xlu0 %v517, 127
      %v760 = vpop.permute.xlu0 %759
      %761 = vrot.lane.b32.xlu0 %v518, 127
      %v762 = vpop.permute.xlu0 %761
      %v763 = vsel %vm396, %v754, %v756
      %v764 = vsel %vm396, %v756, %v758
      %v765 = vsel %vm396, %v758, %v760
      %v766 = vsel %vm396, %v760, %v762
      %v769 = vunpack.c.l.b16 %v371
      %v770 = vunpack.c.h.b16 %v371
      %v771 = vunpack.c.l.b16 %v372
      %v772 = vpack.c.b16 %v769, %v769
      %v773 = vpack.c.b16 %v770, %v770
      %v774 = vpack.c.b16 %v771, %v771
      %775 = vrot.lane.b32.xlu0 %v381, 9
      %v776 = vpop.permute.xlu0 %775
      %777 = vrot.lane.b32.xlu0 %v382, 9
      %v778 = vpop.permute.xlu0 %777
      %779 = vrot.lane.b32.xlu0 %v772, 9
      %v780 = vpop.permute.xlu0 %779
      %781 = vrot.lane.b32.xlu0 %v773, 9
      %v782 = vpop.permute.xlu0 %781
      %783 = vrot.lane.b32.xlu0 %v774, 9
      %v784 = vpop.permute.xlu0 %783
      %vm785 = vcmask 72704
      %v786 = vsel %vm785, %v776, %v778
      %v787 = vsel %vm785, %v778, %v780
      %v788 = vsel %vm785, %v780, %v782
      %v789 = vsel %vm785, %v782, %v784
      %790 = vrot.lane.b32.xlu0 %v381, 8
      %v791 = vpop.permute.xlu0 %790
      %792 = vrot.lane.b32.xlu0 %v382, 8
      %v793 = vpop.permute.xlu0 %792
      %794 = vrot.lane.b32.xlu0 %v772, 8
      %v795 = vpop.permute.xlu0 %794
      %796 = vrot.lane.b32.xlu0 %v773, 8
      %v797 = vpop.permute.xlu0 %796
      %798 = vrot.lane.b32.xlu0 %v774, 8
      %v799 = vpop.permute.xlu0 %798
      %vm800 = vcmask 64512
      %v801 = vsel %vm800, %v791, %v793
      %v802 = vsel %vm800, %v793, %v795
      %v803 = vsel %vm800, %v795, %v797
      %v804 = vsel %vm800, %v797, %v799
      %805 = vrot.lane.b32.xlu0 %v381, 7
      %v806 = vpop.permute.xlu0 %805
      %807 = vrot.lane.b32.xlu0 %v382, 7
      %v808 = vpop.permute.xlu0 %807
      %809 = vrot.lane.b32.xlu0 %v772, 7
      %v810 = vpop.permute.xlu0 %809
      %811 = vrot.lane.b32.xlu0 %v773, 7
      %v812 = vpop.permute.xlu0 %811
      %813 = vrot.lane.b32.xlu0 %v774, 7
      %v814 = vpop.permute.xlu0 %813
      %vm815 = vcmask 56320
      %v816 = vsel %vm815, %v806, %v808
      %v817 = vsel %vm815, %v808, %v810
      %v818 = vsel %vm815, %v810, %v812
      %v819 = vsel %vm815, %v812, %v814
      %820 = vrot.lane.b32.xlu0 %v381, 125
      %v821 = vpop.permute.xlu0 %820
      %822 = vrot.lane.b32.xlu0 %v382, 125
      %v823 = vpop.permute.xlu0 %822
      %824 = vrot.lane.b32.xlu0 %v772, 125
      %v825 = vpop.permute.xlu0 %824
      %826 = vrot.lane.b32.xlu0 %v773, 125
      %v827 = vpop.permute.xlu0 %826
      %828 = vrot.lane.b32.xlu0 %v774, 125
      %v829 = vpop.permute.xlu0 %828
      %vm830 = vcmask 1022976
      %v831 = vsel %vm830, %v821, %v823
      %v832 = vsel %vm830, %v823, %v825
      %v833 = vsel %vm830, %v825, %v827
      %v834 = vsel %vm830, %v827, %v829
      %835 = vrot.lane.b32.xlu0 %v381, 124
      %v836 = vpop.permute.xlu0 %835
      %837 = vrot.lane.b32.xlu0 %v382, 124
      %v838 = vpop.permute.xlu0 %837
      %839 = vrot.lane.b32.xlu0 %v772, 124
      %v840 = vpop.permute.xlu0 %839
      %841 = vrot.lane.b32.xlu0 %v773, 124
      %v842 = vpop.permute.xlu0 %841
      %843 = vrot.lane.b32.xlu0 %v774, 124
      %v844 = vpop.permute.xlu0 %843
      %vm845 = vcmask 1014784
      %v846 = vsel %vm845, %v836, %v838
      %v847 = vsel %vm845, %v838, %v840
      %v848 = vsel %vm845, %v840, %v842
      %v849 = vsel %vm845, %v842, %v844
      %850 = vrot.lane.b32.xlu0 %v381, 123
      %v851 = vpop.permute.xlu0 %850
      %852 = vrot.lane.b32.xlu0 %v382, 123
      %v853 = vpop.permute.xlu0 %852
      %854 = vrot.lane.b32.xlu0 %v772, 123
      %v855 = vpop.permute.xlu0 %854
      %856 = vrot.lane.b32.xlu0 %v773, 123
      %v857 = vpop.permute.xlu0 %856
      %858 = vrot.lane.b32.xlu0 %v774, 123
      %v859 = vpop.permute.xlu0 %858
      %vm860 = vcmask 1006592
      %v861 = vsel %vm860, %v851, %v853
      %v862 = vsel %vm860, %v853, %v855
      %v863 = vsel %vm860, %v855, %v857
      %v864 = vsel %vm860, %v857, %v859
      %865 = vrot.lane.b32.xlu0 %v381, 113
      %v866 = vpop.permute.xlu0 %865
      %867 = vrot.lane.b32.xlu0 %v382, 113
      %v868 = vpop.permute.xlu0 %867
      %869 = vrot.lane.b32.xlu0 %v772, 113
      %v870 = vpop.permute.xlu0 %869
      %871 = vrot.lane.b32.xlu0 %v773, 113
      %v872 = vpop.permute.xlu0 %871
      %873 = vrot.lane.b32.xlu0 %v774, 113
      %v874 = vpop.permute.xlu0 %873
      %vm875 = vcmask 924672
      %v876 = vsel %vm875, %v866, %v868
      %v877 = vsel %vm875, %v868, %v870
      %v878 = vsel %vm875, %v870, %v872
      %v879 = vsel %vm875, %v872, %v874
      %880 = vrot.lane.b32.xlu0 %v381, 112
      %v881 = vpop.permute.xlu0 %880
      %882 = vrot.lane.b32.xlu0 %v382, 112
      %v883 = vpop.permute.xlu0 %882
      %884 = vrot.lane.b32.xlu0 %v772, 112
      %v885 = vpop.permute.xlu0 %884
      %886 = vrot.lane.b32.xlu0 %v773, 112
      %v887 = vpop.permute.xlu0 %886
      %888 = vrot.lane.b32.xlu0 %v774, 112
      %v889 = vpop.permute.xlu0 %888
      %v890 = vsel %vm529, %v881, %v883
      %v891 = vsel %vm529, %v883, %v885
      %v892 = vsel %vm529, %v885, %v887
      %v893 = vsel %vm529, %v887, %v889
      %894 = vrot.lane.b32.xlu0 %v381, 111
      %v895 = vpop.permute.xlu0 %894
      %896 = vrot.lane.b32.xlu0 %v382, 111
      %v897 = vpop.permute.xlu0 %896
      %898 = vrot.lane.b32.xlu0 %v772, 111
      %v899 = vpop.permute.xlu0 %898
      %900 = vrot.lane.b32.xlu0 %v773, 111
      %v901 = vpop.permute.xlu0 %900
      %902 = vrot.lane.b32.xlu0 %v774, 111
      %v903 = vpop.permute.xlu0 %902
      %v904 = vsel %vm544, %v895, %v897
      %v905 = vsel %vm544, %v897, %v899
      %v906 = vsel %vm544, %v899, %v901
      %v907 = vsel %vm544, %v901, %v903
      %v910 = vsel %vm624, %v514, %v763
      %v913 = vsel %vm624, %v515, %v764
      %v916 = vsel %vm624, %v516, %v765
      %v919 = vsel %vm624, %v517, %v766
      %v922 = vsel %vm624, %v518, %v762
      %v925 = vsel %vm624, %v776, %v791
      %v928 = vsel %vm624, %v786, %v801
      %v931 = vsel %vm624, %v787, %v802
      %v934 = vsel %vm624, %v788, %v803
      %v937 = vsel %vm624, %v789, %v804
      %v940 = vsel %vm624, %v806, %v831
      %v943 = vsel %vm624, %v816, %v832
      %v946 = vsel %vm624, %v817, %v833
      %v949 = vsel %vm624, %v818, %v834
      %v952 = vsel %vm624, %v819, %v829
      %v955 = vsel %vm624, %v846, %v861
      %v958 = vsel %vm624, %v847, %v862
      %v961 = vsel %vm624, %v848, %v863
      %v964 = vsel %vm624, %v849, %v864
      %v967 = vsel %vm624, %v844, %v859
      %v970 = vsel %vm624, %v876, %v890
      %v973 = vsel %vm624, %v877, %v891
      %v976 = vsel %vm624, %v878, %v892
      %v979 = vsel %vm624, %v879, %v893
      %v982 = vsel %vm624, %v874, %v889
      %1008 = vrot.lane.b32.xlu0 %v910, 87
      %v1009 = vpop.permute.xlu0 %1008
      %1010 = vrot.lane.b32.xlu0 %v913, 87
      %v1011 = vpop.permute.xlu0 %1010
      %1012 = vrot.lane.b32.xlu0 %v916, 87
      %v1013 = vpop.permute.xlu0 %1012
      %1014 = vrot.lane.b32.xlu0 %v919, 87
      %v1015 = vpop.permute.xlu0 %1014
      %1016 = vrot.lane.b32.xlu0 %v922, 87
      %v1017 = vpop.permute.xlu0 %1016
      %1018 = vrot.lane.b32.xlu0 %v925, 87
      %v1019 = vpop.permute.xlu0 %1018
      %1020 = vrot.lane.b32.xlu0 %v928, 87
      %v1021 = vpop.permute.xlu0 %1020
      %1022 = vrot.lane.b32.xlu0 %v931, 87
      %v1023 = vpop.permute.xlu0 %1022
      %1024 = vrot.lane.b32.xlu0 %v934, 87
      %v1025 = vpop.permute.xlu0 %1024
      %1026 = vrot.lane.b32.xlu0 %v937, 87
      %v1027 = vpop.permute.xlu0 %1026
      %1028 = vrot.lane.b32.xlu0 %v940, 87
      %v1029 = vpop.permute.xlu0 %1028
      %1030 = vrot.lane.b32.xlu0 %v943, 87
      %v1031 = vpop.permute.xlu0 %1030
      %1032 = vrot.lane.b32.xlu0 %v946, 87
      %v1033 = vpop.permute.xlu0 %1032
      %1034 = vrot.lane.b32.xlu0 %v949, 87
      %v1035 = vpop.permute.xlu0 %1034
      %1036 = vrot.lane.b32.xlu0 %v952, 87
      %v1037 = vpop.permute.xlu0 %1036
      %1038 = vrot.lane.b32.xlu0 %v955, 87
      %v1039 = vpop.permute.xlu0 %1038
      %1040 = vrot.lane.b32.xlu0 %v958, 87
      %v1041 = vpop.permute.xlu0 %1040
      %1042 = vrot.lane.b32.xlu0 %v961, 87
      %v1043 = vpop.permute.xlu0 %1042
      %1044 = vrot.lane.b32.xlu0 %v964, 87
      %v1045 = vpop.permute.xlu0 %1044
      %1046 = vrot.lane.b32.xlu0 %v967, 87
      %v1047 = vpop.permute.xlu0 %1046
      %1048 = vrot.lane.b32.xlu0 %v970, 87
      %v1049 = vpop.permute.xlu0 %1048
      %1050 = vrot.lane.b32.xlu0 %v973, 87
      %v1051 = vpop.permute.xlu0 %1050
      %1052 = vrot.lane.b32.xlu0 %v976, 87
      %v1053 = vpop.permute.xlu0 %1052
      %1054 = vrot.lane.b32.xlu0 %v979, 87
      %v1055 = vpop.permute.xlu0 %1054
      %1056 = vrot.lane.b32.xlu0 %v982, 87
      %v1057 = vpop.permute.xlu0 %1056
      %1058 = vrot.lane.b32.xlu0 %v904, 87
      %v1059 = vpop.permute.xlu0 %1058
      %1060 = vrot.lane.b32.xlu0 %v905, 87
      %v1061 = vpop.permute.xlu0 %1060
      %1062 = vrot.lane.b32.xlu0 %v906, 87
      %v1063 = vpop.permute.xlu0 %1062
      %1064 = vrot.lane.b32.xlu0 %v907, 87
      %v1065 = vpop.permute.xlu0 %1064
      %1066 = vrot.lane.b32.xlu0 %v903, 87
      %v1067 = vpop.permute.xlu0 %1066
      %vm1068 = vcmask 711680
      %v1069 = vsel %vm1068, %v1009, %v1011
      %v1070 = vsel %vm1068, %v1011, %v1013
      %v1071 = vsel %vm1068, %v1013, %v1015
      %v1072 = vsel %vm1068, %v1015, %v1017
      %v1073 = vsel %vm1068, %v1019, %v1021
      %v1074 = vsel %vm1068, %v1021, %v1023
      %v1075 = vsel %vm1068, %v1023, %v1025
      %v1076 = vsel %vm1068, %v1025, %v1027
      %v1077 = vsel %vm1068, %v1029, %v1031
      %v1078 = vsel %vm1068, %v1031, %v1033
      %v1079 = vsel %vm1068, %v1033, %v1035
      %v1080 = vsel %vm1068, %v1035, %v1037
      %v1081 = vsel %vm1068, %v1039, %v1041
      %v1082 = vsel %vm1068, %v1041, %v1043
      %v1083 = vsel %vm1068, %v1043, %v1045
      %v1084 = vsel %vm1068, %v1045, %v1047
      %v1085 = vsel %vm1068, %v1049, %v1051
      %v1086 = vsel %vm1068, %v1051, %v1053
      %v1087 = vsel %vm1068, %v1053, %v1055
      %v1088 = vsel %vm1068, %v1055, %v1057
      %v1089 = vsel %vm1068, %v1059, %v1061
      %v1090 = vsel %vm1068, %v1061, %v1063
      %v1091 = vsel %vm1068, %v1063, %v1065
      %v1092 = vsel %vm1068, %v1065, %v1067
      %1114 = vset.pattern.permute.xlu0 0
      %1115 = vperm.xlu0 %1114, %v360
      %v1116 = vpop.permute.xlu0 %1115
      %1119 = vset.pattern.permute.xlu0 0
      %1120 = vperm.xlu0 %1119, %v361
      %v1121 = vpop.permute.xlu0 %1120
      %1124 = vset.pattern.permute.xlu0 0
      %1125 = vperm.xlu0 %1124, %v362
      %v1126 = vpop.permute.xlu0 %1125
      %1129 = vset.pattern.permute.xlu0 0
      %1130 = vperm.xlu0 %1129, %v363
      %v1131 = vpop.permute.xlu0 %1130
      %v1137 = vunpack.c.l.b16 %v354
      %v1138 = vunpack.c.h.b16 %v354
      %v1139 = vunpack.c.l.b16 %v355
      %v1140 = vunpack.c.h.b16 %v355
      %v1141 = vunpack.c.l.b16 %v356
      %v1142 = vunpack.c.h.b16 %v356
      %v1143 = vunpack.c.l.b16 %v357
      %v1144 = vunpack.c.h.b16 %v357
      %v1145 = vpack.c.b16 %v1139, %v1137
      %v1146 = vpack.c.b16 %v1140, %v1138
      %v1147 = vpack.c.b16 %v1143, %v1141
      %v1148 = vpack.c.b16 %v1144, %v1142
      %vm1151 = vcmask 719872
      %v1153 = vsel %vm1151, %v1146, 0
      %v1156 = vsel %vm1151, %v1148, 0
      %v1159 = vsel %vm624, %v1089, 0
      %v1162 = vsel %vm624, %v1090, 0
      %v1165 = vsel %vm624, %v1091, 0
      %v1168 = vsel %vm624, %v1092, 0
      %1170 = vmatprep.subr.bf16.mxu0 %v631
      %1171 = vmatpush1.bf16.msra.mxu0 %v627
      %1172 = vmatprep.subr.bf16.mxu0 %v647
      %1173 = vmatpush1.bf16.msra.mxu0 %v643
      %1174 = vmatprep.subr.bf16.mxu0 %v663
      %1175 = vmatpush1.bf16.msra.mxu0 %v659
      %1176 = vmatprep.subr.bf16.mxu0 %v679
      %1177 = vmatpush1.bf16.msra.mxu0 %v675
      %1178 = vmatprep.subr.bf16.mxu0 %v695
      %1179 = vmatpush1.bf16.msra.mxu0 %v691
      %1180 = vmatprep.subr.bf16.mxu0 %v711
      %1181 = vmatpush1.bf16.msra.mxu0 %v707
      %1182 = vmatprep.subr.bf16.mxu0 %v727
      %1183 = vmatpush1.bf16.msra.mxu0 %v723
      %1184 = vmatprep.subr.bf16.mxu0 %v743
      %1185 = vmatpush1.bf16.msra.mxu0 %v739
      %1186 = vmatprep.subr.bf16.mxu0 %v1070
      %1187 = vmatpush1.bf16.msra.mxu0 %v1069
      %1188 = vmatprep.subr.bf16.mxu0 %v1074
      %1189 = vmatpush1.bf16.msra.mxu0 %v1073
      %1190 = vmatprep.subr.bf16.mxu0 %v1078
      %1191 = vmatpush1.bf16.msra.mxu0 %v1077
      %1192 = vmatprep.subr.bf16.mxu0 %v1082
      %1193 = vmatpush1.bf16.msra.mxu0 %v1081
      %1194 = vmatprep.subr.bf16.mxu0 %v1086
      %1195 = vmatpush1.bf16.msra.mxu0 %v1085
      %1196 = vmatprep.subr.bf16.mxu0 %v1162
      %1197 = vmatpush1.bf16.msra.mxu0 %v1159
      %1198 = vmatprep.subr.bf16.mxu0 0
      %1199 = vmatpush1.bf16.msra.mxu0 0
      %1200 = vmatprep.subr.bf16.mxu0 0
      %1201 = vmatpush1.bf16.msra.mxu0 0
      %1202 = vmatprep.mubr.bf16.mxu0 %v1153
      %1203 = vmatmul.mubr.bf16.gmra.mrb[0].mxu0 %v1145
      %v1204 = vpop.f32.mrb[0].mxu0
      %v1205 = vadd.f32 %v1116, %v1204
      %v1206 = vpop.f32.mrb[0].mxu0
      %v1207 = vadd.f32 %v1116, %v1206
      %v1208 = vpop.f32.mrb[0].mxu0
      %v1209 = vadd.f32 %v1121, %v1208
      %v1210 = vpop.f32.mrb[0].mxu0
      %v1211 = vadd.f32 %v1121, %v1210
      %1212 = vmatprep.mubr.bf16.mxu0 %v1156
      %1213 = vmatmul.mubr.bf16.gmra.mrb[0].mxu0 %v1147
      %v1214 = vpop.f32.mrb[0].mxu0
      %v1215 = vadd.f32 %v1126, %v1214
      %v1216 = vpop.f32.mrb[0].mxu0
      %v1217 = vadd.f32 %v1126, %v1216
      %v1218 = vpop.f32.mrb[0].mxu0
      %v1219 = vadd.f32 %v1131, %v1218
      %v1220 = vpop.f32.mrb[0].mxu0
      %v1221 = vadd.f32 %v1131, %v1220
      %1222 = vdwg.mxu0
      %1223 = vmatprep.subr.bf16.mxu0 %v639
      %1224 = vmatpush1.bf16.msra.mxu0 %v635
      %1225 = vmatprep.subr.bf16.mxu0 %v655
      %1226 = vmatpush1.bf16.msra.mxu0 %v651
      %1227 = vmatprep.subr.bf16.mxu0 %v671
      %1228 = vmatpush1.bf16.msra.mxu0 %v667
      %1229 = vmatprep.subr.bf16.mxu0 %v687
      %1230 = vmatpush1.bf16.msra.mxu0 %v683
      %1231 = vmatprep.subr.bf16.mxu0 %v703
      %1232 = vmatpush1.bf16.msra.mxu0 %v699
      %1233 = vmatprep.subr.bf16.mxu0 %v719
      %1234 = vmatpush1.bf16.msra.mxu0 %v715
      %1235 = vmatprep.subr.bf16.mxu0 %v735
      %1236 = vmatpush1.bf16.msra.mxu0 %v731
      %1237 = vmatprep.subr.bf16.mxu0 %v751
      %1238 = vmatpush1.bf16.msra.mxu0 %v747
      %1239 = vmatprep.subr.bf16.mxu0 %v1072
      %1240 = vmatpush1.bf16.msra.mxu0 %v1071
      %1241 = vmatprep.subr.bf16.mxu0 %v1076
      %1242 = vmatpush1.bf16.msra.mxu0 %v1075
      %1243 = vmatprep.subr.bf16.mxu0 %v1080
      %1244 = vmatpush1.bf16.msra.mxu0 %v1079
      %1245 = vmatprep.subr.bf16.mxu0 %v1084
      %1246 = vmatpush1.bf16.msra.mxu0 %v1083
      %1247 = vmatprep.subr.bf16.mxu0 %v1088
      %1248 = vmatpush1.bf16.msra.mxu0 %v1087
      %1249 = vmatprep.subr.bf16.mxu0 %v1168
      %1250 = vmatpush1.bf16.msra.mxu0 %v1165
      %1251 = vmatprep.subr.bf16.mxu0 0
      %1252 = vmatpush1.bf16.msra.mxu0 0
      %1253 = vmatprep.subr.bf16.mxu0 0
      %1254 = vmatpush1.bf16.msra.mxu0 0
      %1255 = vmatprep.mubr.bf16.mxu0 %v1153
      %1256 = vmatmul.mubr.bf16.gmra.mrb[0].mxu0 %v1145
      %v1257 = vpop.f32.mrb[0].mxu0
      %v1258 = vadd.f32 %v1116, %v1257
      %v1259 = vpop.f32.mrb[0].mxu0
      %v1260 = vadd.f32 %v1116, %v1259
      %v1261 = vpop.f32.mrb[0].mxu0
      %v1262 = vadd.f32 %v1121, %v1261
      %v1263 = vpop.f32.mrb[0].mxu0
      %v1264 = vadd.f32 %v1121, %v1263
      %1265 = vmatprep.mubr.bf16.mxu0 %v1156
      %1266 = vmatmul.mubr.bf16.gmra.mrb[0].mxu0 %v1147
      %v1267 = vpop.f32.mrb[0].mxu0
      %v1268 = vadd.f32 %v1126, %v1267
      %v1269 = vpop.f32.mrb[0].mxu0
      %v1270 = vadd.f32 %v1126, %v1269
      %v1271 = vpop.f32.mrb[0].mxu0
      %v1272 = vadd.f32 %v1131, %v1271
      %v1273 = vpop.f32.mrb[0].mxu0
      %v1274 = vadd.f32 %v1131, %v1273
      %1275 = vdwg.mxu0
      %v1276 = vld [vmem:[%s335] sm:$0xf]
      %v1278 = vlaneseq
      %v1279 = vshrl.u32 %v1278, 7
      %v1280 = vsub.s32 0, %v1279
      %v1281 = vrot.slane %v1276, %v1280
      %v1282 = vlaneseq
      %v1283 = vshrl.u32 %v1282, 7
      %v1284 = vsub.s32 1, %v1283
      %v1285 = vrot.slane %v1276, %v1284
      %v1286 = vlaneseq
      %v1287 = vshrl.u32 %v1286, 7
      %v1288 = vsub.s32 2, %v1287
      %v1289 = vrot.slane %v1276, %v1288
      %v1290 = vlaneseq
      %v1291 = vshrl.u32 %v1290, 7
      %v1292 = vsub.s32 3, %v1291
      %v1293 = vrot.slane %v1276, %v1292
      %v1298 = vmul.f32 %v1205, %v1281
      %v1299 = vmul.f32 %v1207, %v1285
      %v1300 = vmul.f32 %v1258, %v1289
      %v1301 = vmul.f32 %v1260, %v1293
      %v1302 = vmul.f32 %v1209, %v1281
      %v1303 = vmul.f32 %v1211, %v1285
      %v1304 = vmul.f32 %v1262, %v1289
      %v1305 = vmul.f32 %v1264, %v1293
      %v1306 = vmul.f32 %v1215, %v1281
      %v1307 = vmul.f32 %v1217, %v1285
      %v1308 = vmul.f32 %v1268, %v1289
      %v1309 = vmul.f32 %v1270, %v1293
      %v1310 = vmul.f32 %v1219, %v1281
      %v1311 = vmul.f32 %v1221, %v1285
      %v1312 = vmul.f32 %v1272, %v1289
      %v1313 = vmul.f32 %v1274, %v1293
      %v1314 = vpack.c.bf16 %v1302, %v1298
      %v1315 = vpack.c.bf16 %v1303, %v1299
      %v1316 = vpack.c.bf16 %v1304, %v1300
      %v1317 = vpack.c.bf16 %v1305, %v1301
      %v1318 = vpack.c.bf16 %v1310, %v1306
      %v1319 = vpack.c.bf16 %v1311, %v1307
      %v1320 = vpack.c.bf16 %v1312, %v1308
      %v1321 = vpack.c.bf16 %v1313, %v1309
      %1322 = vst [vmem:[#allocation2] sm:$0xff] %v1314
      %1323 = vst [vmem:[#allocation2 + $0x8] sm:$0xff] %v1315
      %1324 = vst [vmem:[#allocation2 + $0x10] sm:$0xff] %v1316
      %1325 = vst [vmem:[#allocation2 + $0x18] sm:$0xff] %v1317
      %1326 = vst [vmem:[#allocation2 + $0x40] sm:$0xff] %v1318
      %1327 = vst [vmem:[#allocation2 + $0x48] sm:$0xff] %v1319
      %1328 = vst [vmem:[#allocation2 + $0x50] sm:$0xff] %v1320
      %1329 = vst [vmem:[#allocation2 + $0x58] sm:$0xff] %v1321
      %v1330 = vld [vmem:[%s331 + $0x10] sm:$0xff]
      %v1331 = vld [vmem:[%s331 + $0x18] sm:$0xff]
      %v1332 = vld [vmem:[%s331 + $0x20] sm:$0xf]
      %v1333 = vld [vmem:[%s331 + $0x14] sm:$0xff]
      %v1334 = vld [vmem:[%s331 + $0x1c] sm:$0xff]
      %v1335 = vld [vmem:[%s331 + $0x24] sm:$0xf]
      %v1336 = vld [vmem:[%s331 + $0x18] sm:$0xff]
      %v1337 = vld [vmem:[%s331 + $0x20] sm:$0xff]
      %v1338 = vld [vmem:[%s331 + $0x28] sm:$0xf]
      %v1341 = vunpack.c.l.b16 %v1330
      %v1342 = vunpack.c.h.b16 %v1330
      %v1343 = vunpack.c.l.b16 %v1331
      %v1344 = vunpack.c.h.b16 %v1331
      %v1345 = vpack.c.b16 %v1341, %v1341
      %v1346 = vpack.c.b16 %v1342, %v1342
      %v1347 = vpack.c.b16 %v1343, %v1343
      %v1348 = vpack.c.b16 %v1344, %v1344
      %v1350 = vunpack.c.l.b16 %v1332
      %v1351 = vpack.c.b16 %v1350, %v1350
      %1352 = vrot.lane.b32.xlu0 %v1345, 127
      %v1353 = vpop.permute.xlu0 %1352
      %1354 = vrot.lane.b32.xlu0 %v1346, 127
      %v1355 = vpop.permute.xlu0 %1354
      %1356 = vrot.lane.b32.xlu0 %v1347, 127
      %v1357 = vpop.permute.xlu0 %1356
      %1358 = vrot.lane.b32.xlu0 %v1348, 127
      %v1359 = vpop.permute.xlu0 %1358
      %1360 = vrot.lane.b32.xlu0 %v1351, 127
      %v1361 = vpop.permute.xlu0 %1360
      %v1362 = vsel %vm396, %v1353, %v1355
      %v1363 = vsel %vm396, %v1355, %v1357
      %v1364 = vsel %vm396, %v1357, %v1359
      %v1365 = vsel %vm396, %v1359, %v1361
      %1366 = vrot.lane.b32.xlu0 %v1345, 126
      %v1367 = vpop.permute.xlu0 %1366
      %1368 = vrot.lane.b32.xlu0 %v1346, 126
      %v1369 = vpop.permute.xlu0 %1368
      %1370 = vrot.lane.b32.xlu0 %v1347, 126
      %v1371 = vpop.permute.xlu0 %1370
      %1372 = vrot.lane.b32.xlu0 %v1348, 126
      %v1373 = vpop.permute.xlu0 %1372
      %1374 = vrot.lane.b32.xlu0 %v1351, 126
      %v1375 = vpop.permute.xlu0 %1374
      %v1376 = vsel %vm411, %v1367, %v1369
      %v1377 = vsel %vm411, %v1369, %v1371
      %v1378 = vsel %vm411, %v1371, %v1373
      %v1379 = vsel %vm411, %v1373, %v1375
      %1380 = vrot.lane.b32.xlu0 %v1345, 116
      %v1381 = vpop.permute.xlu0 %1380
      %1382 = vrot.lane.b32.xlu0 %v1346, 116
      %v1383 = vpop.permute.xlu0 %1382
      %1384 = vrot.lane.b32.xlu0 %v1347, 116
      %v1385 = vpop.permute.xlu0 %1384
      %1386 = vrot.lane.b32.xlu0 %v1348, 116
      %v1387 = vpop.permute.xlu0 %1386
      %1388 = vrot.lane.b32.xlu0 %v1351, 116
      %v1389 = vpop.permute.xlu0 %1388
      %v1390 = vsel %vm426, %v1381, %v1383
      %v1391 = vsel %vm426, %v1383, %v1385
      %v1392 = vsel %vm426, %v1385, %v1387
      %v1393 = vsel %vm426, %v1387, %v1389
      %1394 = vrot.lane.b32.xlu0 %v1345, 115
      %v1395 = vpop.permute.xlu0 %1394
      %1396 = vrot.lane.b32.xlu0 %v1346, 115
      %v1397 = vpop.permute.xlu0 %1396
      %1398 = vrot.lane.b32.xlu0 %v1347, 115
      %v1399 = vpop.permute.xlu0 %1398
      %1400 = vrot.lane.b32.xlu0 %v1348, 115
      %v1401 = vpop.permute.xlu0 %1400
      %1402 = vrot.lane.b32.xlu0 %v1351, 115
      %v1403 = vpop.permute.xlu0 %1402
      %v1404 = vsel %vm441, %v1395, %v1397
      %v1405 = vsel %vm441, %v1397, %v1399
      %v1406 = vsel %vm441, %v1399, %v1401
      %v1407 = vsel %vm441, %v1401, %v1403
      %1408 = vrot.lane.b32.xlu0 %v1345, 114
      %v1409 = vpop.permute.xlu0 %1408
      %1410 = vrot.lane.b32.xlu0 %v1346, 114
      %v1411 = vpop.permute.xlu0 %1410
      %1412 = vrot.lane.b32.xlu0 %v1347, 114
      %v1413 = vpop.permute.xlu0 %1412
      %1414 = vrot.lane.b32.xlu0 %v1348, 114
      %v1415 = vpop.permute.xlu0 %1414
      %1416 = vrot.lane.b32.xlu0 %v1351, 114
      %v1417 = vpop.permute.xlu0 %1416
      %v1418 = vsel %vm456, %v1409, %v1411
      %v1419 = vsel %vm456, %v1411, %v1413
      %v1420 = vsel %vm456, %v1413, %v1415
      %v1421 = vsel %vm456, %v1415, %v1417
      %1422 = vrot.lane.b32.xlu0 %v1345, 104
      %v1423 = vpop.permute.xlu0 %1422
      %1424 = vrot.lane.b32.xlu0 %v1346, 104
      %v1425 = vpop.permute.xlu0 %1424
      %1426 = vrot.lane.b32.xlu0 %v1347, 104
      %v1427 = vpop.permute.xlu0 %1426
      %1428 = vrot.lane.b32.xlu0 %v1348, 104
      %v1429 = vpop.permute.xlu0 %1428
      %1430 = vrot.lane.b32.xlu0 %v1351, 104
      %v1431 = vpop.permute.xlu0 %1430
      %v1432 = vsel %vm471, %v1423, %v1425
      %v1433 = vsel %vm471, %v1425, %v1427
      %v1434 = vsel %vm471, %v1427, %v1429
      %v1435 = vsel %vm471, %v1429, %v1431
      %1436 = vrot.lane.b32.xlu0 %v1345, 103
      %v1437 = vpop.permute.xlu0 %1436
      %1438 = vrot.lane.b32.xlu0 %v1346, 103
      %v1439 = vpop.permute.xlu0 %1438
      %1440 = vrot.lane.b32.xlu0 %v1347, 103
      %v1441 = vpop.permute.xlu0 %1440
      %1442 = vrot.lane.b32.xlu0 %v1348, 103
      %v1443 = vpop.permute.xlu0 %1442
      %1444 = vrot.lane.b32.xlu0 %v1351, 103
      %v1445 = vpop.permute.xlu0 %1444
      %v1446 = vsel %vm486, %v1437, %v1439
      %v1447 = vsel %vm486, %v1439, %v1441
      %v1448 = vsel %vm486, %v1441, %v1443
      %v1449 = vsel %vm486, %v1443, %v1445
      %1450 = vrot.lane.b32.xlu0 %v1345, 102
      %v1451 = vpop.permute.xlu0 %1450
      %1452 = vrot.lane.b32.xlu0 %v1346, 102
      %v1453 = vpop.permute.xlu0 %1452
      %1454 = vrot.lane.b32.xlu0 %v1347, 102
      %v1455 = vpop.permute.xlu0 %1454
      %1456 = vrot.lane.b32.xlu0 %v1348, 102
      %v1457 = vpop.permute.xlu0 %1456
      %1458 = vrot.lane.b32.xlu0 %v1351, 102
      %v1459 = vpop.permute.xlu0 %1458
      %v1460 = vsel %vm501, %v1451, %v1453
      %v1461 = vsel %vm501, %v1453, %v1455
      %v1462 = vsel %vm501, %v1455, %v1457
      %v1463 = vsel %vm501, %v1457, %v1459
      %v1467 = vunpack.c.l.b16 %v1333
      %v1468 = vunpack.c.h.b16 %v1333
      %v1469 = vunpack.c.l.b16 %v1334
      %v1470 = vunpack.c.h.b16 %v1334
      %v1471 = vunpack.c.l.b16 %v1335
      %v1472 = vpack.c.b16 %v1467, %v1467
      %v1473 = vpack.c.b16 %v1468, %v1468
      %v1474 = vpack.c.b16 %v1469, %v1469
      %v1475 = vpack.c.b16 %v1470, %v1470
      %v1476 = vpack.c.b16 %v1471, %v1471
      %1477 = vrot.lane.b32.xlu0 %v1472, 112
      %v1478 = vpop.permute.xlu0 %1477
      %1479 = vrot.lane.b32.xlu0 %v1473, 112
      %v1480 = vpop.permute.xlu0 %1479
      %1481 = vrot.lane.b32.xlu0 %v1474, 112
      %v1482 = vpop.permute.xlu0 %1481
      %1483 = vrot.lane.b32.xlu0 %v1475, 112
      %v1484 = vpop.permute.xlu0 %1483
      %1485 = vrot.lane.b32.xlu0 %v1476, 112
      %v1486 = vpop.permute.xlu0 %1485
      %v1487 = vsel %vm529, %v1478, %v1480
      %v1488 = vsel %vm529, %v1480, %v1482
      %v1489 = vsel %vm529, %v1482, %v1484
      %v1490 = vsel %vm529, %v1484, %v1486
      %1491 = vrot.lane.b32.xlu0 %v1472, 111
      %v1492 = vpop.permute.xlu0 %1491
      %1493 = vrot.lane.b32.xlu0 %v1473, 111
      %v1494 = vpop.permute.xlu0 %1493
      %1495 = vrot.lane.b32.xlu0 %v1474, 111
      %v1496 = vpop.permute.xlu0 %1495
      %1497 = vrot.lane.b32.xlu0 %v1475, 111
      %v1498 = vpop.permute.xlu0 %1497
      %1499 = vrot.lane.b32.xlu0 %v1476, 111
      %v1500 = vpop.permute.xlu0 %1499
      %v1501 = vsel %vm544, %v1492, %v1494
      %v1502 = vsel %vm544, %v1494, %v1496
      %v1503 = vsel %vm544, %v1496, %v1498
      %v1504 = vsel %vm544, %v1498, %v1500
      %1505 = vrot.lane.b32.xlu0 %v1472, 110
      %v1506 = vpop.permute.xlu0 %1505
      %1507 = vrot.lane.b32.xlu0 %v1473, 110
      %v1508 = vpop.permute.xlu0 %1507
      %1509 = vrot.lane.b32.xlu0 %v1474, 110
      %v1510 = vpop.permute.xlu0 %1509
      %1511 = vrot.lane.b32.xlu0 %v1475, 110
      %v1512 = vpop.permute.xlu0 %1511
      %1513 = vrot.lane.b32.xlu0 %v1476, 110
      %v1514 = vpop.permute.xlu0 %1513
      %v1515 = vsel %vm559, %v1506, %v1508
      %v1516 = vsel %vm559, %v1508, %v1510
      %v1517 = vsel %vm559, %v1510, %v1512
      %v1518 = vsel %vm559, %v1512, %v1514
      %1519 = vrot.lane.b32.xlu0 %v1472, 100
      %v1520 = vpop.permute.xlu0 %1519
      %1521 = vrot.lane.b32.xlu0 %v1473, 100
      %v1522 = vpop.permute.xlu0 %1521
      %1523 = vrot.lane.b32.xlu0 %v1474, 100
      %v1524 = vpop.permute.xlu0 %1523
      %1525 = vrot.lane.b32.xlu0 %v1475, 100
      %v1526 = vpop.permute.xlu0 %1525
      %1527 = vrot.lane.b32.xlu0 %v1476, 100
      %v1528 = vpop.permute.xlu0 %1527
      %v1529 = vsel %vm574, %v1520, %v1522
      %v1530 = vsel %vm574, %v1522, %v1524
      %v1531 = vsel %vm574, %v1524, %v1526
      %v1532 = vsel %vm574, %v1526, %v1528
      %1533 = vrot.lane.b32.xlu0 %v1472, 99
      %v1534 = vpop.permute.xlu0 %1533
      %1535 = vrot.lane.b32.xlu0 %v1473, 99
      %v1536 = vpop.permute.xlu0 %1535
      %1537 = vrot.lane.b32.xlu0 %v1474, 99
      %v1538 = vpop.permute.xlu0 %1537
      %1539 = vrot.lane.b32.xlu0 %v1475, 99
      %v1540 = vpop.permute.xlu0 %1539
      %1541 = vrot.lane.b32.xlu0 %v1476, 99
      %v1542 = vpop.permute.xlu0 %1541
      %v1543 = vsel %vm589, %v1534, %v1536
      %v1544 = vsel %vm589, %v1536, %v1538
      %v1545 = vsel %vm589, %v1538, %v1540
      %v1546 = vsel %vm589, %v1540, %v1542
      %1547 = vrot.lane.b32.xlu0 %v1472, 98
      %v1548 = vpop.permute.xlu0 %1547
      %1549 = vrot.lane.b32.xlu0 %v1473, 98
      %v1550 = vpop.permute.xlu0 %1549
      %1551 = vrot.lane.b32.xlu0 %v1474, 98
      %v1552 = vpop.permute.xlu0 %1551
      %1553 = vrot.lane.b32.xlu0 %v1475, 98
      %v1554 = vpop.permute.xlu0 %1553
      %1555 = vrot.lane.b32.xlu0 %v1476, 98
      %v1556 = vpop.permute.xlu0 %1555
      %v1557 = vsel %vm604, %v1548, %v1550
      %v1558 = vsel %vm604, %v1550, %v1552
      %v1559 = vsel %vm604, %v1552, %v1554
      %v1560 = vsel %vm604, %v1554, %v1556
      %1561 = vrot.lane.b32.xlu0 %v1472, 88
      %v1562 = vpop.permute.xlu0 %1561
      %1563 = vrot.lane.b32.xlu0 %v1473, 88
      %v1564 = vpop.permute.xlu0 %1563
      %1565 = vrot.lane.b32.xlu0 %v1474, 88
      %v1566 = vpop.permute.xlu0 %1565
      %1567 = vrot.lane.b32.xlu0 %v1475, 88
      %v1568 = vpop.permute.xlu0 %1567
      %1569 = vrot.lane.b32.xlu0 %v1476, 88
      %v1570 = vpop.permute.xlu0 %1569
      %v1571 = vsel %vm619, %v1562, %v1564
      %v1572 = vsel %vm619, %v1564, %v1566
      %v1573 = vsel %vm619, %v1566, %v1568
      %v1574 = vsel %vm619, %v1568, %v1570
      %v1577 = vsel %vm624, %v1345, %v1362
      %v1581 = vsel %vm624, %v1346, %v1363
      %v1585 = vsel %vm624, %v1347, %v1364
      %v1589 = vsel %vm624, %v1348, %v1365
      %v1593 = vsel %vm624, %v1376, %v1390
      %v1597 = vsel %vm624, %v1377, %v1391
      %v1601 = vsel %vm624, %v1378, %v1392
      %v1605 = vsel %vm624, %v1379, %v1393
      %v1609 = vsel %vm624, %v1404, %v1418
      %v1613 = vsel %vm624, %v1405, %v1419
      %v1617 = vsel %vm624, %v1406, %v1420
      %v1621 = vsel %vm624, %v1407, %v1421
      %v1625 = vsel %vm624, %v1432, %v1446
      %v1629 = vsel %vm624, %v1433, %v1447
      %v1633 = vsel %vm624, %v1434, %v1448
      %v1637 = vsel %vm624, %v1435, %v1449
      %v1641 = vsel %vm624, %v1460, %v1487
      %v1645 = vsel %vm624, %v1461, %v1488
      %v1649 = vsel %vm624, %v1462, %v1489
      %v1653 = vsel %vm624, %v1463, %v1490
      %v1657 = vsel %vm624, %v1501, %v1515
      %v1661 = vsel %vm624, %v1502, %v1516
      %v1665 = vsel %vm624, %v1503, %v1517
      %v1669 = vsel %vm624, %v1504, %v1518
      %v1673 = vsel %vm624, %v1529, %v1543
      %v1677 = vsel %vm624, %v1530, %v1544
      %v1681 = vsel %vm624, %v1531, %v1545
      %v1685 = vsel %vm624, %v1532, %v1546
      %v1689 = vsel %vm624, %v1557, %v1571
      %v1693 = vsel %vm624, %v1558, %v1572
      %v1697 = vsel %vm624, %v1559, %v1573
      %v1701 = vsel %vm624, %v1560, %v1574
      %1703 = vrot.lane.b32.xlu0 %v1472, 127
      %v1704 = vpop.permute.xlu0 %1703
      %1705 = vrot.lane.b32.xlu0 %v1473, 127
      %v1706 = vpop.permute.xlu0 %1705
      %1707 = vrot.lane.b32.xlu0 %v1474, 127
      %v1708 = vpop.permute.xlu0 %1707
      %1709 = vrot.lane.b32.xlu0 %v1475, 127
      %v1710 = vpop.permute.xlu0 %1709
      %1711 = vrot.lane.b32.xlu0 %v1476, 127
      %v1712 = vpop.permute.xlu0 %1711
      %v1713 = vsel %vm396, %v1704, %v1706
      %v1714 = vsel %vm396, %v1706, %v1708
      %v1715 = vsel %vm396, %v1708, %v1710
      %v1716 = vsel %vm396, %v1710, %v1712
      %v1720 = vunpack.c.l.b16 %v1336
      %v1721 = vunpack.c.h.b16 %v1336
      %v1722 = vunpack.c.l.b16 %v1337
      %v1723 = vunpack.c.h.b16 %v1337
      %v1724 = vunpack.c.l.b16 %v1338
      %v1725 = vpack.c.b16 %v1720, %v1720
      %v1726 = vpack.c.b16 %v1721, %v1721
      %v1727 = vpack.c.b16 %v1722, %v1722
      %v1728 = vpack.c.b16 %v1723, %v1723
      %v1729 = vpack.c.b16 %v1724, %v1724
      %1730 = vrot.lane.b32.xlu0 %v1725, 9
      %v1731 = vpop.permute.xlu0 %1730
      %1732 = vrot.lane.b32.xlu0 %v1726, 9
      %v1733 = vpop.permute.xlu0 %1732
      %1734 = vrot.lane.b32.xlu0 %v1727, 9
      %v1735 = vpop.permute.xlu0 %1734
      %1736 = vrot.lane.b32.xlu0 %v1728, 9
      %v1737 = vpop.permute.xlu0 %1736
      %1738 = vrot.lane.b32.xlu0 %v1729, 9
      %v1739 = vpop.permute.xlu0 %1738
      %v1740 = vsel %vm785, %v1731, %v1733
      %v1741 = vsel %vm785, %v1733, %v1735
      %v1742 = vsel %vm785, %v1735, %v1737
      %v1743 = vsel %vm785, %v1737, %v1739
      %1744 = vrot.lane.b32.xlu0 %v1725, 8
      %v1745 = vpop.permute.xlu0 %1744
      %1746 = vrot.lane.b32.xlu0 %v1726, 8
      %v1747 = vpop.permute.xlu0 %1746
      %1748 = vrot.lane.b32.xlu0 %v1727, 8
      %v1749 = vpop.permute.xlu0 %1748
      %1750 = vrot.lane.b32.xlu0 %v1728, 8
      %v1751 = vpop.permute.xlu0 %1750
      %1752 = vrot.lane.b32.xlu0 %v1729, 8
      %v1753 = vpop.permute.xlu0 %1752
      %v1754 = vsel %vm800, %v1745, %v1747
      %v1755 = vsel %vm800, %v1747, %v1749
      %v1756 = vsel %vm800, %v1749, %v1751
      %v1757 = vsel %vm800, %v1751, %v1753
      %1758 = vrot.lane.b32.xlu0 %v1725, 7
      %v1759 = vpop.permute.xlu0 %1758
      %1760 = vrot.lane.b32.xlu0 %v1726, 7
      %v1761 = vpop.permute.xlu0 %1760
      %1762 = vrot.lane.b32.xlu0 %v1727, 7
      %v1763 = vpop.permute.xlu0 %1762
      %1764 = vrot.lane.b32.xlu0 %v1728, 7
      %v1765 = vpop.permute.xlu0 %1764
      %1766 = vrot.lane.b32.xlu0 %v1729, 7
      %v1767 = vpop.permute.xlu0 %1766
      %v1768 = vsel %vm815, %v1759, %v1761
      %v1769 = vsel %vm815, %v1761, %v1763
      %v1770 = vsel %vm815, %v1763, %v1765
      %v1771 = vsel %vm815, %v1765, %v1767
      %1772 = vrot.lane.b32.xlu0 %v1725, 125
      %v1773 = vpop.permute.xlu0 %1772
      %1774 = vrot.lane.b32.xlu0 %v1726, 125
      %v1775 = vpop.permute.xlu0 %1774
      %1776 = vrot.lane.b32.xlu0 %v1727, 125
      %v1777 = vpop.permute.xlu0 %1776
      %1778 = vrot.lane.b32.xlu0 %v1728, 125
      %v1779 = vpop.permute.xlu0 %1778
      %1780 = vrot.lane.b32.xlu0 %v1729, 125
      %v1781 = vpop.permute.xlu0 %1780
      %v1782 = vsel %vm830, %v1773, %v1775
      %v1783 = vsel %vm830, %v1775, %v1777
      %v1784 = vsel %vm830, %v1777, %v1779
      %v1785 = vsel %vm830, %v1779, %v1781
      %1786 = vrot.lane.b32.xlu0 %v1725, 124
      %v1787 = vpop.permute.xlu0 %1786
      %1788 = vrot.lane.b32.xlu0 %v1726, 124
      %v1789 = vpop.permute.xlu0 %1788
      %1790 = vrot.lane.b32.xlu0 %v1727, 124
      %v1791 = vpop.permute.xlu0 %1790
      %1792 = vrot.lane.b32.xlu0 %v1728, 124
      %v1793 = vpop.permute.xlu0 %1792
      %1794 = vrot.lane.b32.xlu0 %v1729, 124
      %v1795 = vpop.permute.xlu0 %1794
      %v1796 = vsel %vm845, %v1787, %v1789
      %v1797 = vsel %vm845, %v1789, %v1791
      %v1798 = vsel %vm845, %v1791, %v1793
      %v1799 = vsel %vm845, %v1793, %v1795
      %1800 = vrot.lane.b32.xlu0 %v1725, 123
      %v1801 = vpop.permute.xlu0 %1800
      %1802 = vrot.lane.b32.xlu0 %v1726, 123
      %v1803 = vpop.permute.xlu0 %1802
      %1804 = vrot.lane.b32.xlu0 %v1727, 123
      %v1805 = vpop.permute.xlu0 %1804
      %1806 = vrot.lane.b32.xlu0 %v1728, 123
      %v1807 = vpop.permute.xlu0 %1806
      %1808 = vrot.lane.b32.xlu0 %v1729, 123
      %v1809 = vpop.permute.xlu0 %1808
      %v1810 = vsel %vm860, %v1801, %v1803
      %v1811 = vsel %vm860, %v1803, %v1805
      %v1812 = vsel %vm860, %v1805, %v1807
      %v1813 = vsel %vm860, %v1807, %v1809
      %1814 = vrot.lane.b32.xlu0 %v1725, 113
      %v1815 = vpop.permute.xlu0 %1814
      %1816 = vrot.lane.b32.xlu0 %v1726, 113
      %v1817 = vpop.permute.xlu0 %1816
      %1818 = vrot.lane.b32.xlu0 %v1727, 113
      %v1819 = vpop.permute.xlu0 %1818
      %1820 = vrot.lane.b32.xlu0 %v1728, 113
      %v1821 = vpop.permute.xlu0 %1820
      %1822 = vrot.lane.b32.xlu0 %v1729, 113
      %v1823 = vpop.permute.xlu0 %1822
      %v1824 = vsel %vm875, %v1815, %v1817
      %v1825 = vsel %vm875, %v1817, %v1819
      %v1826 = vsel %vm875, %v1819, %v1821
      %v1827 = vsel %vm875, %v1821, %v1823
      %1828 = vrot.lane.b32.xlu0 %v1725, 112
      %v1829 = vpop.permute.xlu0 %1828
      %1830 = vrot.lane.b32.xlu0 %v1726, 112
      %v1831 = vpop.permute.xlu0 %1830
      %1832 = vrot.lane.b32.xlu0 %v1727, 112
      %v1833 = vpop.permute.xlu0 %1832
      %1834 = vrot.lane.b32.xlu0 %v1728, 112
      %v1835 = vpop.permute.xlu0 %1834
      %1836 = vrot.lane.b32.xlu0 %v1729, 112
      %v1837 = vpop.permute.xlu0 %1836
      %v1838 = vsel %vm529, %v1829, %v1831
      %v1839 = vsel %vm529, %v1831, %v1833
      %v1840 = vsel %vm529, %v1833, %v1835
      %v1841 = vsel %vm529, %v1835, %v1837
      %1842 = vrot.lane.b32.xlu0 %v1725, 111
      %v1843 = vpop.permute.xlu0 %1842
      %1844 = vrot.lane.b32.xlu0 %v1726, 111
      %v1845 = vpop.permute.xlu0 %1844
      %1846 = vrot.lane.b32.xlu0 %v1727, 111
      %v1847 = vpop.permute.xlu0 %1846
      %1848 = vrot.lane.b32.xlu0 %v1728, 111
      %v1849 = vpop.permute.xlu0 %1848
      %1850 = vrot.lane.b32.xlu0 %v1729, 111
      %v1851 = vpop.permute.xlu0 %1850
      %v1852 = vsel %vm544, %v1843, %v1845
      %v1853 = vsel %vm544, %v1845, %v1847
      %v1854 = vsel %vm544, %v1847, %v1849
      %v1855 = vsel %vm544, %v1849, %v1851
      %v1858 = vsel %vm624, %v1472, %v1713
      %v1861 = vsel %vm624, %v1473, %v1714
      %v1864 = vsel %vm624, %v1474, %v1715
      %v1867 = vsel %vm624, %v1475, %v1716
      %v1870 = vsel %vm624, %v1476, %v1712
      %v1873 = vsel %vm624, %v1731, %v1745
      %v1876 = vsel %vm624, %v1740, %v1754
      %v1879 = vsel %vm624, %v1741, %v1755
      %v1882 = vsel %vm624, %v1742, %v1756
      %v1885 = vsel %vm624, %v1743, %v1757
      %v1888 = vsel %vm624, %v1759, %v1782
      %v1891 = vsel %vm624, %v1768, %v1783
      %v1894 = vsel %vm624, %v1769, %v1784
      %v1897 = vsel %vm624, %v1770, %v1785
      %v1900 = vsel %vm624, %v1771, %v1781
      %v1903 = vsel %vm624, %v1796, %v1810
      %v1906 = vsel %vm624, %v1797, %v1811
      %v1909 = vsel %vm624, %v1798, %v1812
      %v1912 = vsel %vm624, %v1799, %v1813
      %v1915 = vsel %vm624, %v1795, %v1809
      %v1918 = vsel %vm624, %v1824, %v1838
      %v1921 = vsel %vm624, %v1825, %v1839
      %v1924 = vsel %vm624, %v1826, %v1840
      %v1927 = vsel %vm624, %v1827, %v1841
      %v1930 = vsel %vm624, %v1823, %v1837
      %1956 = vrot.lane.b32.xlu0 %v1858, 87
      %v1957 = vpop.permute.xlu0 %1956
      %1958 = vrot.lane.b32.xlu0 %v1861, 87
      %v1959 = vpop.permute.xlu0 %1958
      %1960 = vrot.lane.b32.xlu0 %v1864, 87
      %v1961 = vpop.permute.xlu0 %1960
      %1962 = vrot.lane.b32.xlu0 %v1867, 87
      %v1963 = vpop.permute.xlu0 %1962
      %1964 = vrot.lane.b32.xlu0 %v1870, 87
      %v1965 = vpop.permute.xlu0 %1964
      %1966 = vrot.lane.b32.xlu0 %v1873, 87
      %v1967 = vpop.permute.xlu0 %1966
      %1968 = vrot.lane.b32.xlu0 %v1876, 87
      %v1969 = vpop.permute.xlu0 %1968
      %1970 = vrot.lane.b32.xlu0 %v1879, 87
      %v1971 = vpop.permute.xlu0 %1970
      %1972 = vrot.lane.b32.xlu0 %v1882, 87
      %v1973 = vpop.permute.xlu0 %1972
      %1974 = vrot.lane.b32.xlu0 %v1885, 87
      %v1975 = vpop.permute.xlu0 %1974
      %1976 = vrot.lane.b32.xlu0 %v1888, 87
      %v1977 = vpop.permute.xlu0 %1976
      %1978 = vrot.lane.b32.xlu0 %v1891, 87
      %v1979 = vpop.permute.xlu0 %1978
      %1980 = vrot.lane.b32.xlu0 %v1894, 87
      %v1981 = vpop.permute.xlu0 %1980
      %1982 = vrot.lane.b32.xlu0 %v1897, 87
      %v1983 = vpop.permute.xlu0 %1982
      %1984 = vrot.lane.b32.xlu0 %v1900, 87
      %v1985 = vpop.permute.xlu0 %1984
      %1986 = vrot.lane.b32.xlu0 %v1903, 87
      %v1987 = vpop.permute.xlu0 %1986
      %1988 = vrot.lane.b32.xlu0 %v1906, 87
      %v1989 = vpop.permute.xlu0 %1988
      %1990 = vrot.lane.b32.xlu0 %v1909, 87
      %v1991 = vpop.permute.xlu0 %1990
      %1992 = vrot.lane.b32.xlu0 %v1912, 87
      %v1993 = vpop.permute.xlu0 %1992
      %1994 = vrot.lane.b32.xlu0 %v1915, 87
      %v1995 = vpop.permute.xlu0 %1994
      %1996 = vrot.lane.b32.xlu0 %v1918, 87
      %v1997 = vpop.permute.xlu0 %1996
      %1998 = vrot.lane.b32.xlu0 %v1921, 87
      %v1999 = vpop.permute.xlu0 %1998
      %2000 = vrot.lane.b32.xlu0 %v1924, 87
      %v2001 = vpop.permute.xlu0 %2000
      %2002 = vrot.lane.b32.xlu0 %v1927, 87
      %v2003 = vpop.permute.xlu0 %2002
      %2004 = vrot.lane.b32.xlu0 %v1930, 87
      %v2005 = vpop.permute.xlu0 %2004
      %2006 = vrot.lane.b32.xlu0 %v1852, 87
      %v2007 = vpop.permute.xlu0 %2006
      %2008 = vrot.lane.b32.xlu0 %v1853, 87
      %v2009 = vpop.permute.xlu0 %2008
      %2010 = vrot.lane.b32.xlu0 %v1854, 87
      %v2011 = vpop.permute.xlu0 %2010
      %2012 = vrot.lane.b32.xlu0 %v1855, 87
      %v2013 = vpop.permute.xlu0 %2012
      %2014 = vrot.lane.b32.xlu0 %v1851, 87
      %v2015 = vpop.permute.xlu0 %2014
      %v2016 = vsel %vm1068, %v1957, %v1959
      %v2017 = vsel %vm1068, %v1959, %v1961
      %v2018 = vsel %vm1068, %v1961, %v1963
      %v2019 = vsel %vm1068, %v1963, %v1965
      %v2020 = vsel %vm1068, %v1967, %v1969
      %v2021 = vsel %vm1068, %v1969, %v1971
      %v2022 = vsel %vm1068, %v1971, %v1973
      %v2023 = vsel %vm1068, %v1973, %v1975
      %v2024 = vsel %vm1068, %v1977, %v1979
      %v2025 = vsel %vm1068, %v1979, %v1981
      %v2026 = vsel %vm1068, %v1981, %v1983
      %v2027 = vsel %vm1068, %v1983, %v1985
      %v2028 = vsel %vm1068, %v1987, %v1989
      %v2029 = vsel %vm1068, %v1989, %v1991
      %v2030 = vsel %vm1068, %v1991, %v1993
      %v2031 = vsel %vm1068, %v1993, %v1995
      %v2032 = vsel %vm1068, %v1997, %v1999
      %v2033 = vsel %vm1068, %v1999, %v2001
      %v2034 = vsel %vm1068, %v2001, %v2003
      %v2035 = vsel %vm1068, %v2003, %v2005
      %v2036 = vsel %vm1068, %v2007, %v2009
      %v2037 = vsel %vm1068, %v2009, %v2011
      %v2038 = vsel %vm1068, %v2011, %v2013
      %v2039 = vsel %vm1068, %v2013, %v2015
      %v2061 = vsel %vm624, %v2036, 0
      %v2064 = vsel %vm624, %v2037, 0
      %v2067 = vsel %vm624, %v2038, 0
      %v2070 = vsel %vm624, %v2039, 0
      %2072 = vmatprep.subr.bf16.mxu0 %v1581
      %2073 = vmatpush1.bf16.msra.mxu0 %v1577
      %2074 = vmatprep.subr.bf16.mxu0 %v1597
      %2075 = vmatpush1.bf16.msra.mxu0 %v1593
      %2076 = vmatprep.subr.bf16.mxu0 %v1613
      %2077 = vmatpush1.bf16.msra.mxu0 %v1609
      %2078 = vmatprep.subr.bf16.mxu0 %v1629
      %2079 = vmatpush1.bf16.msra.mxu0 %v1625
      %2080 = vmatprep.subr.bf16.mxu0 %v1645
      %2081 = vmatpush1.bf16.msra.mxu0 %v1641
      %2082 = vmatprep.subr.bf16.mxu0 %v1661
      %2083 = vmatpush1.bf16.msra.mxu0 %v1657
      %2084 = vmatprep.subr.bf16.mxu0 %v1677
      %2085 = vmatpush1.bf16.msra.mxu0 %v1673
      %2086 = vmatprep.subr.bf16.mxu0 %v1693
      %2087 = vmatpush1.bf16.msra.mxu0 %v1689
      %2088 = vmatprep.subr.bf16.mxu0 %v2017
      %2089 = vmatpush1.bf16.msra.mxu0 %v2016
      %2090 = vmatprep.subr.bf16.mxu0 %v2021
      %2091 = vmatpush1.bf16.msra.mxu0 %v2020
      %2092 = vmatprep.subr.bf16.mxu0 %v2025
      %2093 = vmatpush1.bf16.msra.mxu0 %v2024
      %2094 = vmatprep.subr.bf16.mxu0 %v2029
      %2095 = vmatpush1.bf16.msra.mxu0 %v2028
      %2096 = vmatprep.subr.bf16.mxu0 %v2033
      %2097 = vmatpush1.bf16.msra.mxu0 %v2032
      %2098 = vmatprep.subr.bf16.mxu0 %v2064
      %2099 = vmatpush1.bf16.msra.mxu0 %v2061
      %2100 = vmatprep.subr.bf16.mxu0 0
      %2101 = vmatpush1.bf16.msra.mxu0 0
      %2102 = vmatprep.subr.bf16.mxu0 0
      %2103 = vmatpush1.bf16.msra.mxu0 0
      %2104 = vmatprep.mubr.bf16.mxu0 %v1153
      %2105 = vmatmul.mubr.bf16.gmra.mrb[0].mxu0 %v1145
      %v2106 = vpop.f32.mrb[0].mxu0
      %v2107 = vadd.f32 %v1116, %v2106
      %v2108 = vpop.f32.mrb[0].mxu0
      %v2109 = vadd.f32 %v1116, %v2108
      %v2110 = vpop.f32.mrb[0].mxu0
      %v2111 = vadd.f32 %v1121, %v2110
      %v2112 = vpop.f32.mrb[0].mxu0
      %v2113 = vadd.f32 %v1121, %v2112
      %2114 = vmatprep.mubr.bf16.mxu0 %v1156
      %2115 = vmatmul.mubr.bf16.gmra.mrb[0].mxu0 %v1147
      %v2116 = vpop.f32.mrb[0].mxu0
      %v2117 = vadd.f32 %v1126, %v2116
      %v2118 = vpop.f32.mrb[0].mxu0
      %v2119 = vadd.f32 %v1126, %v2118
      %v2120 = vpop.f32.mrb[0].mxu0
      %v2121 = vadd.f32 %v1131, %v2120
      %v2122 = vpop.f32.mrb[0].mxu0
      %v2123 = vadd.f32 %v1131, %v2122
      %2124 = vdwg.mxu0
      %2125 = vmatprep.subr.bf16.mxu0 %v1589
      %2126 = vmatpush1.bf16.msra.mxu0 %v1585
      %2127 = vmatprep.subr.bf16.mxu0 %v1605
      %2128 = vmatpush1.bf16.msra.mxu0 %v1601
      %2129 = vmatprep.subr.bf16.mxu0 %v1621
      %2130 = vmatpush1.bf16.msra.mxu0 %v1617
      %2131 = vmatprep.subr.bf16.mxu0 %v1637
      %2132 = vmatpush1.bf16.msra.mxu0 %v1633
      %2133 = vmatprep.subr.bf16.mxu0 %v1653
      %2134 = vmatpush1.bf16.msra.mxu0 %v1649
      %2135 = vmatprep.subr.bf16.mxu0 %v1669
      %2136 = vmatpush1.bf16.msra.mxu0 %v1665
      %2137 = vmatprep.subr.bf16.mxu0 %v1685
      %2138 = vmatpush1.bf16.msra.mxu0 %v1681
      %2139 = vmatprep.subr.bf16.mxu0 %v1701
      %2140 = vmatpush1.bf16.msra.mxu0 %v1697
      %2141 = vmatprep.subr.bf16.mxu0 %v2019
      %2142 = vmatpush1.bf16.msra.mxu0 %v2018
      %2143 = vmatprep.subr.bf16.mxu0 %v2023
      %2144 = vmatpush1.bf16.msra.mxu0 %v2022
      %2145 = vmatprep.subr.bf16.mxu0 %v2027
      %2146 = vmatpush1.bf16.msra.mxu0 %v2026
      %2147 = vmatprep.subr.bf16.mxu0 %v2031
      %2148 = vmatpush1.bf16.msra.mxu0 %v2030
      %2149 = vmatprep.subr.bf16.mxu0 %v2035
      %2150 = vmatpush1.bf16.msra.mxu0 %v2034
      %2151 = vmatprep.subr.bf16.mxu0 %v2070
      %2152 = vmatpush1.bf16.msra.mxu0 %v2067
      %2153 = vmatprep.subr.bf16.mxu0 0
      %2154 = vmatpush1.bf16.msra.mxu0 0
      %2155 = vmatprep.subr.bf16.mxu0 0
      %2156 = vmatpush1.bf16.msra.mxu0 0
      %2157 = vmatprep.mubr.bf16.mxu0 %v1153
      %2158 = vmatmul.mubr.bf16.gmra.mrb[0].mxu0 %v1145
      %v2159 = vpop.f32.mrb[0].mxu0
      %v2160 = vadd.f32 %v1116, %v2159
      %v2161 = vpop.f32.mrb[0].mxu0
      %v2162 = vadd.f32 %v1116, %v2161
      %v2163 = vpop.f32.mrb[0].mxu0
      %v2164 = vadd.f32 %v1121, %v2163
      %v2165 = vpop.f32.mrb[0].mxu0
      %v2166 = vadd.f32 %v1121, %v2165
      %2167 = vmatprep.mubr.bf16.mxu0 %v1156
      %2168 = vmatmul.mubr.bf16.gmra.mrb[0].mxu0 %v1147
      %v2169 = vpop.f32.mrb[0].mxu0
      %v2170 = vadd.f32 %v1126, %v2169
      %v2171 = vpop.f32.mrb[0].mxu0
      %v2172 = vadd.f32 %v1126, %v2171
      %v2173 = vpop.f32.mrb[0].mxu0
      %v2174 = vadd.f32 %v1131, %v2173
      %v2175 = vpop.f32.mrb[0].mxu0
      %v2176 = vadd.f32 %v1131, %v2175
      %2177 = vdwg.mxu0
      %v2178 = vld [vmem:[%s335 + $0x4] sm:$0xf]
      %v2180 = vlaneseq
      %v2181 = vshrl.u32 %v2180, 7
      %v2182 = vsub.s32 0, %v2181
      %v2183 = vrot.slane %v2178, %v2182
      %v2184 = vlaneseq
      %v2185 = vshrl.u32 %v2184, 7
      %v2186 = vsub.s32 1, %v2185
      %v2187 = vrot.slane %v2178, %v2186
      %v2188 = vlaneseq
      %v2189 = vshrl.u32 %v2188, 7
      %v2190 = vsub.s32 2, %v2189
      %v2191 = vrot.slane %v2178, %v2190
      %v2192 = vlaneseq
      %v2193 = vshrl.u32 %v2192, 7
      %v2194 = vsub.s32 3, %v2193
      %v2195 = vrot.slane %v2178, %v2194
      %v2200 = vmul.f32 %v2107, %v2183
      %v2201 = vmul.f32 %v2109, %v2187
      %v2202 = vmul.f32 %v2160, %v2191
      %v2203 = vmul.f32 %v2162, %v2195
      %v2204 = vmul.f32 %v2111, %v2183
      %v2205 = vmul.f32 %v2113, %v2187
      %v2206 = vmul.f32 %v2164, %v2191
      %v2207 = vmul.f32 %v2166, %v2195
      %v2208 = vmul.f32 %v2117, %v2183
      %v2209 = vmul.f32 %v2119, %v2187
      %v2210 = vmul.f32 %v2170, %v2191
      %v2211 = vmul.f32 %v2172, %v2195
      %v2212 = vmul.f32 %v2121, %v2183
      %v2213 = vmul.f32 %v2123, %v2187
      %v2214 = vmul.f32 %v2174, %v2191
      %v2215 = vmul.f32 %v2176, %v2195
      %v2216 = vpack.c.bf16 %v2204, %v2200
      %v2217 = vpack.c.bf16 %v2205, %v2201
      %v2218 = vpack.c.bf16 %v2206, %v2202
      %v2219 = vpack.c.bf16 %v2207, %v2203
      %v2220 = vpack.c.bf16 %v2212, %v2208
      %v2221 = vpack.c.bf16 %v2213, %v2209
      %v2222 = vpack.c.bf16 %v2214, %v2210
      %v2223 = vpack.c.bf16 %v2215, %v2211
      %2224 = vst [vmem:[#allocation2 + $0x20] sm:$0xff] %v2216
      %2225 = vst [vmem:[#allocation2 + $0x28] sm:$0xff] %v2217
      %2226 = vst [vmem:[#allocation2 + $0x30] sm:$0xff] %v2218
      %2227 = vst [vmem:[#allocation2 + $0x38] sm:$0xff] %v2219
      %2228 = vst [vmem:[#allocation2 + $0x60] sm:$0xff] %v2220
      %2229 = vst [vmem:[#allocation2 + $0x68] sm:$0xff] %v2221
      %2230 = vst [vmem:[#allocation2 + $0x70] sm:$0xff] %v2222
      %2231 = vst [vmem:[#allocation2 + $0x78] sm:$0xff] %v2223
      %v2232 = vld [vmem:[#allocation2] sm:$0xff]
      %v2233 = vld [vmem:[#allocation2 + $0x8] sm:$0xff]
      %v2234 = vld [vmem:[#allocation2 + $0x10] sm:$0xff]
      %v2235 = vld [vmem:[#allocation2 + $0x18] sm:$0xff]
      %v2236 = vld [vmem:[#allocation2 + $0x40] sm:$0xff]
      %v2237 = vld [vmem:[#allocation2 + $0x48] sm:$0xff]
      %v2238 = vld [vmem:[#allocation2 + $0x50] sm:$0xff]
      %v2239 = vld [vmem:[#allocation2 + $0x58] sm:$0xff]
      %v2240 = vld [vmem:[#allocation2 + $0x20] sm:$0xff]
      %v2241 = vld [vmem:[#allocation2 + $0x60] sm:$0xff]
      %v2242 = vld [vmem:[#allocation2 + $0x28] sm:$0xff]
      %v2243 = vld [vmem:[#allocation2 + $0x68] sm:$0xff]
      %v2244 = vld [vmem:[#allocation2 + $0x30] sm:$0xff]
      %v2245 = vld [vmem:[#allocation2 + $0x70] sm:$0xff]
      %2256 = vrot.lane.b32.xlu0 %v2232, 127
      %v2257 = vpop.permute.xlu0 %2256
      %2258 = vrot.lane.b32.xlu0 %v2233, 127
      %v2259 = vpop.permute.xlu0 %2258
      %2260 = vrot.lane.b32.xlu0 %v2234, 127
      %v2261 = vpop.permute.xlu0 %2260
      %2262 = vrot.lane.b32.xlu0 %v2235, 127
      %v2263 = vpop.permute.xlu0 %2262
      %2264 = vrot.lane.b32.xlu0 %v2240, 127
      %v2265 = vpop.permute.xlu0 %2264
      %2266 = vrot.lane.b32.xlu0 %v2236, 127
      %v2267 = vpop.permute.xlu0 %2266
      %2268 = vrot.lane.b32.xlu0 %v2237, 127
      %v2269 = vpop.permute.xlu0 %2268
      %2270 = vrot.lane.b32.xlu0 %v2238, 127
      %v2271 = vpop.permute.xlu0 %2270
      %2272 = vrot.lane.b32.xlu0 %v2239, 127
      %v2273 = vpop.permute.xlu0 %2272
      %2274 = vrot.lane.b32.xlu0 %v2241, 127
      %v2275 = vpop.permute.xlu0 %2274
      %v2276 = vsel %vm396, %v2257, %v2259
      %v2277 = vsel %vm396, %v2259, %v2261
      %v2278 = vsel %vm396, %v2261, %v2263
      %v2279 = vsel %vm396, %v2263, %v2265
      %v2280 = vsel %vm396, %v2267, %v2269
      %v2281 = vsel %vm396, %v2269, %v2271
      %v2282 = vsel %vm396, %v2271, %v2273
      %v2283 = vsel %vm396, %v2273, %v2275
      %2292 = vrot.lane.b32.xlu0 %v2232, 126
      %v2293 = vpop.permute.xlu0 %2292
      %2294 = vrot.lane.b32.xlu0 %v2233, 126
      %v2295 = vpop.permute.xlu0 %2294
      %2296 = vrot.lane.b32.xlu0 %v2234, 126
      %v2297 = vpop.permute.xlu0 %2296
      %2298 = vrot.lane.b32.xlu0 %v2235, 126
      %v2299 = vpop.permute.xlu0 %2298
      %2300 = vrot.lane.b32.xlu0 %v2240, 126
      %v2301 = vpop.permute.xlu0 %2300
      %2302 = vrot.lane.b32.xlu0 %v2236, 126
      %v2303 = vpop.permute.xlu0 %2302
      %2304 = vrot.lane.b32.xlu0 %v2237, 126
      %v2305 = vpop.permute.xlu0 %2304
      %2306 = vrot.lane.b32.xlu0 %v2238, 126
      %v2307 = vpop.permute.xlu0 %2306
      %2308 = vrot.lane.b32.xlu0 %v2239, 126
      %v2309 = vpop.permute.xlu0 %2308
      %2310 = vrot.lane.b32.xlu0 %v2241, 126
      %v2311 = vpop.permute.xlu0 %2310
      %v2312 = vsel %vm411, %v2293, %v2295
      %v2313 = vsel %vm411, %v2295, %v2297
      %v2314 = vsel %vm411, %v2297, %v2299
      %v2315 = vsel %vm411, %v2299, %v2301
      %v2316 = vsel %vm411, %v2303, %v2305
      %v2317 = vsel %vm411, %v2305, %v2307
      %v2318 = vsel %vm411, %v2307, %v2309
      %v2319 = vsel %vm411, %v2309, %v2311
      %2328 = vrot.lane.b32.xlu0 %v2232, 116
      %v2329 = vpop.permute.xlu0 %2328
      %2330 = vrot.lane.b32.xlu0 %v2233, 116
      %v2331 = vpop.permute.xlu0 %2330
      %2332 = vrot.lane.b32.xlu0 %v2234, 116
      %v2333 = vpop.permute.xlu0 %2332
      %2334 = vrot.lane.b32.xlu0 %v2235, 116
      %v2335 = vpop.permute.xlu0 %2334
      %2336 = vrot.lane.b32.xlu0 %v2240, 116
      %v2337 = vpop.permute.xlu0 %2336
      %2338 = vrot.lane.b32.xlu0 %v2236, 116
      %v2339 = vpop.permute.xlu0 %2338
      %2340 = vrot.lane.b32.xlu0 %v2237, 116
      %v2341 = vpop.permute.xlu0 %2340
      %2342 = vrot.lane.b32.xlu0 %v2238, 116
      %v2343 = vpop.permute.xlu0 %2342
      %2344 = vrot.lane.b32.xlu0 %v2239, 116
      %v2345 = vpop.permute.xlu0 %2344
      %2346 = vrot.lane.b32.xlu0 %v2241, 116
      %v2347 = vpop.permute.xlu0 %2346
      %v2348 = vsel %vm426, %v2329, %v2331
      %v2349 = vsel %vm426, %v2331, %v2333
      %v2350 = vsel %vm426, %v2333, %v2335
      %v2351 = vsel %vm426, %v2335, %v2337
      %v2352 = vsel %vm426, %v2339, %v2341
      %v2353 = vsel %vm426, %v2341, %v2343
      %v2354 = vsel %vm426, %v2343, %v2345
      %v2355 = vsel %vm426, %v2345, %v2347
      %2364 = vrot.lane.b32.xlu0 %v2232, 115
      %v2365 = vpop.permute.xlu0 %2364
      %2366 = vrot.lane.b32.xlu0 %v2233, 115
      %v2367 = vpop.permute.xlu0 %2366
      %2368 = vrot.lane.b32.xlu0 %v2234, 115
      %v2369 = vpop.permute.xlu0 %2368
      %2370 = vrot.lane.b32.xlu0 %v2235, 115
      %v2371 = vpop.permute.xlu0 %2370
      %2372 = vrot.lane.b32.xlu0 %v2240, 115
      %v2373 = vpop.permute.xlu0 %2372
      %2374 = vrot.lane.b32.xlu0 %v2236, 115
      %v2375 = vpop.permute.xlu0 %2374
      %2376 = vrot.lane.b32.xlu0 %v2237, 115
      %v2377 = vpop.permute.xlu0 %2376
      %2378 = vrot.lane.b32.xlu0 %v2238, 115
      %v2379 = vpop.permute.xlu0 %2378
      %2380 = vrot.lane.b32.xlu0 %v2239, 115
      %v2381 = vpop.permute.xlu0 %2380
      %2382 = vrot.lane.b32.xlu0 %v2241, 115
      %v2383 = vpop.permute.xlu0 %2382
      %v2384 = vsel %vm441, %v2365, %v2367
      %v2385 = vsel %vm441, %v2367, %v2369
      %v2386 = vsel %vm441, %v2369, %v2371
      %v2387 = vsel %vm441, %v2371, %v2373
      %v2388 = vsel %vm441, %v2375, %v2377
      %v2389 = vsel %vm441, %v2377, %v2379
      %v2390 = vsel %vm441, %v2379, %v2381
      %v2391 = vsel %vm441, %v2381, %v2383
      %2400 = vrot.lane.b32.xlu0 %v2232, 114
      %v2401 = vpop.permute.xlu0 %2400
      %2402 = vrot.lane.b32.xlu0 %v2233, 114
      %v2403 = vpop.permute.xlu0 %2402
      %2404 = vrot.lane.b32.xlu0 %v2234, 114
      %v2405 = vpop.permute.xlu0 %2404
      %2406 = vrot.lane.b32.xlu0 %v2235, 114
      %v2407 = vpop.permute.xlu0 %2406
      %2408 = vrot.lane.b32.xlu0 %v2240, 114
      %v2409 = vpop.permute.xlu0 %2408
      %2410 = vrot.lane.b32.xlu0 %v2236, 114
      %v2411 = vpop.permute.xlu0 %2410
      %2412 = vrot.lane.b32.xlu0 %v2237, 114
      %v2413 = vpop.permute.xlu0 %2412
      %2414 = vrot.lane.b32.xlu0 %v2238, 114
      %v2415 = vpop.permute.xlu0 %2414
      %2416 = vrot.lane.b32.xlu0 %v2239, 114
      %v2417 = vpop.permute.xlu0 %2416
      %2418 = vrot.lane.b32.xlu0 %v2241, 114
      %v2419 = vpop.permute.xlu0 %2418
      %v2420 = vsel %vm456, %v2401, %v2403
      %v2421 = vsel %vm456, %v2403, %v2405
      %v2422 = vsel %vm456, %v2405, %v2407
      %v2423 = vsel %vm456, %v2407, %v2409
      %v2424 = vsel %vm456, %v2411, %v2413
      %v2425 = vsel %vm456, %v2413, %v2415
      %v2426 = vsel %vm456, %v2415, %v2417
      %v2427 = vsel %vm456, %v2417, %v2419
      %2436 = vrot.lane.b32.xlu0 %v2232, 104
      %v2437 = vpop.permute.xlu0 %2436
      %2438 = vrot.lane.b32.xlu0 %v2233, 104
      %v2439 = vpop.permute.xlu0 %2438
      %2440 = vrot.lane.b32.xlu0 %v2234, 104
      %v2441 = vpop.permute.xlu0 %2440
      %2442 = vrot.lane.b32.xlu0 %v2235, 104
      %v2443 = vpop.permute.xlu0 %2442
      %2444 = vrot.lane.b32.xlu0 %v2240, 104
      %v2445 = vpop.permute.xlu0 %2444
      %2446 = vrot.lane.b32.xlu0 %v2236, 104
      %v2447 = vpop.permute.xlu0 %2446
      %2448 = vrot.lane.b32.xlu0 %v2237, 104
      %v2449 = vpop.permute.xlu0 %2448
      %2450 = vrot.lane.b32.xlu0 %v2238, 104
      %v2451 = vpop.permute.xlu0 %2450
      %2452 = vrot.lane.b32.xlu0 %v2239, 104
      %v2453 = vpop.permute.xlu0 %2452
      %2454 = vrot.lane.b32.xlu0 %v2241, 104
      %v2455 = vpop.permute.xlu0 %2454
      %v2456 = vsel %vm471, %v2437, %v2439
      %v2457 = vsel %vm471, %v2439, %v2441
      %v2458 = vsel %vm471, %v2441, %v2443
      %v2459 = vsel %vm471, %v2443, %v2445
      %v2460 = vsel %vm471, %v2447, %v2449
      %v2461 = vsel %vm471, %v2449, %v2451
      %v2462 = vsel %vm471, %v2451, %v2453
      %v2463 = vsel %vm471, %v2453, %v2455
      %2472 = vrot.lane.b32.xlu0 %v2232, 103
      %v2473 = vpop.permute.xlu0 %2472
      %2474 = vrot.lane.b32.xlu0 %v2233, 103
      %v2475 = vpop.permute.xlu0 %2474
      %2476 = vrot.lane.b32.xlu0 %v2234, 103
      %v2477 = vpop.permute.xlu0 %2476
      %2478 = vrot.lane.b32.xlu0 %v2235, 103
      %v2479 = vpop.permute.xlu0 %2478
      %2480 = vrot.lane.b32.xlu0 %v2240, 103
      %v2481 = vpop.permute.xlu0 %2480
      %2482 = vrot.lane.b32.xlu0 %v2236, 103
      %v2483 = vpop.permute.xlu0 %2482
      %2484 = vrot.lane.b32.xlu0 %v2237, 103
      %v2485 = vpop.permute.xlu0 %2484
      %2486 = vrot.lane.b32.xlu0 %v2238, 103
      %v2487 = vpop.permute.xlu0 %2486
      %2488 = vrot.lane.b32.xlu0 %v2239, 103
      %v2489 = vpop.permute.xlu0 %2488
      %2490 = vrot.lane.b32.xlu0 %v2241, 103
      %v2491 = vpop.permute.xlu0 %2490
      %v2492 = vsel %vm486, %v2473, %v2475
      %v2493 = vsel %vm486, %v2475, %v2477
      %v2494 = vsel %vm486, %v2477, %v2479
      %v2495 = vsel %vm486, %v2479, %v2481
      %v2496 = vsel %vm486, %v2483, %v2485
      %v2497 = vsel %vm486, %v2485, %v2487
      %v2498 = vsel %vm486, %v2487, %v2489
      %v2499 = vsel %vm486, %v2489, %v2491
      %2508 = vrot.lane.b32.xlu0 %v2232, 102
      %v2509 = vpop.permute.xlu0 %2508
      %2510 = vrot.lane.b32.xlu0 %v2233, 102
      %v2511 = vpop.permute.xlu0 %2510
      %2512 = vrot.lane.b32.xlu0 %v2234, 102
      %v2513 = vpop.permute.xlu0 %2512
      %2514 = vrot.lane.b32.xlu0 %v2235, 102
      %v2515 = vpop.permute.xlu0 %2514
      %2516 = vrot.lane.b32.xlu0 %v2240, 102
      %v2517 = vpop.permute.xlu0 %2516
      %2518 = vrot.lane.b32.xlu0 %v2236, 102
      %v2519 = vpop.permute.xlu0 %2518
      %2520 = vrot.lane.b32.xlu0 %v2237, 102
      %v2521 = vpop.permute.xlu0 %2520
      %2522 = vrot.lane.b32.xlu0 %v2238, 102
      %v2523 = vpop.permute.xlu0 %2522
      %2524 = vrot.lane.b32.xlu0 %v2239, 102
      %v2525 = vpop.permute.xlu0 %2524
      %2526 = vrot.lane.b32.xlu0 %v2241, 102
      %v2527 = vpop.permute.xlu0 %2526
      %v2528 = vsel %vm501, %v2509, %v2511
      %v2529 = vsel %vm501, %v2511, %v2513
      %v2530 = vsel %vm501, %v2513, %v2515
      %v2531 = vsel %vm501, %v2515, %v2517
      %v2532 = vsel %vm501, %v2519, %v2521
      %v2533 = vsel %vm501, %v2521, %v2523
      %v2534 = vsel %vm501, %v2523, %v2525
      %v2535 = vsel %vm501, %v2525, %v2527
      %2546 = vrot.lane.b32.xlu0 %v2233, 112
      %v2547 = vpop.permute.xlu0 %2546
      %2548 = vrot.lane.b32.xlu0 %v2234, 112
      %v2549 = vpop.permute.xlu0 %2548
      %2550 = vrot.lane.b32.xlu0 %v2235, 112
      %v2551 = vpop.permute.xlu0 %2550
      %2552 = vrot.lane.b32.xlu0 %v2240, 112
      %v2553 = vpop.permute.xlu0 %2552
      %2554 = vrot.lane.b32.xlu0 %v2242, 112
      %v2555 = vpop.permute.xlu0 %2554
      %2556 = vrot.lane.b32.xlu0 %v2237, 112
      %v2557 = vpop.permute.xlu0 %2556
      %2558 = vrot.lane.b32.xlu0 %v2238, 112
      %v2559 = vpop.permute.xlu0 %2558
      %2560 = vrot.lane.b32.xlu0 %v2239, 112
      %v2561 = vpop.permute.xlu0 %2560
      %2562 = vrot.lane.b32.xlu0 %v2241, 112
      %v2563 = vpop.permute.xlu0 %2562
      %2564 = vrot.lane.b32.xlu0 %v2243, 112
      %v2565 = vpop.permute.xlu0 %2564
      %v2566 = vsel %vm529, %v2547, %v2549
      %v2567 = vsel %vm529, %v2549, %v2551
      %v2568 = vsel %vm529, %v2551, %v2553
      %v2569 = vsel %vm529, %v2553, %v2555
      %v2570 = vsel %vm529, %v2557, %v2559
      %v2571 = vsel %vm529, %v2559, %v2561
      %v2572 = vsel %vm529, %v2561, %v2563
      %v2573 = vsel %vm529, %v2563, %v2565
      %2582 = vrot.lane.b32.xlu0 %v2233, 111
      %v2583 = vpop.permute.xlu0 %2582
      %2584 = vrot.lane.b32.xlu0 %v2234, 111
      %v2585 = vpop.permute.xlu0 %2584
      %2586 = vrot.lane.b32.xlu0 %v2235, 111
      %v2587 = vpop.permute.xlu0 %2586
      %2588 = vrot.lane.b32.xlu0 %v2240, 111
      %v2589 = vpop.permute.xlu0 %2588
      %2590 = vrot.lane.b32.xlu0 %v2242, 111
      %v2591 = vpop.permute.xlu0 %2590
      %2592 = vrot.lane.b32.xlu0 %v2237, 111
      %v2593 = vpop.permute.xlu0 %2592
      %2594 = vrot.lane.b32.xlu0 %v2238, 111
      %v2595 = vpop.permute.xlu0 %2594
      %2596 = vrot.lane.b32.xlu0 %v2239, 111
      %v2597 = vpop.permute.xlu0 %2596
      %2598 = vrot.lane.b32.xlu0 %v2241, 111
      %v2599 = vpop.permute.xlu0 %2598
      %2600 = vrot.lane.b32.xlu0 %v2243, 111
      %v2601 = vpop.permute.xlu0 %2600
      %v2602 = vsel %vm544, %v2583, %v2585
      %v2603 = vsel %vm544, %v2585, %v2587
      %v2604 = vsel %vm544, %v2587, %v2589
      %v2605 = vsel %vm544, %v2589, %v2591
      %v2606 = vsel %vm544, %v2593, %v2595
      %v2607 = vsel %vm544, %v2595, %v2597
      %v2608 = vsel %vm544, %v2597, %v2599
      %v2609 = vsel %vm544, %v2599, %v2601
      %2618 = vrot.lane.b32.xlu0 %v2233, 110
      %v2619 = vpop.permute.xlu0 %2618
      %2620 = vrot.lane.b32.xlu0 %v2234, 110
      %v2621 = vpop.permute.xlu0 %2620
      %2622 = vrot.lane.b32.xlu0 %v2235, 110
      %v2623 = vpop.permute.xlu0 %2622
      %2624 = vrot.lane.b32.xlu0 %v2240, 110
      %v2625 = vpop.permute.xlu0 %2624
      %2626 = vrot.lane.b32.xlu0 %v2242, 110
      %v2627 = vpop.permute.xlu0 %2626
      %2628 = vrot.lane.b32.xlu0 %v2237, 110
      %v2629 = vpop.permute.xlu0 %2628
      %2630 = vrot.lane.b32.xlu0 %v2238, 110
      %v2631 = vpop.permute.xlu0 %2630
      %2632 = vrot.lane.b32.xlu0 %v2239, 110
      %v2633 = vpop.permute.xlu0 %2632
      %2634 = vrot.lane.b32.xlu0 %v2241, 110
      %v2635 = vpop.permute.xlu0 %2634
      %2636 = vrot.lane.b32.xlu0 %v2243, 110
      %v2637 = vpop.permute.xlu0 %2636
      %v2638 = vsel %vm559, %v2619, %v2621
      %v2639 = vsel %vm559, %v2621, %v2623
      %v2640 = vsel %vm559, %v2623, %v2625
      %v2641 = vsel %vm559, %v2625, %v2627
      %v2642 = vsel %vm559, %v2629, %v2631
      %v2643 = vsel %vm559, %v2631, %v2633
      %v2644 = vsel %vm559, %v2633, %v2635
      %v2645 = vsel %vm559, %v2635, %v2637
      %2654 = vrot.lane.b32.xlu0 %v2233, 100
      %v2655 = vpop.permute.xlu0 %2654
      %2656 = vrot.lane.b32.xlu0 %v2234, 100
      %v2657 = vpop.permute.xlu0 %2656
      %2658 = vrot.lane.b32.xlu0 %v2235, 100
      %v2659 = vpop.permute.xlu0 %2658
      %2660 = vrot.lane.b32.xlu0 %v2240, 100
      %v2661 = vpop.permute.xlu0 %2660
      %2662 = vrot.lane.b32.xlu0 %v2242, 100
      %v2663 = vpop.permute.xlu0 %2662
      %2664 = vrot.lane.b32.xlu0 %v2237, 100
      %v2665 = vpop.permute.xlu0 %2664
      %2666 = vrot.lane.b32.xlu0 %v2238, 100
      %v2667 = vpop.permute.xlu0 %2666
      %2668 = vrot.lane.b32.xlu0 %v2239, 100
      %v2669 = vpop.permute.xlu0 %2668
      %2670 = vrot.lane.b32.xlu0 %v2241, 100
      %v2671 = vpop.permute.xlu0 %2670
      %2672 = vrot.lane.b32.xlu0 %v2243, 100
      %v2673 = vpop.permute.xlu0 %2672
      %v2674 = vsel %vm574, %v2655, %v2657
      %v2675 = vsel %vm574, %v2657, %v2659
      %v2676 = vsel %vm574, %v2659, %v2661
      %v2677 = vsel %vm574, %v2661, %v2663
      %v2678 = vsel %vm574, %v2665, %v2667
      %v2679 = vsel %vm574, %v2667, %v2669
      %v2680 = vsel %vm574, %v2669, %v2671
      %v2681 = vsel %vm574, %v2671, %v2673
      %2690 = vrot.lane.b32.xlu0 %v2233, 99
      %v2691 = vpop.permute.xlu0 %2690
      %2692 = vrot.lane.b32.xlu0 %v2234, 99
      %v2693 = vpop.permute.xlu0 %2692
      %2694 = vrot.lane.b32.xlu0 %v2235, 99
      %v2695 = vpop.permute.xlu0 %2694
      %2696 = vrot.lane.b32.xlu0 %v2240, 99
      %v2697 = vpop.permute.xlu0 %2696
      %2698 = vrot.lane.b32.xlu0 %v2242, 99
      %v2699 = vpop.permute.xlu0 %2698
      %2700 = vrot.lane.b32.xlu0 %v2237, 99
      %v2701 = vpop.permute.xlu0 %2700
      %2702 = vrot.lane.b32.xlu0 %v2238, 99
      %v2703 = vpop.permute.xlu0 %2702
      %2704 = vrot.lane.b32.xlu0 %v2239, 99
      %v2705 = vpop.permute.xlu0 %2704
      %2706 = vrot.lane.b32.xlu0 %v2241, 99
      %v2707 = vpop.permute.xlu0 %2706
      %2708 = vrot.lane.b32.xlu0 %v2243, 99
      %v2709 = vpop.permute.xlu0 %2708
      %v2710 = vsel %vm589, %v2691, %v2693
      %v2711 = vsel %vm589, %v2693, %v2695
      %v2712 = vsel %vm589, %v2695, %v2697
      %v2713 = vsel %vm589, %v2697, %v2699
      %v2714 = vsel %vm589, %v2701, %v2703
      %v2715 = vsel %vm589, %v2703, %v2705
      %v2716 = vsel %vm589, %v2705, %v2707
      %v2717 = vsel %vm589, %v2707, %v2709
      %2726 = vrot.lane.b32.xlu0 %v2233, 98
      %v2727 = vpop.permute.xlu0 %2726
      %2728 = vrot.lane.b32.xlu0 %v2234, 98
      %v2729 = vpop.permute.xlu0 %2728
      %2730 = vrot.lane.b32.xlu0 %v2235, 98
      %v2731 = vpop.permute.xlu0 %2730
      %2732 = vrot.lane.b32.xlu0 %v2240, 98
      %v2733 = vpop.permute.xlu0 %2732
      %2734 = vrot.lane.b32.xlu0 %v2242, 98
      %v2735 = vpop.permute.xlu0 %2734
      %2736 = vrot.lane.b32.xlu0 %v2237, 98
      %v2737 = vpop.permute.xlu0 %2736
      %2738 = vrot.lane.b32.xlu0 %v2238, 98
      %v2739 = vpop.permute.xlu0 %2738
      %2740 = vrot.lane.b32.xlu0 %v2239, 98
      %v2741 = vpop.permute.xlu0 %2740
      %2742 = vrot.lane.b32.xlu0 %v2241, 98
      %v2743 = vpop.permute.xlu0 %2742
      %2744 = vrot.lane.b32.xlu0 %v2243, 98
      %v2745 = vpop.permute.xlu0 %2744
      %v2746 = vsel %vm604, %v2727, %v2729
      %v2747 = vsel %vm604, %v2729, %v2731
      %v2748 = vsel %vm604, %v2731, %v2733
      %v2749 = vsel %vm604, %v2733, %v2735
      %v2750 = vsel %vm604, %v2737, %v2739
      %v2751 = vsel %vm604, %v2739, %v2741
      %v2752 = vsel %vm604, %v2741, %v2743
      %v2753 = vsel %vm604, %v2743, %v2745
      %2762 = vrot.lane.b32.xlu0 %v2233, 88
      %v2763 = vpop.permute.xlu0 %2762
      %2764 = vrot.lane.b32.xlu0 %v2234, 88
      %v2765 = vpop.permute.xlu0 %2764
      %2766 = vrot.lane.b32.xlu0 %v2235, 88
      %v2767 = vpop.permute.xlu0 %2766
      %2768 = vrot.lane.b32.xlu0 %v2240, 88
      %v2769 = vpop.permute.xlu0 %2768
      %2770 = vrot.lane.b32.xlu0 %v2242, 88
      %v2771 = vpop.permute.xlu0 %2770
      %2772 = vrot.lane.b32.xlu0 %v2237, 88
      %v2773 = vpop.permute.xlu0 %2772
      %2774 = vrot.lane.b32.xlu0 %v2238, 88
      %v2775 = vpop.permute.xlu0 %2774
      %2776 = vrot.lane.b32.xlu0 %v2239, 88
      %v2777 = vpop.permute.xlu0 %2776
      %2778 = vrot.lane.b32.xlu0 %v2241, 88
      %v2779 = vpop.permute.xlu0 %2778
      %2780 = vrot.lane.b32.xlu0 %v2243, 88
      %v2781 = vpop.permute.xlu0 %2780
      %v2782 = vsel %vm619, %v2763, %v2765
      %v2783 = vsel %vm619, %v2765, %v2767
      %v2784 = vsel %vm619, %v2767, %v2769
      %v2785 = vsel %vm619, %v2769, %v2771
      %v2786 = vsel %vm619, %v2773, %v2775
      %v2787 = vsel %vm619, %v2775, %v2777
      %v2788 = vsel %vm619, %v2777, %v2779
      %v2789 = vsel %vm619, %v2779, %v2781
      %2798 = vrot.lane.b32.xlu0 %v2242, 127
      %v2799 = vpop.permute.xlu0 %2798
      %2800 = vrot.lane.b32.xlu0 %v2243, 127
      %v2801 = vpop.permute.xlu0 %2800
      %v2802 = vsel %vm396, %v2265, %v2799
      %v2803 = vsel %vm396, %v2275, %v2801
      %2806 = vrot.lane.b32.xlu0 %v2234, 9
      %v2807 = vpop.permute.xlu0 %2806
      %2808 = vrot.lane.b32.xlu0 %v2235, 9
      %v2809 = vpop.permute.xlu0 %2808
      %2810 = vrot.lane.b32.xlu0 %v2240, 9
      %v2811 = vpop.permute.xlu0 %2810
      %2812 = vrot.lane.b32.xlu0 %v2242, 9
      %v2813 = vpop.permute.xlu0 %2812
      %2814 = vrot.lane.b32.xlu0 %v2244, 9
      %v2815 = vpop.permute.xlu0 %2814
      %2816 = vrot.lane.b32.xlu0 %v2238, 9
      %v2817 = vpop.permute.xlu0 %2816
      %2818 = vrot.lane.b32.xlu0 %v2239, 9
      %v2819 = vpop.permute.xlu0 %2818
      %2820 = vrot.lane.b32.xlu0 %v2241, 9
      %v2821 = vpop.permute.xlu0 %2820
      %2822 = vrot.lane.b32.xlu0 %v2243, 9
      %v2823 = vpop.permute.xlu0 %2822
      %2824 = vrot.lane.b32.xlu0 %v2245, 9
      %v2825 = vpop.permute.xlu0 %2824
      %v2826 = vsel %vm785, %v2807, %v2809
      %v2827 = vsel %vm785, %v2809, %v2811
      %v2828 = vsel %vm785, %v2811, %v2813
      %v2829 = vsel %vm785, %v2813, %v2815
      %v2830 = vsel %vm785, %v2817, %v2819
      %v2831 = vsel %vm785, %v2819, %v2821
      %v2832 = vsel %vm785, %v2821, %v2823
      %v2833 = vsel %vm785, %v2823, %v2825
      %2834 = vrot.lane.b32.xlu0 %v2234, 8
      %v2835 = vpop.permute.xlu0 %2834
      %2836 = vrot.lane.b32.xlu0 %v2235, 8
      %v2837 = vpop.permute.xlu0 %2836
      %2838 = vrot.lane.b32.xlu0 %v2240, 8
      %v2839 = vpop.permute.xlu0 %2838
      %2840 = vrot.lane.b32.xlu0 %v2242, 8
      %v2841 = vpop.permute.xlu0 %2840
      %2842 = vrot.lane.b32.xlu0 %v2244, 8
      %v2843 = vpop.permute.xlu0 %2842
      %2844 = vrot.lane.b32.xlu0 %v2238, 8
      %v2845 = vpop.permute.xlu0 %2844
      %2846 = vrot.lane.b32.xlu0 %v2239, 8
      %v2847 = vpop.permute.xlu0 %2846
      %2848 = vrot.lane.b32.xlu0 %v2241, 8
      %v2849 = vpop.permute.xlu0 %2848
      %2850 = vrot.lane.b32.xlu0 %v2243, 8
      %v2851 = vpop.permute.xlu0 %2850
      %2852 = vrot.lane.b32.xlu0 %v2245, 8
      %v2853 = vpop.permute.xlu0 %2852
      %v2854 = vsel %vm800, %v2835, %v2837
      %v2855 = vsel %vm800, %v2837, %v2839
      %v2856 = vsel %vm800, %v2839, %v2841
      %v2857 = vsel %vm800, %v2841, %v2843
      %v2858 = vsel %vm800, %v2845, %v2847
      %v2859 = vsel %vm800, %v2847, %v2849
      %v2860 = vsel %vm800, %v2849, %v2851
      %v2861 = vsel %vm800, %v2851, %v2853
      %2862 = vrot.lane.b32.xlu0 %v2234, 7
      %v2863 = vpop.permute.xlu0 %2862
      %2864 = vrot.lane.b32.xlu0 %v2235, 7
      %v2865 = vpop.permute.xlu0 %2864
      %2866 = vrot.lane.b32.xlu0 %v2240, 7
      %v2867 = vpop.permute.xlu0 %2866
      %2868 = vrot.lane.b32.xlu0 %v2242, 7
      %v2869 = vpop.permute.xlu0 %2868
      %2870 = vrot.lane.b32.xlu0 %v2244, 7
      %v2871 = vpop.permute.xlu0 %2870
      %2872 = vrot.lane.b32.xlu0 %v2238, 7
      %v2873 = vpop.permute.xlu0 %2872
      %2874 = vrot.lane.b32.xlu0 %v2239, 7
      %v2875 = vpop.permute.xlu0 %2874
      %2876 = vrot.lane.b32.xlu0 %v2241, 7
      %v2877 = vpop.permute.xlu0 %2876
      %2878 = vrot.lane.b32.xlu0 %v2243, 7
      %v2879 = vpop.permute.xlu0 %2878
      %2880 = vrot.lane.b32.xlu0 %v2245, 7
      %v2881 = vpop.permute.xlu0 %2880
      %v2882 = vsel %vm815, %v2863, %v2865
      %v2883 = vsel %vm815, %v2865, %v2867
      %v2884 = vsel %vm815, %v2867, %v2869
      %v2885 = vsel %vm815, %v2869, %v2871
      %v2886 = vsel %vm815, %v2873, %v2875
      %v2887 = vsel %vm815, %v2875, %v2877
      %v2888 = vsel %vm815, %v2877, %v2879
      %v2889 = vsel %vm815, %v2879, %v2881
      %2890 = vrot.lane.b32.xlu0 %v2234, 125
      %v2891 = vpop.permute.xlu0 %2890
      %2892 = vrot.lane.b32.xlu0 %v2235, 125
      %v2893 = vpop.permute.xlu0 %2892
      %2894 = vrot.lane.b32.xlu0 %v2240, 125
      %v2895 = vpop.permute.xlu0 %2894
      %2896 = vrot.lane.b32.xlu0 %v2242, 125
      %v2897 = vpop.permute.xlu0 %2896
      %2898 = vrot.lane.b32.xlu0 %v2244, 125
      %v2899 = vpop.permute.xlu0 %2898
      %2900 = vrot.lane.b32.xlu0 %v2238, 125
      %v2901 = vpop.permute.xlu0 %2900
      %2902 = vrot.lane.b32.xlu0 %v2239, 125
      %v2903 = vpop.permute.xlu0 %2902
      %2904 = vrot.lane.b32.xlu0 %v2241, 125
      %v2905 = vpop.permute.xlu0 %2904
      %2906 = vrot.lane.b32.xlu0 %v2243, 125
      %v2907 = vpop.permute.xlu0 %2906
      %2908 = vrot.lane.b32.xlu0 %v2245, 125
      %v2909 = vpop.permute.xlu0 %2908
      %v2910 = vsel %vm830, %v2891, %v2893
      %v2911 = vsel %vm830, %v2893, %v2895
      %v2912 = vsel %vm830, %v2895, %v2897
      %v2913 = vsel %vm830, %v2897, %v2899
      %v2914 = vsel %vm830, %v2901, %v2903
      %v2915 = vsel %vm830, %v2903, %v2905
      %v2916 = vsel %vm830, %v2905, %v2907
      %v2917 = vsel %vm830, %v2907, %v2909
      %2918 = vrot.lane.b32.xlu0 %v2234, 124
      %v2919 = vpop.permute.xlu0 %2918
      %2920 = vrot.lane.b32.xlu0 %v2235, 124
      %v2921 = vpop.permute.xlu0 %2920
      %2922 = vrot.lane.b32.xlu0 %v2240, 124
      %v2923 = vpop.permute.xlu0 %2922
      %2924 = vrot.lane.b32.xlu0 %v2242, 124
      %v2925 = vpop.permute.xlu0 %2924
      %2926 = vrot.lane.b32.xlu0 %v2244, 124
      %v2927 = vpop.permute.xlu0 %2926
      %2928 = vrot.lane.b32.xlu0 %v2238, 124
      %v2929 = vpop.permute.xlu0 %2928
      %2930 = vrot.lane.b32.xlu0 %v2239, 124
      %v2931 = vpop.permute.xlu0 %2930
      %2932 = vrot.lane.b32.xlu0 %v2241, 124
      %v2933 = vpop.permute.xlu0 %2932
      %2934 = vrot.lane.b32.xlu0 %v2243, 124
      %v2935 = vpop.permute.xlu0 %2934
      %2936 = vrot.lane.b32.xlu0 %v2245, 124
      %v2937 = vpop.permute.xlu0 %2936
      %v2938 = vsel %vm845, %v2919, %v2921
      %v2939 = vsel %vm845, %v2921, %v2923
      %v2940 = vsel %vm845, %v2923, %v2925
      %v2941 = vsel %vm845, %v2925, %v2927
      %v2942 = vsel %vm845, %v2929, %v2931
      %v2943 = vsel %vm845, %v2931, %v2933
      %v2944 = vsel %vm845, %v2933, %v2935
      %v2945 = vsel %vm845, %v2935, %v2937
      %2946 = vrot.lane.b32.xlu0 %v2234, 123
      %v2947 = vpop.permute.xlu0 %2946
      %2948 = vrot.lane.b32.xlu0 %v2235, 123
      %v2949 = vpop.permute.xlu0 %2948
      %2950 = vrot.lane.b32.xlu0 %v2240, 123
      %v2951 = vpop.permute.xlu0 %2950
      %2952 = vrot.lane.b32.xlu0 %v2242, 123
      %v2953 = vpop.permute.xlu0 %2952
      %2954 = vrot.lane.b32.xlu0 %v2244, 123
      %v2955 = vpop.permute.xlu0 %2954
      %2956 = vrot.lane.b32.xlu0 %v2238, 123
      %v2957 = vpop.permute.xlu0 %2956
      %2958 = vrot.lane.b32.xlu0 %v2239, 123
      %v2959 = vpop.permute.xlu0 %2958
      %2960 = vrot.lane.b32.xlu0 %v2241, 123
      %v2961 = vpop.permute.xlu0 %2960
      %2962 = vrot.lane.b32.xlu0 %v2243, 123
      %v2963 = vpop.permute.xlu0 %2962
      %2964 = vrot.lane.b32.xlu0 %v2245, 123
      %v2965 = vpop.permute.xlu0 %2964
      %v2966 = vsel %vm860, %v2947, %v2949
      %v2967 = vsel %vm860, %v2949, %v2951
      %v2968 = vsel %vm860, %v2951, %v2953
      %v2969 = vsel %vm860, %v2953, %v2955
      %v2970 = vsel %vm860, %v2957, %v2959
      %v2971 = vsel %vm860, %v2959, %v2961
      %v2972 = vsel %vm860, %v2961, %v2963
      %v2973 = vsel %vm860, %v2963, %v2965
      %2974 = vrot.lane.b32.xlu0 %v2234, 113
      %v2975 = vpop.permute.xlu0 %2974
      %2976 = vrot.lane.b32.xlu0 %v2235, 113
      %v2977 = vpop.permute.xlu0 %2976
      %2978 = vrot.lane.b32.xlu0 %v2240, 113
      %v2979 = vpop.permute.xlu0 %2978
      %2980 = vrot.lane.b32.xlu0 %v2242, 113
      %v2981 = vpop.permute.xlu0 %2980
      %2982 = vrot.lane.b32.xlu0 %v2244, 113
      %v2983 = vpop.permute.xlu0 %2982
      %2984 = vrot.lane.b32.xlu0 %v2238, 113
      %v2985 = vpop.permute.xlu0 %2984
      %2986 = vrot.lane.b32.xlu0 %v2239, 113
      %v2987 = vpop.permute.xlu0 %2986
      %2988 = vrot.lane.b32.xlu0 %v2241, 113
      %v2989 = vpop.permute.xlu0 %2988
      %2990 = vrot.lane.b32.xlu0 %v2243, 113
      %v2991 = vpop.permute.xlu0 %2990
      %2992 = vrot.lane.b32.xlu0 %v2245, 113
      %v2993 = vpop.permute.xlu0 %2992
      %v2994 = vsel %vm875, %v2975, %v2977
      %v2995 = vsel %vm875, %v2977, %v2979
      %v2996 = vsel %vm875, %v2979, %v2981
      %v2997 = vsel %vm875, %v2981, %v2983
      %v2998 = vsel %vm875, %v2985, %v2987
      %v2999 = vsel %vm875, %v2987, %v2989
      %v3000 = vsel %vm875, %v2989, %v2991
      %v3001 = vsel %vm875, %v2991, %v2993
      %3002 = vrot.lane.b32.xlu0 %v2244, 112
      %v3003 = vpop.permute.xlu0 %3002
      %3004 = vrot.lane.b32.xlu0 %v2245, 112
      %v3005 = vpop.permute.xlu0 %3004
      %v3006 = vsel %vm529, %v2555, %v3003
      %v3007 = vsel %vm529, %v2565, %v3005
      %3008 = vrot.lane.b32.xlu0 %v2244, 111
      %v3009 = vpop.permute.xlu0 %3008
      %3010 = vrot.lane.b32.xlu0 %v2245, 111
      %v3011 = vpop.permute.xlu0 %3010
      %v3012 = vsel %vm544, %v2591, %v3009
      %v3013 = vsel %vm544, %v2601, %v3011
      %3014 = vrot.lane.b32.xlu0 %v2233, 87
      %v3015 = vpop.permute.xlu0 %3014
      %3016 = vrot.lane.b32.xlu0 %v2234, 87
      %v3017 = vpop.permute.xlu0 %3016
      %3018 = vrot.lane.b32.xlu0 %v2235, 87
      %v3019 = vpop.permute.xlu0 %3018
      %3020 = vrot.lane.b32.xlu0 %v2240, 87
      %v3021 = vpop.permute.xlu0 %3020
      %3022 = vrot.lane.b32.xlu0 %v2242, 87
      %v3023 = vpop.permute.xlu0 %3022
      %3024 = vrot.lane.b32.xlu0 %v2237, 87
      %v3025 = vpop.permute.xlu0 %3024
      %3026 = vrot.lane.b32.xlu0 %v2238, 87
      %v3027 = vpop.permute.xlu0 %3026
      %3028 = vrot.lane.b32.xlu0 %v2239, 87
      %v3029 = vpop.permute.xlu0 %3028
      %3030 = vrot.lane.b32.xlu0 %v2241, 87
      %v3031 = vpop.permute.xlu0 %3030
      %3032 = vrot.lane.b32.xlu0 %v2243, 87
      %v3033 = vpop.permute.xlu0 %3032
      %3034 = vrot.lane.b32.xlu0 %v2277, 87
      %v3035 = vpop.permute.xlu0 %3034
      %3036 = vrot.lane.b32.xlu0 %v2278, 87
      %v3037 = vpop.permute.xlu0 %3036
      %3038 = vrot.lane.b32.xlu0 %v2279, 87
      %v3039 = vpop.permute.xlu0 %3038
      %3040 = vrot.lane.b32.xlu0 %v2802, 87
      %v3041 = vpop.permute.xlu0 %3040
      %3042 = vrot.lane.b32.xlu0 %v2799, 87
      %v3043 = vpop.permute.xlu0 %3042
      %3044 = vrot.lane.b32.xlu0 %v2281, 87
      %v3045 = vpop.permute.xlu0 %3044
      %3046 = vrot.lane.b32.xlu0 %v2282, 87
      %v3047 = vpop.permute.xlu0 %3046
      %3048 = vrot.lane.b32.xlu0 %v2283, 87
      %v3049 = vpop.permute.xlu0 %3048
      %3050 = vrot.lane.b32.xlu0 %v2803, 87
      %v3051 = vpop.permute.xlu0 %3050
      %3052 = vrot.lane.b32.xlu0 %v2801, 87
      %v3053 = vpop.permute.xlu0 %3052
      %3054 = vrot.lane.b32.xlu0 %v2807, 87
      %v3055 = vpop.permute.xlu0 %3054
      %3056 = vrot.lane.b32.xlu0 %v2826, 87
      %v3057 = vpop.permute.xlu0 %3056
      %3058 = vrot.lane.b32.xlu0 %v2827, 87
      %v3059 = vpop.permute.xlu0 %3058
      %3060 = vrot.lane.b32.xlu0 %v2828, 87
      %v3061 = vpop.permute.xlu0 %3060
      %3062 = vrot.lane.b32.xlu0 %v2829, 87
      %v3063 = vpop.permute.xlu0 %3062
      %3064 = vrot.lane.b32.xlu0 %v2817, 87
      %v3065 = vpop.permute.xlu0 %3064
      %3066 = vrot.lane.b32.xlu0 %v2830, 87
      %v3067 = vpop.permute.xlu0 %3066
      %3068 = vrot.lane.b32.xlu0 %v2831, 87
      %v3069 = vpop.permute.xlu0 %3068
      %3070 = vrot.lane.b32.xlu0 %v2832, 87
      %v3071 = vpop.permute.xlu0 %3070
      %3072 = vrot.lane.b32.xlu0 %v2833, 87
      %v3073 = vpop.permute.xlu0 %3072
      %3074 = vrot.lane.b32.xlu0 %v2835, 87
      %v3075 = vpop.permute.xlu0 %3074
      %3076 = vrot.lane.b32.xlu0 %v2854, 87
      %v3077 = vpop.permute.xlu0 %3076
      %3078 = vrot.lane.b32.xlu0 %v2855, 87
      %v3079 = vpop.permute.xlu0 %3078
      %3080 = vrot.lane.b32.xlu0 %v2856, 87
      %v3081 = vpop.permute.xlu0 %3080
      %3082 = vrot.lane.b32.xlu0 %v2857, 87
      %v3083 = vpop.permute.xlu0 %3082
      %3084 = vrot.lane.b32.xlu0 %v2845, 87
      %v3085 = vpop.permute.xlu0 %3084
      %3086 = vrot.lane.b32.xlu0 %v2858, 87
      %v3087 = vpop.permute.xlu0 %3086
      %3088 = vrot.lane.b32.xlu0 %v2859, 87
      %v3089 = vpop.permute.xlu0 %3088
      %3090 = vrot.lane.b32.xlu0 %v2860, 87
      %v3091 = vpop.permute.xlu0 %3090
      %3092 = vrot.lane.b32.xlu0 %v2861, 87
      %v3093 = vpop.permute.xlu0 %3092
      %3094 = vrot.lane.b32.xlu0 %v2863, 87
      %v3095 = vpop.permute.xlu0 %3094
      %3096 = vrot.lane.b32.xlu0 %v2882, 87
      %v3097 = vpop.permute.xlu0 %3096
      %3098 = vrot.lane.b32.xlu0 %v2883, 87
      %v3099 = vpop.permute.xlu0 %3098
      %3100 = vrot.lane.b32.xlu0 %v2884, 87
      %v3101 = vpop.permute.xlu0 %3100
      %3102 = vrot.lane.b32.xlu0 %v2885, 87
      %v3103 = vpop.permute.xlu0 %3102
      %3104 = vrot.lane.b32.xlu0 %v2873, 87
      %v3105 = vpop.permute.xlu0 %3104
      %3106 = vrot.lane.b32.xlu0 %v2886, 87
      %v3107 = vpop.permute.xlu0 %3106
      %3108 = vrot.lane.b32.xlu0 %v2887, 87
      %v3109 = vpop.permute.xlu0 %3108
      %3110 = vrot.lane.b32.xlu0 %v2888, 87
      %v3111 = vpop.permute.xlu0 %3110
      %3112 = vrot.lane.b32.xlu0 %v2889, 87
      %v3113 = vpop.permute.xlu0 %3112
      %3114 = vrot.lane.b32.xlu0 %v2910, 87
      %v3115 = vpop.permute.xlu0 %3114
      %3116 = vrot.lane.b32.xlu0 %v2911, 87
      %v3117 = vpop.permute.xlu0 %3116
      %3118 = vrot.lane.b32.xlu0 %v2912, 87
      %v3119 = vpop.permute.xlu0 %3118
      %3120 = vrot.lane.b32.xlu0 %v2913, 87
      %v3121 = vpop.permute.xlu0 %3120
      %3122 = vrot.lane.b32.xlu0 %v2899, 87
      %v3123 = vpop.permute.xlu0 %3122
      %3124 = vrot.lane.b32.xlu0 %v2914, 87
      %v3125 = vpop.permute.xlu0 %3124
      %3126 = vrot.lane.b32.xlu0 %v2915, 87
      %v3127 = vpop.permute.xlu0 %3126
      %3128 = vrot.lane.b32.xlu0 %v2916, 87
      %v3129 = vpop.permute.xlu0 %3128
      %3130 = vrot.lane.b32.xlu0 %v2917, 87
      %v3131 = vpop.permute.xlu0 %3130
      %3132 = vrot.lane.b32.xlu0 %v2909, 87
      %v3133 = vpop.permute.xlu0 %3132
      %3134 = vrot.lane.b32.xlu0 %v2938, 87
      %v3135 = vpop.permute.xlu0 %3134
      %3136 = vrot.lane.b32.xlu0 %v2939, 87
      %v3137 = vpop.permute.xlu0 %3136
      %3138 = vrot.lane.b32.xlu0 %v2940, 87
      %v3139 = vpop.permute.xlu0 %3138
      %3140 = vrot.lane.b32.xlu0 %v2941, 87
      %v3141 = vpop.permute.xlu0 %3140
      %3142 = vrot.lane.b32.xlu0 %v2927, 87
      %v3143 = vpop.permute.xlu0 %3142
      %3144 = vrot.lane.b32.xlu0 %v2942, 87
      %v3145 = vpop.permute.xlu0 %3144
      %3146 = vrot.lane.b32.xlu0 %v2943, 87
      %v3147 = vpop.permute.xlu0 %3146
      %3148 = vrot.lane.b32.xlu0 %v2944, 87
      %v3149 = vpop.permute.xlu0 %3148
      %3150 = vrot.lane.b32.xlu0 %v2945, 87
      %v3151 = vpop.permute.xlu0 %3150
      %3152 = vrot.lane.b32.xlu0 %v2937, 87
      %v3153 = vpop.permute.xlu0 %3152
      %3154 = vrot.lane.b32.xlu0 %v2966, 87
      %v3155 = vpop.permute.xlu0 %3154
      %3156 = vrot.lane.b32.xlu0 %v2967, 87
      %v3157 = vpop.permute.xlu0 %3156
      %3158 = vrot.lane.b32.xlu0 %v2968, 87
      %v3159 = vpop.permute.xlu0 %3158
      %3160 = vrot.lane.b32.xlu0 %v2969, 87
      %v3161 = vpop.permute.xlu0 %3160
      %3162 = vrot.lane.b32.xlu0 %v2955, 87
      %v3163 = vpop.permute.xlu0 %3162
      %3164 = vrot.lane.b32.xlu0 %v2970, 87
      %v3165 = vpop.permute.xlu0 %3164
      %3166 = vrot.lane.b32.xlu0 %v2971, 87
      %v3167 = vpop.permute.xlu0 %3166
      %3168 = vrot.lane.b32.xlu0 %v2972, 87
      %v3169 = vpop.permute.xlu0 %3168
      %3170 = vrot.lane.b32.xlu0 %v2973, 87
      %v3171 = vpop.permute.xlu0 %3170
      %3172 = vrot.lane.b32.xlu0 %v2965, 87
      %v3173 = vpop.permute.xlu0 %3172
      %3174 = vrot.lane.b32.xlu0 %v2994, 87
      %v3175 = vpop.permute.xlu0 %3174
      %3176 = vrot.lane.b32.xlu0 %v2995, 87
      %v3177 = vpop.permute.xlu0 %3176
      %3178 = vrot.lane.b32.xlu0 %v2996, 87
      %v3179 = vpop.permute.xlu0 %3178
      %3180 = vrot.lane.b32.xlu0 %v2997, 87
      %v3181 = vpop.permute.xlu0 %3180
      %3182 = vrot.lane.b32.xlu0 %v2983, 87
      %v3183 = vpop.permute.xlu0 %3182
      %3184 = vrot.lane.b32.xlu0 %v2998, 87
      %v3185 = vpop.permute.xlu0 %3184
      %3186 = vrot.lane.b32.xlu0 %v2999, 87
      %v3187 = vpop.permute.xlu0 %3186
      %3188 = vrot.lane.b32.xlu0 %v3000, 87
      %v3189 = vpop.permute.xlu0 %3188
      %3190 = vrot.lane.b32.xlu0 %v3001, 87
      %v3191 = vpop.permute.xlu0 %3190
      %3192 = vrot.lane.b32.xlu0 %v2993, 87
      %v3193 = vpop.permute.xlu0 %3192
      %3194 = vrot.lane.b32.xlu0 %v2567, 87
      %v3195 = vpop.permute.xlu0 %3194
      %3196 = vrot.lane.b32.xlu0 %v2568, 87
      %v3197 = vpop.permute.xlu0 %3196
      %3198 = vrot.lane.b32.xlu0 %v2569, 87
      %v3199 = vpop.permute.xlu0 %3198
      %3200 = vrot.lane.b32.xlu0 %v3006, 87
      %v3201 = vpop.permute.xlu0 %3200
      %3202 = vrot.lane.b32.xlu0 %v3003, 87
      %v3203 = vpop.permute.xlu0 %3202
      %3204 = vrot.lane.b32.xlu0 %v2571, 87
      %v3205 = vpop.permute.xlu0 %3204
      %3206 = vrot.lane.b32.xlu0 %v2572, 87
      %v3207 = vpop.permute.xlu0 %3206
      %3208 = vrot.lane.b32.xlu0 %v2573, 87
      %v3209 = vpop.permute.xlu0 %3208
      %3210 = vrot.lane.b32.xlu0 %v3007, 87
      %v3211 = vpop.permute.xlu0 %3210
      %3212 = vrot.lane.b32.xlu0 %v3005, 87
      %v3213 = vpop.permute.xlu0 %3212
      %3214 = vrot.lane.b32.xlu0 %v2603, 87
      %v3215 = vpop.permute.xlu0 %3214
      %3216 = vrot.lane.b32.xlu0 %v2604, 87
      %v3217 = vpop.permute.xlu0 %3216
      %3218 = vrot.lane.b32.xlu0 %v2605, 87
      %v3219 = vpop.permute.xlu0 %3218
      %3220 = vrot.lane.b32.xlu0 %v3012, 87
      %v3221 = vpop.permute.xlu0 %3220
      %3222 = vrot.lane.b32.xlu0 %v3009, 87
      %v3223 = vpop.permute.xlu0 %3222
      %3224 = vrot.lane.b32.xlu0 %v2607, 87
      %v3225 = vpop.permute.xlu0 %3224
      %3226 = vrot.lane.b32.xlu0 %v2608, 87
      %v3227 = vpop.permute.xlu0 %3226
      %3228 = vrot.lane.b32.xlu0 %v2609, 87
      %v3229 = vpop.permute.xlu0 %3228
      %3230 = vrot.lane.b32.xlu0 %v3013, 87
      %v3231 = vpop.permute.xlu0 %3230
      %3232 = vrot.lane.b32.xlu0 %v3011, 87
      %v3233 = vpop.permute.xlu0 %3232
      %v3234 = vsel %vm1068, %v3015, %v3017
      %v3235 = vsel %vm1068, %v3017, %v3019
      %v3236 = vsel %vm1068, %v3019, %v3021
      %v3237 = vsel %vm1068, %v3021, %v3023
      %v3238 = vsel %vm1068, %v3025, %v3027
      %v3239 = vsel %vm1068, %v3027, %v3029
      %v3240 = vsel %vm1068, %v3029, %v3031
      %v3241 = vsel %vm1068, %v3031, %v3033
      %v3242 = vsel %vm1068, %v3035, %v3037
      %v3243 = vsel %vm1068, %v3037, %v3039
      %v3244 = vsel %vm1068, %v3039, %v3041
      %v3245 = vsel %vm1068, %v3041, %v3043
      %v3246 = vsel %vm1068, %v3045, %v3047
      %v3247 = vsel %vm1068, %v3047, %v3049
      %v3248 = vsel %vm1068, %v3049, %v3051
      %v3249 = vsel %vm1068, %v3051, %v3053
      %v3250 = vsel %vm1068, %v3055, %v3057
      %v3251 = vsel %vm1068, %v3057, %v3059
      %v3252 = vsel %vm1068, %v3059, %v3061
      %v3253 = vsel %vm1068, %v3061, %v3063
      %v3254 = vsel %vm1068, %v3065, %v3067
      %v3255 = vsel %vm1068, %v3067, %v3069
      %v3256 = vsel %vm1068, %v3069, %v3071
      %v3257 = vsel %vm1068, %v3071, %v3073
      %v3258 = vsel %vm1068, %v3075, %v3077
      %v3259 = vsel %vm1068, %v3077, %v3079
      %v3260 = vsel %vm1068, %v3079, %v3081
      %v3261 = vsel %vm1068, %v3081, %v3083
      %v3262 = vsel %vm1068, %v3085, %v3087
      %v3263 = vsel %vm1068, %v3087, %v3089
      %v3264 = vsel %vm1068, %v3089, %v3091
      %v3265 = vsel %vm1068, %v3091, %v3093
      %v3266 = vsel %vm1068, %v3095, %v3097
      %v3267 = vsel %vm1068, %v3097, %v3099
      %v3268 = vsel %vm1068, %v3099, %v3101
      %v3269 = vsel %vm1068, %v3101, %v3103
      %v3270 = vsel %vm1068, %v3105, %v3107
      %v3271 = vsel %vm1068, %v3107, %v3109
      %v3272 = vsel %vm1068, %v3109, %v3111
      %v3273 = vsel %vm1068, %v3111, %v3113
      %v3274 = vsel %vm1068, %v3115, %v3117
      %v3275 = vsel %vm1068, %v3117, %v3119
      %v3276 = vsel %vm1068, %v3119, %v3121
      %v3277 = vsel %vm1068, %v3121, %v3123
      %v3278 = vsel %vm1068, %v3125, %v3127
      %v3279 = vsel %vm1068, %v3127, %v3129
      %v3280 = vsel %vm1068, %v3129, %v3131
      %v3281 = vsel %vm1068, %v3131, %v3133
      %v3282 = vsel %vm1068, %v3135, %v3137
      %v3283 = vsel %vm1068, %v3137, %v3139
      %v3284 = vsel %vm1068, %v3139, %v3141
      %v3285 = vsel %vm1068, %v3141, %v3143
      %v3286 = vsel %vm1068, %v3145, %v3147
      %v3287 = vsel %vm1068, %v3147, %v3149
      %v3288 = vsel %vm1068, %v3149, %v3151
      %v3289 = vsel %vm1068, %v3151, %v3153
      %v3290 = vsel %vm1068, %v3155, %v3157
      %v3291 = vsel %vm1068, %v3157, %v3159
      %v3292 = vsel %vm1068, %v3159, %v3161
      %v3293 = vsel %vm1068, %v3161, %v3163
      %v3294 = vsel %vm1068, %v3165, %v3167
      %v3295 = vsel %vm1068, %v3167, %v3169
      %v3296 = vsel %vm1068, %v3169, %v3171
      %v3297 = vsel %vm1068, %v3171, %v3173
      %v3298 = vsel %vm1068, %v3175, %v3177
      %v3299 = vsel %vm1068, %v3177, %v3179
      %v3300 = vsel %vm1068, %v3179, %v3181
      %v3301 = vsel %vm1068, %v3181, %v3183
      %v3302 = vsel %vm1068, %v3185, %v3187
      %v3303 = vsel %vm1068, %v3187, %v3189
      %v3304 = vsel %vm1068, %v3189, %v3191
      %v3305 = vsel %vm1068, %v3191, %v3193
      %v3306 = vsel %vm1068, %v3195, %v3197
      %v3307 = vsel %vm1068, %v3197, %v3199
      %v3308 = vsel %vm1068, %v3199, %v3201
      %v3309 = vsel %vm1068, %v3201, %v3203
      %v3310 = vsel %vm1068, %v3205, %v3207
      %v3311 = vsel %vm1068, %v3207, %v3209
      %v3312 = vsel %vm1068, %v3209, %v3211
      %v3313 = vsel %vm1068, %v3211, %v3213
      %v3314 = vsel %vm1068, %v3215, %v3217
      %v3315 = vsel %vm1068, %v3217, %v3219
      %v3316 = vsel %vm1068, %v3219, %v3221
      %v3317 = vsel %vm1068, %v3221, %v3223
      %v3318 = vsel %vm1068, %v3225, %v3227
      %v3319 = vsel %vm1068, %v3227, %v3229
      %v3320 = vsel %vm1068, %v3229, %v3231
      %v3321 = vsel %vm1068, %v3231, %v3233
      %3411 = vset.pattern.permute.xlu0 0
      %3412 = vperm.xlu0 %3411, %v364
      %v3413 = vpop.permute.xlu0 %3412
      %v3417 = vcombine.high %v358, %v358
      %v3419 = vunpack.c.l.s4 1983009808
      %v3420 = vunpack.c.0.s8 %v3419
      %v3421 = vlaneseq
      %v3422 = vshrl.u32 %v3421, 7
      %v3423 = vsub.s32 %v3420, %v3422
      %v3424 = vrot.slane %v358, %v3423
      %v3426 = vunpack.c.l.s4 1983009808
      %v3427 = vunpack.c.0.s8 %v3426
      %v3428 = vlaneseq
      %v3429 = vshrl.u32 %v3428, 7
      %v3430 = vsub.s32 %v3427, %v3429
      %v3431 = vrot.slane %v3417, %v3430
      %v3432 = vcombine.high %v3424, %v3424
      %v3433 = vcombine.high %v3431, %v3431
      %v3434 = vcombine.high %v359, %v359
      %v3436 = vunpack.c.l.s4 1983009808
      %v3437 = vunpack.c.0.s8 %v3436
      %v3438 = vlaneseq
      %v3439 = vshrl.u32 %v3438, 7
      %v3440 = vsub.s32 %v3437, %v3439
      %v3441 = vrot.slane %v359, %v3440
      %v3443 = vunpack.c.l.s4 1983009808
      %v3444 = vunpack.c.0.s8 %v3443
      %v3445 = vlaneseq
      %v3446 = vshrl.u32 %v3445, 7
      %v3447 = vsub.s32 %v3444, %v3446
      %v3448 = vrot.slane %v3434, %v3447
      %v3449 = vcombine.high %v3441, %v3441
      %vm3456 = vcmask 785408
      %v3458 = vsel %vm3456, %v3448, 0
      %3460 = vmatprep.subr.bf16.mxu0 %v2233
      %3461 = vmatpush1.bf16.msra.mxu0 %v2232
      %3462 = vmatprep.subr.bf16.mxu0 %v2237
      %3463 = vmatpush1.bf16.msra.mxu0 %v2236
      %3464 = vmatprep.subr.bf16.mxu0 %v2277
      %3465 = vmatpush1.bf16.msra.mxu0 %v2276
      %3466 = vmatprep.subr.bf16.mxu0 %v2281
      %3467 = vmatpush1.bf16.msra.mxu0 %v2280
      %3468 = vmatprep.subr.bf16.mxu0 %v2313
      %3469 = vmatpush1.bf16.msra.mxu0 %v2312
      %3470 = vmatprep.subr.bf16.mxu0 %v2317
      %3471 = vmatpush1.bf16.msra.mxu0 %v2316
      %3472 = vmatprep.subr.bf16.mxu0 %v2349
      %3473 = vmatpush1.bf16.msra.mxu0 %v2348
      %3474 = vmatprep.subr.bf16.mxu0 %v2353
      %3475 = vmatpush1.bf16.msra.mxu0 %v2352
      %3476 = vmatprep.subr.bf16.mxu0 %v2385
      %3477 = vmatpush1.bf16.msra.mxu0 %v2384
      %3478 = vmatprep.subr.bf16.mxu0 %v2389
      %3479 = vmatpush1.bf16.msra.mxu0 %v2388
      %3480 = vmatprep.subr.bf16.mxu0 %v2421
      %3481 = vmatpush1.bf16.msra.mxu0 %v2420
      %3482 = vmatprep.subr.bf16.mxu0 %v2425
      %3483 = vmatpush1.bf16.msra.mxu0 %v2424
      %3484 = vmatprep.subr.bf16.mxu0 %v2457
      %3485 = vmatpush1.bf16.msra.mxu0 %v2456
      %3486 = vmatprep.subr.bf16.mxu0 %v2461
      %3487 = vmatpush1.bf16.msra.mxu0 %v2460
      %3488 = vmatprep.subr.bf16.mxu0 %v2493
      %3489 = vmatpush1.bf16.msra.mxu0 %v2492
      %3490 = vmatprep.subr.bf16.mxu0 %v2497
      %3491 = vmatpush1.bf16.msra.mxu0 %v2496
      %3492 = vmatprep.mubr.bf16.mxu0 %v3432
      %3493 = vmatmul.mubr.bf16.gmra.mrb[0].mxu0 %v3424
      %v3494 = vpop.f32.mrb[0].mxu0
      %v3495 = vadd.f32 %v3413, %v3494
      %v3496 = vpop.f32.mrb[0].mxu0
      %v3497 = vadd.f32 %v3413, %v3496
      %v3498 = vpop.f32.mrb[0].mxu0
      %v3499 = vpop.f32.mrb[0].mxu0
      %3500 = vdwg.mxu0
      %3501 = vmatprep.subr.bf16.mxu0 %v2529
      %3502 = vmatpush1.bf16.msra.mxu0 %v2528
      %3503 = vmatprep.subr.bf16.mxu0 %v2533
      %3504 = vmatpush1.bf16.msra.mxu0 %v2532
      %3505 = vmatprep.subr.bf16.mxu0 %v2567
      %3506 = vmatpush1.bf16.msra.mxu0 %v2566
      %3507 = vmatprep.subr.bf16.mxu0 %v2571
      %3508 = vmatpush1.bf16.msra.mxu0 %v2570
      %3509 = vmatprep.subr.bf16.mxu0 %v2603
      %3510 = vmatpush1.bf16.msra.mxu0 %v2602
      %3511 = vmatprep.subr.bf16.mxu0 %v2607
      %3512 = vmatpush1.bf16.msra.mxu0 %v2606
      %3513 = vmatprep.subr.bf16.mxu0 %v2639
      %3514 = vmatpush1.bf16.msra.mxu0 %v2638
      %3515 = vmatprep.subr.bf16.mxu0 %v2643
      %3516 = vmatpush1.bf16.msra.mxu0 %v2642
      %3517 = vmatprep.subr.bf16.mxu0 %v2675
      %3518 = vmatpush1.bf16.msra.mxu0 %v2674
      %3519 = vmatprep.subr.bf16.mxu0 %v2679
      %3520 = vmatpush1.bf16.msra.mxu0 %v2678
      %3521 = vmatprep.subr.bf16.mxu0 %v2711
      %3522 = vmatpush1.bf16.msra.mxu0 %v2710
      %3523 = vmatprep.subr.bf16.mxu0 %v2715
      %3524 = vmatpush1.bf16.msra.mxu0 %v2714
      %3525 = vmatprep.subr.bf16.mxu0 %v2747
      %3526 = vmatpush1.bf16.msra.mxu0 %v2746
      %3527 = vmatprep.subr.bf16.mxu0 %v2751
      %3528 = vmatpush1.bf16.msra.mxu0 %v2750
      %3529 = vmatprep.subr.bf16.mxu0 %v2783
      %3530 = vmatpush1.bf16.msra.mxu0 %v2782
      %3531 = vmatprep.subr.bf16.mxu0 %v2787
      %3532 = vmatpush1.bf16.msra.mxu0 %v2786
      %3533 = vmatprep.mubr.bf16.mxu0 %v3433
      %3534 = vmatmul.mubr.bf16.gmra.mrb[0].mxu0 %v3431
      %v3535 = vpop.f32.mrb[0].mxu0
      %v3536 = vadd.f32 %v3495, %v3535
      %v3537 = vpop.f32.mrb[0].mxu0
      %v3538 = vadd.f32 %v3497, %v3537
      %v3539 = vpop.f32.mrb[0].mxu0
      %v3540 = vpop.f32.mrb[0].mxu0
      %3541 = vdwg.mxu0
      %3542 = vmatprep.subr.bf16.mxu0 %v3235
      %3543 = vmatpush1.bf16.msra.mxu0 %v3234
      %3544 = vmatprep.subr.bf16.mxu0 %v3239
      %3545 = vmatpush1.bf16.msra.mxu0 %v3238
      %3546 = vmatprep.subr.bf16.mxu0 %v3243
      %3547 = vmatpush1.bf16.msra.mxu0 %v3242
      %3548 = vmatprep.subr.bf16.mxu0 %v3247
      %3549 = vmatpush1.bf16.msra.mxu0 %v3246
      %3550 = vmatprep.subr.bf16.mxu0 %v3251
      %3551 = vmatpush1.bf16.msra.mxu0 %v3250
      %3552 = vmatprep.subr.bf16.mxu0 %v3255
      %3553 = vmatpush1.bf16.msra.mxu0 %v3254
      %3554 = vmatprep.subr.bf16.mxu0 %v3259
      %3555 = vmatpush1.bf16.msra.mxu0 %v3258
      %3556 = vmatprep.subr.bf16.mxu0 %v3263
      %3557 = vmatpush1.bf16.msra.mxu0 %v3262
      %3558 = vmatprep.subr.bf16.mxu0 %v3267
      %3559 = vmatpush1.bf16.msra.mxu0 %v3266
      %3560 = vmatprep.subr.bf16.mxu0 %v3271
      %3561 = vmatpush1.bf16.msra.mxu0 %v3270
      %3562 = vmatprep.subr.bf16.mxu0 %v3275
      %3563 = vmatpush1.bf16.msra.mxu0 %v3274
      %3564 = vmatprep.subr.bf16.mxu0 %v3279
      %3565 = vmatpush1.bf16.msra.mxu0 %v3278
      %3566 = vmatprep.subr.bf16.mxu0 %v3283
      %3567 = vmatpush1.bf16.msra.mxu0 %v3282
      %3568 = vmatprep.subr.bf16.mxu0 %v3287
      %3569 = vmatpush1.bf16.msra.mxu0 %v3286
      %3570 = vmatprep.subr.bf16.mxu0 %v3291
      %3571 = vmatpush1.bf16.msra.mxu0 %v3290
      %3572 = vmatprep.subr.bf16.mxu0 %v3295
      %3573 = vmatpush1.bf16.msra.mxu0 %v3294
      %3574 = vmatprep.mubr.bf16.mxu0 %v3449
      %3575 = vmatmul.mubr.bf16.gmra.mrb[0].mxu0 %v3441
      %v3576 = vpop.f32.mrb[0].mxu0
      %v3577 = vadd.f32 %v3536, %v3576
      %v3578 = vpop.f32.mrb[0].mxu0
      %v3579 = vadd.f32 %v3538, %v3578
      %v3580 = vpop.f32.mrb[0].mxu0
      %v3581 = vpop.f32.mrb[0].mxu0
      %3582 = vdwg.mxu0
      %3583 = vmatprep.subr.bf16.mxu0 %v3299
      %3584 = vmatpush1.bf16.msra.mxu0 %v3298
      %3585 = vmatprep.subr.bf16.mxu0 %v3303
      %3586 = vmatpush1.bf16.msra.mxu0 %v3302
      %3587 = vmatprep.subr.bf16.mxu0 %v3307
      %3588 = vmatpush1.bf16.msra.mxu0 %v3306
      %3589 = vmatprep.subr.bf16.mxu0 %v3311
      %3590 = vmatpush1.bf16.msra.mxu0 %v3310
      %3591 = vmatprep.subr.bf16.mxu0 %v3315
      %3592 = vmatpush1.bf16.msra.mxu0 %v3314
      %3593 = vmatprep.subr.bf16.mxu0 %v3319
      %3594 = vmatpush1.bf16.msra.mxu0 %v3318
      %3595 = vmatprep.subr.bf16.mxu0 0
      %3596 = vmatpush1.bf16.msra.mxu0 0
      %3597 = vmatprep.subr.bf16.mxu0 0
      %3598 = vmatpush1.bf16.msra.mxu0 0
      %3599 = vmatprep.subr.bf16.mxu0 0
      %3600 = vmatpush1.bf16.msra.mxu0 0
      %3601 = vmatprep.subr.bf16.mxu0 0
      %3602 = vmatpush1.bf16.msra.mxu0 0
      %3603 = vmatprep.subr.bf16.mxu0 0
      %3604 = vmatpush1.bf16.msra.mxu0 0
      %3605 = vmatprep.subr.bf16.mxu0 0
      %3606 = vmatpush1.bf16.msra.mxu0 0
      %3607 = vmatprep.subr.bf16.mxu0 0
      %3608 = vmatpush1.bf16.msra.mxu0 0
      %3609 = vmatprep.subr.bf16.mxu0 0
      %3610 = vmatpush1.bf16.msra.mxu0 0
      %3611 = vmatprep.subr.bf16.mxu0 0
      %3612 = vmatpush1.bf16.msra.mxu0 0
      %3613 = vmatprep.subr.bf16.mxu0 0
      %3614 = vmatpush1.bf16.msra.mxu0 0
      %3615 = vmatprep.mubr.bf16.mxu0 0
      %3616 = vmatmul.mubr.bf16.gmra.mrb[0].mxu0 %v3458
      %v3617 = vpop.f32.mrb[0].mxu0
      %v3618 = vadd.f32 %v3577, %v3617
      %v3619 = vpop.f32.mrb[0].mxu0
      %v3620 = vadd.f32 %v3579, %v3619
      %v3621 = vpop.f32.mrb[0].mxu0
      %v3622 = vpop.f32.mrb[0].mxu0
      %3623 = vdwg.mxu0
      %3624 = vmatprep.subr.bf16.mxu0 %v2235
      %3625 = vmatpush1.bf16.msra.mxu0 %v2234
      %3626 = vmatprep.subr.bf16.mxu0 %v2239
      %3627 = vmatpush1.bf16.msra.mxu0 %v2238
      %3628 = vmatprep.subr.bf16.mxu0 %v2279
      %3629 = vmatpush1.bf16.msra.mxu0 %v2278
      %3630 = vmatprep.subr.bf16.mxu0 %v2283
      %3631 = vmatpush1.bf16.msra.mxu0 %v2282
      %3632 = vmatprep.subr.bf16.mxu0 %v2315
      %3633 = vmatpush1.bf16.msra.mxu0 %v2314
      %3634 = vmatprep.subr.bf16.mxu0 %v2319
      %3635 = vmatpush1.bf16.msra.mxu0 %v2318
      %3636 = vmatprep.subr.bf16.mxu0 %v2351
      %3637 = vmatpush1.bf16.msra.mxu0 %v2350
      %3638 = vmatprep.subr.bf16.mxu0 %v2355
      %3639 = vmatpush1.bf16.msra.mxu0 %v2354
      %3640 = vmatprep.subr.bf16.mxu0 %v2387
      %3641 = vmatpush1.bf16.msra.mxu0 %v2386
      %3642 = vmatprep.subr.bf16.mxu0 %v2391
      %3643 = vmatpush1.bf16.msra.mxu0 %v2390
      %3644 = vmatprep.subr.bf16.mxu0 %v2423
      %3645 = vmatpush1.bf16.msra.mxu0 %v2422
      %3646 = vmatprep.subr.bf16.mxu0 %v2427
      %3647 = vmatpush1.bf16.msra.mxu0 %v2426
      %3648 = vmatprep.subr.bf16.mxu0 %v2459
      %3649 = vmatpush1.bf16.msra.mxu0 %v2458
      %3650 = vmatprep.subr.bf16.mxu0 %v2463
      %3651 = vmatpush1.bf16.msra.mxu0 %v2462
      %3652 = vmatprep.subr.bf16.mxu0 %v2495
      %3653 = vmatpush1.bf16.msra.mxu0 %v2494
      %3654 = vmatprep.subr.bf16.mxu0 %v2499
      %3655 = vmatpush1.bf16.msra.mxu0 %v2498
      %3656 = vmatprep.mubr.bf16.mxu0 %v3432
      %3657 = vmatmul.mubr.bf16.gmra.mrb[0].mxu0 %v3424
      %v3658 = vpop.f32.mrb[0].mxu0
      %v3659 = vadd.f32 %v3413, %v3658
      %v3660 = vpop.f32.mrb[0].mxu0
      %v3661 = vadd.f32 %v3413, %v3660
      %v3662 = vpop.f32.mrb[0].mxu0
      %v3663 = vpop.f32.mrb[0].mxu0
      %3664 = vdwg.mxu0
      %3665 = vmatprep.subr.bf16.mxu0 %v2531
      %3666 = vmatpush1.bf16.msra.mxu0 %v2530
      %3667 = vmatprep.subr.bf16.mxu0 %v2535
      %3668 = vmatpush1.bf16.msra.mxu0 %v2534
      %3669 = vmatprep.subr.bf16.mxu0 %v2569
      %3670 = vmatpush1.bf16.msra.mxu0 %v2568
      %3671 = vmatprep.subr.bf16.mxu0 %v2573
      %3672 = vmatpush1.bf16.msra.mxu0 %v2572
      %3673 = vmatprep.subr.bf16.mxu0 %v2605
      %3674 = vmatpush1.bf16.msra.mxu0 %v2604
      %3675 = vmatprep.subr.bf16.mxu0 %v2609
      %3676 = vmatpush1.bf16.msra.mxu0 %v2608
      %3677 = vmatprep.subr.bf16.mxu0 %v2641
      %3678 = vmatpush1.bf16.msra.mxu0 %v2640
      %3679 = vmatprep.subr.bf16.mxu0 %v2645
      %3680 = vmatpush1.bf16.msra.mxu0 %v2644
      %3681 = vmatprep.subr.bf16.mxu0 %v2677
      %3682 = vmatpush1.bf16.msra.mxu0 %v2676
      %3683 = vmatprep.subr.bf16.mxu0 %v2681
      %3684 = vmatpush1.bf16.msra.mxu0 %v2680
      %3685 = vmatprep.subr.bf16.mxu0 %v2713
      %3686 = vmatpush1.bf16.msra.mxu0 %v2712
      %3687 = vmatprep.subr.bf16.mxu0 %v2717
      %3688 = vmatpush1.bf16.msra.mxu0 %v2716
      %3689 = vmatprep.subr.bf16.mxu0 %v2749
      %3690 = vmatpush1.bf16.msra.mxu0 %v2748
      %3691 = vmatprep.subr.bf16.mxu0 %v2753
      %3692 = vmatpush1.bf16.msra.mxu0 %v2752
      %3693 = vmatprep.subr.bf16.mxu0 %v2785
      %3694 = vmatpush1.bf16.msra.mxu0 %v2784
      %3695 = vmatprep.subr.bf16.mxu0 %v2789
      %3696 = vmatpush1.bf16.msra.mxu0 %v2788
      %3697 = vmatprep.mubr.bf16.mxu0 %v3433
      %3698 = vmatmul.mubr.bf16.gmra.mrb[0].mxu0 %v3431
      %v3699 = vpop.f32.mrb[0].mxu0
      %v3700 = vadd.f32 %v3659, %v3699
      %v3701 = vpop.f32.mrb[0].mxu0
      %v3702 = vadd.f32 %v3661, %v3701
      %v3703 = vpop.f32.mrb[0].mxu0
      %v3704 = vpop.f32.mrb[0].mxu0
      %3705 = vdwg.mxu0
      %3706 = vmatprep.subr.bf16.mxu0 %v3237
      %3707 = vmatpush1.bf16.msra.mxu0 %v3236
      %3708 = vmatprep.subr.bf16.mxu0 %v3241
      %3709 = vmatpush1.bf16.msra.mxu0 %v3240
      %3710 = vmatprep.subr.bf16.mxu0 %v3245
      %3711 = vmatpush1.bf16.msra.mxu0 %v3244
      %3712 = vmatprep.subr.bf16.mxu0 %v3249
      %3713 = vmatpush1.bf16.msra.mxu0 %v3248
      %3714 = vmatprep.subr.bf16.mxu0 %v3253
      %3715 = vmatpush1.bf16.msra.mxu0 %v3252
      %3716 = vmatprep.subr.bf16.mxu0 %v3257
      %3717 = vmatpush1.bf16.msra.mxu0 %v3256
      %3718 = vmatprep.subr.bf16.mxu0 %v3261
      %3719 = vmatpush1.bf16.msra.mxu0 %v3260
      %3720 = vmatprep.subr.bf16.mxu0 %v3265
      %3721 = vmatpush1.bf16.msra.mxu0 %v3264
      %3722 = vmatprep.subr.bf16.mxu0 %v3269
      %3723 = vmatpush1.bf16.msra.mxu0 %v3268
      %3724 = vmatprep.subr.bf16.mxu0 %v3273
      %3725 = vmatpush1.bf16.msra.mxu0 %v3272
      %3726 = vmatprep.subr.bf16.mxu0 %v3277
      %3727 = vmatpush1.bf16.msra.mxu0 %v3276
      %3728 = vmatprep.subr.bf16.mxu0 %v3281
      %3729 = vmatpush1.bf16.msra.mxu0 %v3280
      %3730 = vmatprep.subr.bf16.mxu0 %v3285
      %3731 = vmatpush1.bf16.msra.mxu0 %v3284
      %3732 = vmatprep.subr.bf16.mxu0 %v3289
      %3733 = vmatpush1.bf16.msra.mxu0 %v3288
      %3734 = vmatprep.subr.bf16.mxu0 %v3293
      %3735 = vmatpush1.bf16.msra.mxu0 %v3292
      %3736 = vmatprep.subr.bf16.mxu0 %v3297
      %3737 = vmatpush1.bf16.msra.mxu0 %v3296
      %3738 = vmatprep.mubr.bf16.mxu0 %v3449
      %3739 = vmatmul.mubr.bf16.gmra.mrb[0].mxu0 %v3441
      %v3740 = vpop.f32.mrb[0].mxu0
      %v3741 = vadd.f32 %v3700, %v3740
      %v3742 = vpop.f32.mrb[0].mxu0
      %v3743 = vadd.f32 %v3702, %v3742
      %v3744 = vpop.f32.mrb[0].mxu0
      %v3745 = vpop.f32.mrb[0].mxu0
      %3746 = vdwg.mxu0
      %3747 = vmatprep.subr.bf16.mxu0 %v3301
      %3748 = vmatpush1.bf16.msra.mxu0 %v3300
      %3749 = vmatprep.subr.bf16.mxu0 %v3305
      %3750 = vmatpush1.bf16.msra.mxu0 %v3304
      %3751 = vmatprep.subr.bf16.mxu0 %v3309
      %3752 = vmatpush1.bf16.msra.mxu0 %v3308
      %3753 = vmatprep.subr.bf16.mxu0 %v3313
      %3754 = vmatpush1.bf16.msra.mxu0 %v3312
      %3755 = vmatprep.subr.bf16.mxu0 %v3317
      %3756 = vmatpush1.bf16.msra.mxu0 %v3316
      %3757 = vmatprep.subr.bf16.mxu0 %v3321
      %3758 = vmatpush1.bf16.msra.mxu0 %v3320
      %3759 = vmatprep.subr.bf16.mxu0 0
      %3760 = vmatpush1.bf16.msra.mxu0 0
      %3761 = vmatprep.subr.bf16.mxu0 0
      %3762 = vmatpush1.bf16.msra.mxu0 0
      %3763 = vmatprep.subr.bf16.mxu0 0
      %3764 = vmatpush1.bf16.msra.mxu0 0
      %3765 = vmatprep.subr.bf16.mxu0 0
      %3766 = vmatpush1.bf16.msra.mxu0 0
      %3767 = vmatprep.subr.bf16.mxu0 0
      %3768 = vmatpush1.bf16.msra.mxu0 0
      %3769 = vmatprep.subr.bf16.mxu0 0
      %3770 = vmatpush1.bf16.msra.mxu0 0
      %3771 = vmatprep.subr.bf16.mxu0 0
      %3772 = vmatpush1.bf16.msra.mxu0 0
      %3773 = vmatprep.subr.bf16.mxu0 0
      %3774 = vmatpush1.bf16.msra.mxu0 0
      %3775 = vmatprep.subr.bf16.mxu0 0
      %3776 = vmatpush1.bf16.msra.mxu0 0
      %3777 = vmatprep.subr.bf16.mxu0 0
      %3778 = vmatpush1.bf16.msra.mxu0 0
      %3779 = vmatprep.mubr.bf16.mxu0 0
      %3780 = vmatmul.mubr.bf16.gmra.mrb[0].mxu0 %v3458
      %v3781 = vpop.f32.mrb[0].mxu0
      %v3782 = vadd.f32 %v3741, %v3781
      %v3783 = vpop.f32.mrb[0].mxu0
      %v3784 = vadd.f32 %v3743, %v3783
      %v3785 = vpop.f32.mrb[0].mxu0
      %v3786 = vpop.f32.mrb[0].mxu0
      %3787 = vdwg.mxu0
      %v3788 = vpack.c.bf16 %v3618, %v3618
      %v3789 = vpack.c.bf16 %v3620, %v3620
      %v3790 = vpack.c.bf16 %v3782, %v3782
      %v3791 = vpack.c.bf16 %v3784, %v3784
      %v3796 = vcombine.low %v3788, %v3789
      %v3797 = vcombine.low %v3790, %v3791
      %v3799 = vunpack.c.l.s4 1983009808
      %v3800 = vunpack.c.0.s8 %v3799
      %v3801 = vlaneseq
      %v3802 = vshrl.u32 %v3801, 7
      %v3803 = vsub.s32 %v3800, %v3802
      %v3804 = vrot.slane %v3796, %v3803
      %v3806 = vunpack.c.l.s4 1983009808
      %v3807 = vunpack.c.0.s8 %v3806
      %v3808 = vlaneseq
      %v3809 = vshrl.u32 %v3808, 7
      %v3810 = vsub.s32 %v3807, %v3809
      %v3811 = vrot.slane %v3797, %v3810
      %v3812 = vcombine.low %v3804, %v3811
      %vm3814 = vcmask 1041408
      %vm3815 = vsmask.f32 1280
      %vm3816 = vmand %vm3814, %vm3815
      %vm3817 = vcmask 1043458
      %vm3818 = vsmask.f32 3328
      %vm3819 = vmand %vm3817, %vm3818
      %vm3820 = vmor %vm3819, %vm3816
      %vm3821 = vcmask 1045508
      %vm3822 = vsmask.f32 5376
      %vm3823 = vmand %vm3821, %vm3822
      %vm3824 = vmor %vm3823, %vm3820
      %vm3825 = vcmask 1047558
      %vm3826 = vsmask.f32 7424
      %vm3827 = vmand %vm3825, %vm3826
      %vm3828 = vmor %vm3827, %vm3824
      %v3829 = vld [vmem:[%s344] sm:$0xff]
      %v3830 = vsel %vm3828, %v3812, %v3829
      %3831 = vst [vmem:[%s344] sm:$0xff] %v3830
      %v3832 = vld [vmem:[%s335 + $0x1] sm:$0x1f]
      %v3833 = vlaneseq
      %v3834 = vand.u32 %v3833, 127
      %v3835 = vadd.s32 %v3834, 128
      %v3836 = vadd.s32 %v3834, 256
      %v3837 = vadd.s32 %v3834, 384
      %vm3838 = vcmp.lt.s32.totalorder %v3834, 576
      %vm3839 = vcmp.lt.s32.totalorder %v3835, 576
      %vm3840 = vcmp.lt.s32.totalorder %v3836, 576
      %vm3841 = vcmp.lt.s32.totalorder %v3837, 576
      %v3842 = vsel %vm3838, 1, 0
      %v3843 = vsel %vm3839, 1, 0
      %v3844 = vsel %vm3840, 1, 0
      %v3845 = vsel %vm3841, 1, 0
      %v3846 = vcvt.s32.f32 %v3842
      %v3847 = vcvt.s32.f32 %v3843
      %v3848 = vcvt.s32.f32 %v3844
      %v3849 = vcvt.s32.f32 %v3845
      %v3854 = vcombine.low %v3846, %v3847
      %v3855 = vcombine.low %v3848, %v3849
      %v3857 = vunpack.c.l.s4 1966171168
      %v3858 = vunpack.c.0.s8 %v3857
      %v3859 = vlaneseq
      %v3860 = vshrl.u32 %v3859, 7
      %v3861 = vsub.s32 %v3858, %v3860
      %v3862 = vrot.slane %v3854, %v3861
      %v3864 = vunpack.c.l.s4 1966171168
      %v3865 = vunpack.c.0.s8 %v3864
      %v3866 = vlaneseq
      %v3867 = vshrl.u32 %v3866, 7
      %v3868 = vsub.s32 %v3865, %v3867
      %v3869 = vrot.slane %v3855, %v3868
      %v3870 = vcombine.low %v3862, %v3869
      %v3872 = vunpack.c.l.s4 1966171168
      %v3873 = vunpack.c.0.s8 %v3872
      %v3874 = vlaneseq
      %v3875 = vshrl.u32 %v3874, 7
      %v3876 = vsub.s32 %v3873, %v3875
      %v3877 = vrot.slane %v3870, %v3876
      %3878 = vrot.lane.b32.xlu0 %v3877, 29
      %v3879 = vpop.permute.xlu0 %3878
      %v3880 = vrot.slane %v3879, 7
      %vm3881 = vcmask 236544
      %v3882 = vsel %vm3881, %v3880, %v3879
      %v3884 = vmul.f32 %v3832, %v3882
      %v3886 = vlaneseq
      %v3887 = vshrl.u32 %v3886, 7
      %v3888 = vsub.s32 0, %v3887
      %v3889 = vrot.slane %v3884, %v3888
      %v3890 = vlaneseq
      %v3891 = vshrl.u32 %v3890, 7
      %v3892 = vsub.s32 1, %v3891
      %v3893 = vrot.slane %v3884, %v3892
      %v3894 = vlaneseq
      %v3895 = vshrl.u32 %v3894, 7
      %v3896 = vsub.s32 2, %v3895
      %v3897 = vrot.slane %v3884, %v3896
      %v3898 = vlaneseq
      %v3899 = vshrl.u32 %v3898, 7
      %v3900 = vsub.s32 3, %v3899
      %v3901 = vrot.slane %v3884, %v3900
      %v3902 = vlaneseq
      %v3903 = vshrl.u32 %v3902, 7
      %v3904 = vsub.s32 4, %v3903
      %v3905 = vrot.slane %v3884, %v3904
      %3906 = vrot.lane.b32.xlu0 %v3889, 99
      %v3907 = vpop.permute.xlu0 %3906
      %3908 = vrot.lane.b32.xlu0 %v3893, 99
      %v3909 = vpop.permute.xlu0 %3908
      %3910 = vrot.lane.b32.xlu0 %v3897, 99
      %v3911 = vpop.permute.xlu0 %3910
      %3912 = vrot.lane.b32.xlu0 %v3901, 99
      %v3913 = vpop.permute.xlu0 %3912
      %3914 = vrot.lane.b32.xlu0 %v3905, 99
      %v3915 = vpop.permute.xlu0 %3914
      %vm3916 = vcmask 809984
      %v3917 = vsel %vm3916, %v3907, %v3909
      %v3918 = vsel %vm3916, %v3909, %v3911
      %v3919 = vsel %vm3916, %v3911, %v3913
      %v3920 = vsel %vm3916, %v3913, %v3915
      %v3925 = vmul.f32 %v3618, %v3917
      %v3926 = vmul.f32 %v3620, %v3918
      %v3927 = vmul.f32 %v3782, %v3919
      %v3928 = vmul.f32 %v3784, %v3920
      %vm3929 = vcmask 1042432
      %v3930 = vsel %vm3929, %v3925, 0.0
      %v3931 = vsel %vm3929, %v3926, 0.0
      %v3932 = vadd.f32 %v3930, %v3931
      %v3933 = vsel %vm3929, %v3927, 0.0
      %v3934 = vadd.f32 %v3932, %v3933
      %v3935 = vsel %vm3929, %v3928, 0.0
      %v3936 = vadd.f32 %v3934, %v3935
      %3937 = vadd.xlane.f32.xlu0 %v3936
      %v3938 = vpop.xlane.xlu0 %3937
      %v3939 = vadd.f32 %v3938, 0.0
      %v3940 = vmul.f32 %v3925, %v3618
      %v3941 = vmul.f32 %v3926, %v3620
      %v3942 = vmul.f32 %v3927, %v3782
      %v3943 = vmul.f32 %v3928, %v3784
      %v3944 = vsel %vm3929, %v3940, 0.0
      %v3945 = vsel %vm3929, %v3941, 0.0
      %v3946 = vadd.f32 %v3944, %v3945
      %v3947 = vsel %vm3929, %v3942, 0.0
      %v3948 = vadd.f32 %v3946, %v3947
      %v3949 = vsel %vm3929, %v3943, 0.0
      %v3950 = vadd.f32 %v3948, %v3949
      %3951 = vadd.xlane.f32.xlu0 %v3950
      %v3952 = vpop.xlane.xlu0 %3951
      %v3953 = vadd.f32 %v3952, 0.0
      %v3954 = vld [vmem:[#allocation2 + $0x20] sm:$0xff]
      %v3955 = vld [vmem:[#allocation2 + $0x60] sm:$0xff]
      %v3956 = vld [vmem:[#allocation2 + $0x28] sm:$0xff]
      %v3957 = vld [vmem:[#allocation2 + $0x68] sm:$0xff]
      %v3958 = vld [vmem:[#allocation2 + $0x30] sm:$0xff]
      %v3959 = vld [vmem:[#allocation2 + $0x70] sm:$0xff]
      %v3960 = vld [vmem:[#allocation2 + $0x30] sm:$0xff]
      %v3961 = vld [vmem:[#allocation2 + $0x38] sm:$0xff]
      %v3962 = vld [vmem:[#allocation2 + $0x70] sm:$0xff]
      %v3963 = vld [vmem:[#allocation2 + $0x78] sm:$0xff]
      %3968 = vrot.lane.b32.xlu0 %v3954, 127
      %v3969 = vpop.permute.xlu0 %3968
      %3970 = vrot.lane.b32.xlu0 %v3956, 127
      %v3971 = vpop.permute.xlu0 %3970
      %3972 = vrot.lane.b32.xlu0 %v3955, 127
      %v3973 = vpop.permute.xlu0 %3972
      %3974 = vrot.lane.b32.xlu0 %v3957, 127
      %v3975 = vpop.permute.xlu0 %3974
      %v3976 = vsel %vm396, %v3969, %v3971
      %v3977 = vsel %vm396, %v3973, %v3975
      %3980 = vrot.lane.b32.xlu0 %v3954, 126
      %v3981 = vpop.permute.xlu0 %3980
      %3982 = vrot.lane.b32.xlu0 %v3956, 126
      %v3983 = vpop.permute.xlu0 %3982
      %3984 = vrot.lane.b32.xlu0 %v3955, 126
      %v3985 = vpop.permute.xlu0 %3984
      %3986 = vrot.lane.b32.xlu0 %v3957, 126
      %v3987 = vpop.permute.xlu0 %3986
      %v3988 = vsel %vm411, %v3981, %v3983
      %v3989 = vsel %vm411, %v3985, %v3987
      %3992 = vrot.lane.b32.xlu0 %v3954, 116
      %v3993 = vpop.permute.xlu0 %3992
      %3994 = vrot.lane.b32.xlu0 %v3956, 116
      %v3995 = vpop.permute.xlu0 %3994
      %3996 = vrot.lane.b32.xlu0 %v3955, 116
      %v3997 = vpop.permute.xlu0 %3996
      %3998 = vrot.lane.b32.xlu0 %v3957, 116
      %v3999 = vpop.permute.xlu0 %3998
      %v4000 = vsel %vm426, %v3993, %v3995
      %v4001 = vsel %vm426, %v3997, %v3999
      %4004 = vrot.lane.b32.xlu0 %v3954, 115
      %v4005 = vpop.permute.xlu0 %4004
      %4006 = vrot.lane.b32.xlu0 %v3956, 115
      %v4007 = vpop.permute.xlu0 %4006
      %4008 = vrot.lane.b32.xlu0 %v3955, 115
      %v4009 = vpop.permute.xlu0 %4008
      %4010 = vrot.lane.b32.xlu0 %v3957, 115
      %v4011 = vpop.permute.xlu0 %4010
      %v4012 = vsel %vm441, %v4005, %v4007
      %v4013 = vsel %vm441, %v4009, %v4011
      %4016 = vrot.lane.b32.xlu0 %v3954, 114
      %v4017 = vpop.permute.xlu0 %4016
      %4018 = vrot.lane.b32.xlu0 %v3956, 114
      %v4019 = vpop.permute.xlu0 %4018
      %4020 = vrot.lane.b32.xlu0 %v3955, 114
      %v4021 = vpop.permute.xlu0 %4020
      %4022 = vrot.lane.b32.xlu0 %v3957, 114
      %v4023 = vpop.permute.xlu0 %4022
      %v4024 = vsel %vm456, %v4017, %v4019
      %v4025 = vsel %vm456, %v4021, %v4023
      %4028 = vrot.lane.b32.xlu0 %v3954, 104
      %v4029 = vpop.permute.xlu0 %4028
      %4030 = vrot.lane.b32.xlu0 %v3956, 104
      %v4031 = vpop.permute.xlu0 %4030
      %4032 = vrot.lane.b32.xlu0 %v3955, 104
      %v4033 = vpop.permute.xlu0 %4032
      %4034 = vrot.lane.b32.xlu0 %v3957, 104
      %v4035 = vpop.permute.xlu0 %4034
      %v4036 = vsel %vm471, %v4029, %v4031
      %v4037 = vsel %vm471, %v4033, %v4035
      %4040 = vrot.lane.b32.xlu0 %v3954, 103
      %v4041 = vpop.permute.xlu0 %4040
      %4042 = vrot.lane.b32.xlu0 %v3956, 103
      %v4043 = vpop.permute.xlu0 %4042
      %4044 = vrot.lane.b32.xlu0 %v3955, 103
      %v4045 = vpop.permute.xlu0 %4044
      %4046 = vrot.lane.b32.xlu0 %v3957, 103
      %v4047 = vpop.permute.xlu0 %4046
      %v4048 = vsel %vm486, %v4041, %v4043
      %v4049 = vsel %vm486, %v4045, %v4047
      %4052 = vrot.lane.b32.xlu0 %v3954, 102
      %v4053 = vpop.permute.xlu0 %4052
      %4054 = vrot.lane.b32.xlu0 %v3956, 102
      %v4055 = vpop.permute.xlu0 %4054
      %4056 = vrot.lane.b32.xlu0 %v3955, 102
      %v4057 = vpop.permute.xlu0 %4056
      %4058 = vrot.lane.b32.xlu0 %v3957, 102
      %v4059 = vpop.permute.xlu0 %4058
      %v4060 = vsel %vm501, %v4053, %v4055
      %v4061 = vsel %vm501, %v4057, %v4059
      %4066 = vrot.lane.b32.xlu0 %v3956, 112
      %v4067 = vpop.permute.xlu0 %4066
      %4068 = vrot.lane.b32.xlu0 %v3958, 112
      %v4069 = vpop.permute.xlu0 %4068
      %4070 = vrot.lane.b32.xlu0 %v3957, 112
      %v4071 = vpop.permute.xlu0 %4070
      %4072 = vrot.lane.b32.xlu0 %v3959, 112
      %v4073 = vpop.permute.xlu0 %4072
      %v4074 = vsel %vm529, %v4067, %v4069
      %v4075 = vsel %vm529, %v4071, %v4073
      %4078 = vrot.lane.b32.xlu0 %v3956, 111
      %v4079 = vpop.permute.xlu0 %4078
      %4080 = vrot.lane.b32.xlu0 %v3958, 111
      %v4081 = vpop.permute.xlu0 %4080
      %4082 = vrot.lane.b32.xlu0 %v3957, 111
      %v4083 = vpop.permute.xlu0 %4082
      %4084 = vrot.lane.b32.xlu0 %v3959, 111
      %v4085 = vpop.permute.xlu0 %4084
      %v4086 = vsel %vm544, %v4079, %v4081
      %v4087 = vsel %vm544, %v4083, %v4085
      %4090 = vrot.lane.b32.xlu0 %v3956, 110
      %v4091 = vpop.permute.xlu0 %4090
      %4092 = vrot.lane.b32.xlu0 %v3958, 110
      %v4093 = vpop.permute.xlu0 %4092
      %4094 = vrot.lane.b32.xlu0 %v3957, 110
      %v4095 = vpop.permute.xlu0 %4094
      %4096 = vrot.lane.b32.xlu0 %v3959, 110
      %v4097 = vpop.permute.xlu0 %4096
      %v4098 = vsel %vm559, %v4091, %v4093
      %v4099 = vsel %vm559, %v4095, %v4097
      %4102 = vrot.lane.b32.xlu0 %v3956, 100
      %v4103 = vpop.permute.xlu0 %4102
      %4104 = vrot.lane.b32.xlu0 %v3958, 100
      %v4105 = vpop.permute.xlu0 %4104
      %4106 = vrot.lane.b32.xlu0 %v3957, 100
      %v4107 = vpop.permute.xlu0 %4106
      %4108 = vrot.lane.b32.xlu0 %v3959, 100
      %v4109 = vpop.permute.xlu0 %4108
      %v4110 = vsel %vm574, %v4103, %v4105
      %v4111 = vsel %vm574, %v4107, %v4109
      %4114 = vrot.lane.b32.xlu0 %v3956, 99
      %v4115 = vpop.permute.xlu0 %4114
      %4116 = vrot.lane.b32.xlu0 %v3958, 99
      %v4117 = vpop.permute.xlu0 %4116
      %4118 = vrot.lane.b32.xlu0 %v3957, 99
      %v4119 = vpop.permute.xlu0 %4118
      %4120 = vrot.lane.b32.xlu0 %v3959, 99
      %v4121 = vpop.permute.xlu0 %4120
      %v4122 = vsel %vm589, %v4115, %v4117
      %v4123 = vsel %vm589, %v4119, %v4121
      %4126 = vrot.lane.b32.xlu0 %v3956, 98
      %v4127 = vpop.permute.xlu0 %4126
      %4128 = vrot.lane.b32.xlu0 %v3958, 98
      %v4129 = vpop.permute.xlu0 %4128
      %4130 = vrot.lane.b32.xlu0 %v3957, 98
      %v4131 = vpop.permute.xlu0 %4130
      %4132 = vrot.lane.b32.xlu0 %v3959, 98
      %v4133 = vpop.permute.xlu0 %4132
      %v4134 = vsel %vm604, %v4127, %v4129
      %v4135 = vsel %vm604, %v4131, %v4133
      %4138 = vrot.lane.b32.xlu0 %v3956, 88
      %v4139 = vpop.permute.xlu0 %4138
      %4140 = vrot.lane.b32.xlu0 %v3958, 88
      %v4141 = vpop.permute.xlu0 %4140
      %4142 = vrot.lane.b32.xlu0 %v3957, 88
      %v4143 = vpop.permute.xlu0 %4142
      %4144 = vrot.lane.b32.xlu0 %v3959, 88
      %v4145 = vpop.permute.xlu0 %4144
      %v4146 = vsel %vm619, %v4139, %v4141
      %v4147 = vsel %vm619, %v4143, %v4145
      %4150 = vrot.lane.b32.xlu0 %v3958, 127
      %v4151 = vpop.permute.xlu0 %4150
      %4152 = vrot.lane.b32.xlu0 %v3959, 127
      %v4153 = vpop.permute.xlu0 %4152
      %v4154 = vsel %vm396, %v3971, %v4151
      %v4155 = vsel %vm396, %v3975, %v4153
      %4160 = vrot.lane.b32.xlu0 %v3960, 9
      %v4161 = vpop.permute.xlu0 %4160
      %4162 = vrot.lane.b32.xlu0 %v3961, 9
      %v4163 = vpop.permute.xlu0 %4162
      %4164 = vrot.lane.b32.xlu0 %v3962, 9
      %v4165 = vpop.permute.xlu0 %4164
      %4166 = vrot.lane.b32.xlu0 %v3963, 9
      %v4167 = vpop.permute.xlu0 %4166
      %v4168 = vsel %vm785, %v4161, %v4163
      %v4169 = vsel %vm785, %v4165, %v4167
      %4170 = vrot.lane.b32.xlu0 %v3960, 8
      %v4171 = vpop.permute.xlu0 %4170
      %4172 = vrot.lane.b32.xlu0 %v3961, 8
      %v4173 = vpop.permute.xlu0 %4172
      %4174 = vrot.lane.b32.xlu0 %v3962, 8
      %v4175 = vpop.permute.xlu0 %4174
      %4176 = vrot.lane.b32.xlu0 %v3963, 8
      %v4177 = vpop.permute.xlu0 %4176
      %v4178 = vsel %vm800, %v4171, %v4173
      %v4179 = vsel %vm800, %v4175, %v4177
      %4180 = vrot.lane.b32.xlu0 %v3960, 7
      %v4181 = vpop.permute.xlu0 %4180
      %4182 = vrot.lane.b32.xlu0 %v3961, 7
      %v4183 = vpop.permute.xlu0 %4182
      %4184 = vrot.lane.b32.xlu0 %v3962, 7
      %v4185 = vpop.permute.xlu0 %4184
      %4186 = vrot.lane.b32.xlu0 %v3963, 7
      %v4187 = vpop.permute.xlu0 %4186
      %v4188 = vsel %vm815, %v4181, %v4183
      %v4189 = vsel %vm815, %v4185, %v4187
      %4190 = vrot.lane.b32.xlu0 %v3960, 125
      %v4191 = vpop.permute.xlu0 %4190
      %4192 = vrot.lane.b32.xlu0 %v3961, 125
      %v4193 = vpop.permute.xlu0 %4192
      %4194 = vrot.lane.b32.xlu0 %v3962, 125
      %v4195 = vpop.permute.xlu0 %4194
      %4196 = vrot.lane.b32.xlu0 %v3963, 125
      %v4197 = vpop.permute.xlu0 %4196
      %v4198 = vsel %vm830, %v4191, %v4193
      %v4199 = vsel %vm830, %v4195, %v4197
      %4200 = vrot.lane.b32.xlu0 %v3960, 124
      %v4201 = vpop.permute.xlu0 %4200
      %4202 = vrot.lane.b32.xlu0 %v3961, 124
      %v4203 = vpop.permute.xlu0 %4202
      %4204 = vrot.lane.b32.xlu0 %v3962, 124
      %v4205 = vpop.permute.xlu0 %4204
      %4206 = vrot.lane.b32.xlu0 %v3963, 124
      %v4207 = vpop.permute.xlu0 %4206
      %v4208 = vsel %vm845, %v4201, %v4203
      %v4209 = vsel %vm845, %v4205, %v4207
      %4210 = vrot.lane.b32.xlu0 %v3960, 123
      %v4211 = vpop.permute.xlu0 %4210
      %4212 = vrot.lane.b32.xlu0 %v3961, 123
      %v4213 = vpop.permute.xlu0 %4212
      %4214 = vrot.lane.b32.xlu0 %v3962, 123
      %v4215 = vpop.permute.xlu0 %4214
      %4216 = vrot.lane.b32.xlu0 %v3963, 123
      %v4217 = vpop.permute.xlu0 %4216
      %v4218 = vsel %vm860, %v4211, %v4213
      %v4219 = vsel %vm860, %v4215, %v4217
      %4220 = vrot.lane.b32.xlu0 %v3960, 113
      %v4221 = vpop.permute.xlu0 %4220
      %4222 = vrot.lane.b32.xlu0 %v3961, 113
      %v4223 = vpop.permute.xlu0 %4222
      %4224 = vrot.lane.b32.xlu0 %v3962, 113
      %v4225 = vpop.permute.xlu0 %4224
      %4226 = vrot.lane.b32.xlu0 %v3963, 113
      %v4227 = vpop.permute.xlu0 %4226
      %v4228 = vsel %vm875, %v4221, %v4223
      %v4229 = vsel %vm875, %v4225, %v4227
      %4230 = vrot.lane.b32.xlu0 %v3960, 112
      %v4231 = vpop.permute.xlu0 %4230
      %4232 = vrot.lane.b32.xlu0 %v3961, 112
      %v4233 = vpop.permute.xlu0 %4232
      %4234 = vrot.lane.b32.xlu0 %v3962, 112
      %v4235 = vpop.permute.xlu0 %4234
      %4236 = vrot.lane.b32.xlu0 %v3963, 112
      %v4237 = vpop.permute.xlu0 %4236
      %v4238 = vsel %vm529, %v4231, %v4233
      %v4239 = vsel %vm529, %v4235, %v4237
      %4240 = vrot.lane.b32.xlu0 %v3960, 111
      %v4241 = vpop.permute.xlu0 %4240
      %4242 = vrot.lane.b32.xlu0 %v3961, 111
      %v4243 = vpop.permute.xlu0 %4242
      %4244 = vrot.lane.b32.xlu0 %v3962, 111
      %v4245 = vpop.permute.xlu0 %4244
      %4246 = vrot.lane.b32.xlu0 %v3963, 111
      %v4247 = vpop.permute.xlu0 %4246
      %v4248 = vsel %vm544, %v4241, %v4243
      %v4249 = vsel %vm544, %v4245, %v4247
      %4250 = vrot.lane.b32.xlu0 %v3956, 87
      %v4251 = vpop.permute.xlu0 %4250
      %4252 = vrot.lane.b32.xlu0 %v3958, 87
      %v4253 = vpop.permute.xlu0 %4252
      %4254 = vrot.lane.b32.xlu0 %v3957, 87
      %v4255 = vpop.permute.xlu0 %4254
      %4256 = vrot.lane.b32.xlu0 %v3959, 87
      %v4257 = vpop.permute.xlu0 %4256
      %4258 = vrot.lane.b32.xlu0 %v4154, 87
      %v4259 = vpop.permute.xlu0 %4258
      %4260 = vrot.lane.b32.xlu0 %v4151, 87
      %v4261 = vpop.permute.xlu0 %4260
      %4262 = vrot.lane.b32.xlu0 %v4155, 87
      %v4263 = vpop.permute.xlu0 %4262
      %4264 = vrot.lane.b32.xlu0 %v4153, 87
      %v4265 = vpop.permute.xlu0 %4264
      %4266 = vrot.lane.b32.xlu0 %v4161, 87
      %v4267 = vpop.permute.xlu0 %4266
      %4268 = vrot.lane.b32.xlu0 %v4168, 87
      %v4269 = vpop.permute.xlu0 %4268
      %4270 = vrot.lane.b32.xlu0 %v4165, 87
      %v4271 = vpop.permute.xlu0 %4270
      %4272 = vrot.lane.b32.xlu0 %v4169, 87
      %v4273 = vpop.permute.xlu0 %4272
      %4274 = vrot.lane.b32.xlu0 %v4171, 87
      %v4275 = vpop.permute.xlu0 %4274
      %4276 = vrot.lane.b32.xlu0 %v4178, 87
      %v4277 = vpop.permute.xlu0 %4276
      %4278 = vrot.lane.b32.xlu0 %v4175, 87
      %v4279 = vpop.permute.xlu0 %4278
      %4280 = vrot.lane.b32.xlu0 %v4179, 87
      %v4281 = vpop.permute.xlu0 %4280
      %4282 = vrot.lane.b32.xlu0 %v4181, 87
      %v4283 = vpop.permute.xlu0 %4282
      %4284 = vrot.lane.b32.xlu0 %v4188, 87
      %v4285 = vpop.permute.xlu0 %4284
      %4286 = vrot.lane.b32.xlu0 %v4185, 87
      %v4287 = vpop.permute.xlu0 %4286
      %4288 = vrot.lane.b32.xlu0 %v4189, 87
      %v4289 = vpop.permute.xlu0 %4288
      %4290 = vrot.lane.b32.xlu0 %v4198, 87
      %v4291 = vpop.permute.xlu0 %4290
      %4292 = vrot.lane.b32.xlu0 %v4193, 87
      %v4293 = vpop.permute.xlu0 %4292
      %4294 = vrot.lane.b32.xlu0 %v4199, 87
      %v4295 = vpop.permute.xlu0 %4294
      %4296 = vrot.lane.b32.xlu0 %v4197, 87
      %v4297 = vpop.permute.xlu0 %4296
      %4298 = vrot.lane.b32.xlu0 %v4208, 87
      %v4299 = vpop.permute.xlu0 %4298
      %4300 = vrot.lane.b32.xlu0 %v4203, 87
      %v4301 = vpop.permute.xlu0 %4300
      %4302 = vrot.lane.b32.xlu0 %v4209, 87
      %v4303 = vpop.permute.xlu0 %4302
      %4304 = vrot.lane.b32.xlu0 %v4207, 87
      %v4305 = vpop.permute.xlu0 %4304
      %4306 = vrot.lane.b32.xlu0 %v4218, 87
      %v4307 = vpop.permute.xlu0 %4306
      %4308 = vrot.lane.b32.xlu0 %v4213, 87
      %v4309 = vpop.permute.xlu0 %4308
      %4310 = vrot.lane.b32.xlu0 %v4219, 87
      %v4311 = vpop.permute.xlu0 %4310
      %4312 = vrot.lane.b32.xlu0 %v4217, 87
      %v4313 = vpop.permute.xlu0 %4312
      %4314 = vrot.lane.b32.xlu0 %v4228, 87
      %v4315 = vpop.permute.xlu0 %4314
      %4316 = vrot.lane.b32.xlu0 %v4223, 87
      %v4317 = vpop.permute.xlu0 %4316
      %4318 = vrot.lane.b32.xlu0 %v4229, 87
      %v4319 = vpop.permute.xlu0 %4318
      %4320 = vrot.lane.b32.xlu0 %v4227, 87
      %v4321 = vpop.permute.xlu0 %4320
      %4322 = vrot.lane.b32.xlu0 %v4238, 87
      %v4323 = vpop.permute.xlu0 %4322
      %4324 = vrot.lane.b32.xlu0 %v4233, 87
      %v4325 = vpop.permute.xlu0 %4324
      %4326 = vrot.lane.b32.xlu0 %v4239, 87
      %v4327 = vpop.permute.xlu0 %4326
      %4328 = vrot.lane.b32.xlu0 %v4237, 87
      %v4329 = vpop.permute.xlu0 %4328
      %4330 = vrot.lane.b32.xlu0 %v4248, 87
      %v4331 = vpop.permute.xlu0 %4330
      %4332 = vrot.lane.b32.xlu0 %v4243, 87
      %v4333 = vpop.permute.xlu0 %4332
      %4334 = vrot.lane.b32.xlu0 %v4249, 87
      %v4335 = vpop.permute.xlu0 %4334
      %4336 = vrot.lane.b32.xlu0 %v4247, 87
      %v4337 = vpop.permute.xlu0 %4336
      %v4338 = vsel %vm1068, %v4251, %v4253
      %v4339 = vsel %vm1068, %v4255, %v4257
      %v4340 = vsel %vm1068, %v4259, %v4261
      %v4341 = vsel %vm1068, %v4263, %v4265
      %v4342 = vsel %vm1068, %v4267, %v4269
      %v4343 = vsel %vm1068, %v4271, %v4273
      %v4344 = vsel %vm1068, %v4275, %v4277
      %v4345 = vsel %vm1068, %v4279, %v4281
      %v4346 = vsel %vm1068, %v4283, %v4285
      %v4347 = vsel %vm1068, %v4287, %v4289
      %v4348 = vsel %vm1068, %v4291, %v4293
      %v4349 = vsel %vm1068, %v4295, %v4297
      %v4350 = vsel %vm1068, %v4299, %v4301
      %v4351 = vsel %vm1068, %v4303, %v4305
      %v4352 = vsel %vm1068, %v4307, %v4309
      %v4353 = vsel %vm1068, %v4311, %v4313
      %v4354 = vsel %vm1068, %v4315, %v4317
      %v4355 = vsel %vm1068, %v4319, %v4321
      %v4356 = vsel %vm1068, %v4323, %v4325
      %v4357 = vsel %vm1068, %v4327, %v4329
      %v4358 = vsel %vm1068, %v4331, %v4333
      %v4359 = vsel %vm1068, %v4335, %v4337
      %4382 = vmatprep.subr.bf16.mxu0 0
      %4383 = vmatpush1.bf16.msra.mxu0 %v3954
      %4384 = vmatprep.subr.bf16.mxu0 0
      %4385 = vmatpush1.bf16.msra.mxu0 %v3955
      %4386 = vmatprep.subr.bf16.mxu0 0
      %4387 = vmatpush1.bf16.msra.mxu0 %v3976
      %4388 = vmatprep.subr.bf16.mxu0 0
      %4389 = vmatpush1.bf16.msra.mxu0 %v3977
      %4390 = vmatprep.subr.bf16.mxu0 0
      %4391 = vmatpush1.bf16.msra.mxu0 %v3988
      %4392 = vmatprep.subr.bf16.mxu0 0
      %4393 = vmatpush1.bf16.msra.mxu0 %v3989
      %4394 = vmatprep.subr.bf16.mxu0 0
      %4395 = vmatpush1.bf16.msra.mxu0 %v4000
      %4396 = vmatprep.subr.bf16.mxu0 0
      %4397 = vmatpush1.bf16.msra.mxu0 %v4001
      %4398 = vmatprep.subr.bf16.mxu0 0
      %4399 = vmatpush1.bf16.msra.mxu0 %v4012
      %4400 = vmatprep.subr.bf16.mxu0 0
      %4401 = vmatpush1.bf16.msra.mxu0 %v4013
      %4402 = vmatprep.subr.bf16.mxu0 0
      %4403 = vmatpush1.bf16.msra.mxu0 %v4024
      %4404 = vmatprep.subr.bf16.mxu0 0
      %4405 = vmatpush1.bf16.msra.mxu0 %v4025
      %4406 = vmatprep.subr.bf16.mxu0 0
      %4407 = vmatpush1.bf16.msra.mxu0 %v4036
      %4408 = vmatprep.subr.bf16.mxu0 0
      %4409 = vmatpush1.bf16.msra.mxu0 %v4037
      %4410 = vmatprep.subr.bf16.mxu0 0
      %4411 = vmatpush1.bf16.msra.mxu0 %v4048
      %4412 = vmatprep.subr.bf16.mxu0 0
      %4413 = vmatpush1.bf16.msra.mxu0 %v4049
      %4414 = vmatprep.mubr.bf16.mxu0 %v3432
      %4415 = vmatmul.mubr.bf16.gmra.mrb[0].mxu0 %v3424
      %v4416 = vpop.f32.mrb[0].mxu0
      %v4417 = vadd.f32 %v3413, %v4416
      %v4418 = vpop.f32.mrb[0].mxu0
      %v4419 = vpop.f32.mrb[0].mxu0
      %v4420 = vpop.f32.mrb[0].mxu0
      %4421 = vdwg.mxu0
      %4422 = vmatprep.subr.bf16.mxu0 0
      %4423 = vmatpush1.bf16.msra.mxu0 %v4060
      %4424 = vmatprep.subr.bf16.mxu0 0
      %4425 = vmatpush1.bf16.msra.mxu0 %v4061
      %4426 = vmatprep.subr.bf16.mxu0 0
      %4427 = vmatpush1.bf16.msra.mxu0 %v4074
      %4428 = vmatprep.subr.bf16.mxu0 0
      %4429 = vmatpush1.bf16.msra.mxu0 %v4075
      %4430 = vmatprep.subr.bf16.mxu0 0
      %4431 = vmatpush1.bf16.msra.mxu0 %v4086
      %4432 = vmatprep.subr.bf16.mxu0 0
      %4433 = vmatpush1.bf16.msra.mxu0 %v4087
      %4434 = vmatprep.subr.bf16.mxu0 0
      %4435 = vmatpush1.bf16.msra.mxu0 %v4098
      %4436 = vmatprep.subr.bf16.mxu0 0
      %4437 = vmatpush1.bf16.msra.mxu0 %v4099
      %4438 = vmatprep.subr.bf16.mxu0 0
      %4439 = vmatpush1.bf16.msra.mxu0 %v4110
      %4440 = vmatprep.subr.bf16.mxu0 0
      %4441 = vmatpush1.bf16.msra.mxu0 %v4111
      %4442 = vmatprep.subr.bf16.mxu0 0
      %4443 = vmatpush1.bf16.msra.mxu0 %v4122
      %4444 = vmatprep.subr.bf16.mxu0 0
      %4445 = vmatpush1.bf16.msra.mxu0 %v4123
      %4446 = vmatprep.subr.bf16.mxu0 0
      %4447 = vmatpush1.bf16.msra.mxu0 %v4134
      %4448 = vmatprep.subr.bf16.mxu0 0
      %4449 = vmatpush1.bf16.msra.mxu0 %v4135
      %4450 = vmatprep.subr.bf16.mxu0 0
      %4451 = vmatpush1.bf16.msra.mxu0 %v4146
      %4452 = vmatprep.subr.bf16.mxu0 0
      %4453 = vmatpush1.bf16.msra.mxu0 %v4147
      %4454 = vmatprep.mubr.bf16.mxu0 %v3433
      %4455 = vmatmul.mubr.bf16.gmra.mrb[0].mxu0 %v3431
      %v4456 = vpop.f32.mrb[0].mxu0
      %v4457 = vadd.f32 %v4417, %v4456
      %v4458 = vpop.f32.mrb[0].mxu0
      %v4459 = vpop.f32.mrb[0].mxu0
      %v4460 = vpop.f32.mrb[0].mxu0
      %4461 = vdwg.mxu0
      %4462 = vmatprep.subr.bf16.mxu0 0
      %4463 = vmatpush1.bf16.msra.mxu0 %v4338
      %4464 = vmatprep.subr.bf16.mxu0 0
      %4465 = vmatpush1.bf16.msra.mxu0 %v4339
      %4466 = vmatprep.subr.bf16.mxu0 0
      %4467 = vmatpush1.bf16.msra.mxu0 %v4340
      %4468 = vmatprep.subr.bf16.mxu0 0
      %4469 = vmatpush1.bf16.msra.mxu0 %v4341
      %4470 = vmatprep.subr.bf16.mxu0 0
      %4471 = vmatpush1.bf16.msra.mxu0 %v4342
      %4472 = vmatprep.subr.bf16.mxu0 0
      %4473 = vmatpush1.bf16.msra.mxu0 %v4343
      %4474 = vmatprep.subr.bf16.mxu0 0
      %4475 = vmatpush1.bf16.msra.mxu0 %v4344
      %4476 = vmatprep.subr.bf16.mxu0 0
      %4477 = vmatpush1.bf16.msra.mxu0 %v4345
      %4478 = vmatprep.subr.bf16.mxu0 0
      %4479 = vmatpush1.bf16.msra.mxu0 %v4346
      %4480 = vmatprep.subr.bf16.mxu0 0
      %4481 = vmatpush1.bf16.msra.mxu0 %v4347
      %4482 = vmatprep.subr.bf16.mxu0 0
      %4483 = vmatpush1.bf16.msra.mxu0 %v4348
      %4484 = vmatprep.subr.bf16.mxu0 0
      %4485 = vmatpush1.bf16.msra.mxu0 %v4349
      %4486 = vmatprep.subr.bf16.mxu0 0
      %4487 = vmatpush1.bf16.msra.mxu0 %v4350
      %4488 = vmatprep.subr.bf16.mxu0 0
      %4489 = vmatpush1.bf16.msra.mxu0 %v4351
      %4490 = vmatprep.subr.bf16.mxu0 0
      %4491 = vmatpush1.bf16.msra.mxu0 %v4352
      %4492 = vmatprep.subr.bf16.mxu0 0
      %4493 = vmatpush1.bf16.msra.mxu0 %v4353
      %4494 = vmatprep.mubr.bf16.mxu0 %v3449
      %4495 = vmatmul.mubr.bf16.gmra.mrb[0].mxu0 %v3441
      %v4496 = vpop.f32.mrb[0].mxu0
      %v4497 = vadd.f32 %v4457, %v4496
      %v4498 = vpop.f32.mrb[0].mxu0
      %v4499 = vpop.f32.mrb[0].mxu0
      %v4500 = vpop.f32.mrb[0].mxu0
      %4501 = vdwg.mxu0
      %4502 = vmatprep.subr.bf16.mxu0 0
      %4503 = vmatpush1.bf16.msra.mxu0 %v4354
      %4504 = vmatprep.subr.bf16.mxu0 0
      %4505 = vmatpush1.bf16.msra.mxu0 %v4355
      %4506 = vmatprep.subr.bf16.mxu0 0
      %4507 = vmatpush1.bf16.msra.mxu0 %v4356
      %4508 = vmatprep.subr.bf16.mxu0 0
      %4509 = vmatpush1.bf16.msra.mxu0 %v4357
      %4510 = vmatprep.subr.bf16.mxu0 0
      %4511 = vmatpush1.bf16.msra.mxu0 %v4358
      %4512 = vmatprep.subr.bf16.mxu0 0
      %4513 = vmatpush1.bf16.msra.mxu0 %v4359
      %4514 = vmatprep.subr.bf16.mxu0 0
      %4515 = vmatpush1.bf16.msra.mxu0 0
      %4516 = vmatprep.subr.bf16.mxu0 0
      %4517 = vmatpush1.bf16.msra.mxu0 0
      %4518 = vmatprep.subr.bf16.mxu0 0
      %4519 = vmatpush1.bf16.msra.mxu0 0
      %4520 = vmatprep.subr.bf16.mxu0 0
      %4521 = vmatpush1.bf16.msra.mxu0 0
      %4522 = vmatprep.subr.bf16.mxu0 0
      %4523 = vmatpush1.bf16.msra.mxu0 0
      %4524 = vmatprep.subr.bf16.mxu0 0
      %4525 = vmatpush1.bf16.msra.mxu0 0
      %4526 = vmatprep.subr.bf16.mxu0 0
      %4527 = vmatpush1.bf16.msra.mxu0 0
      %4528 = vmatprep.subr.bf16.mxu0 0
      %4529 = vmatpush1.bf16.msra.mxu0 0
      %4530 = vmatprep.subr.bf16.mxu0 0
      %4531 = vmatpush1.bf16.msra.mxu0 0
      %4532 = vmatprep.subr.bf16.mxu0 0
      %4533 = vmatpush1.bf16.msra.mxu0 0
      %4534 = vmatprep.mubr.bf16.mxu0 0
      %4535 = vmatmul.mubr.bf16.gmra.mrb[0].mxu0 %v3458
      %v4536 = vpop.f32.mrb[0].mxu0
      %v4537 = vadd.f32 %v4497, %v4536
      %v4538 = vpop.f32.mrb[0].mxu0
      %v4539 = vpop.f32.mrb[0].mxu0
      %v4540 = vpop.f32.mrb[0].mxu0
      %4541 = vdwg.mxu0
      %v4542 = vpack.c.bf16 %v4537, %v4537
      %v4543 = vld [vmem:[%s344 + $0x8] sm:$0x3]
      %v4544 = vsel %vm3816, %v4542, %v4543
      %4545 = vst [vmem:[%s344 + $0x8] sm:$0x3] %v4544
      %v4546 = vld [vmem:[%s335 + $0x5] sm:$0x3]
      %v4547 = vadd.s32 %v3834, 512
      %vm4548 = vcmp.lt.s32.totalorder %v4547, 576
      %v4549 = vsel %vm4548, 1, 0
      %v4550 = vcvt.s32.f32 %v4549
      %v4553 = vunpack.c.l.s4 1966171168
      %v4554 = vunpack.c.0.s8 %v4553
      %v4555 = vlaneseq
      %v4556 = vshrl.u32 %v4555, 7
      %v4557 = vsub.s32 %v4554, %v4556
      %v4558 = vrot.slane %v4550, %v4557
      %v4560 = vunpack.c.l.s4 1966171168
      %v4561 = vunpack.c.0.s8 %v4560
      %v4562 = vlaneseq
      %v4563 = vshrl.u32 %v4562, 7
      %v4564 = vsub.s32 %v4561, %v4563
      %v4565 = vrot.slane %v4558, %v4564
      %4566 = vrot.lane.b32.xlu0 %v4565, 29
      %v4567 = vpop.permute.xlu0 %4566
      %v4568 = vrot.slane %v4567, 7
      %v4569 = vsel %vm3881, %v4568, %v4567
      %v4571 = vmul.f32 %v4546, %v4569
      %v4573 = vlaneseq
      %v4574 = vshrl.u32 %v4573, 7
      %v4575 = vsub.s32 0, %v4574
      %v4576 = vrot.slane %v4571, %v4575
      %v4577 = vlaneseq
      %v4578 = vshrl.u32 %v4577, 7
      %v4579 = vsub.s32 1, %v4578
      %v4580 = vrot.slane %v4571, %v4579
      %4581 = vrot.lane.b32.xlu0 %v4576, 99
      %v4582 = vpop.permute.xlu0 %4581
      %4583 = vrot.lane.b32.xlu0 %v4580, 99
      %v4584 = vpop.permute.xlu0 %4583
      %v4585 = vsel %vm3916, %v4582, %v4584
      %v4587 = vmul.f32 %v4537, %v4585
      %v4588 = vsel %vm3929, %v4587, 0.0
      %4589 = vadd.xlane.f32.xlu0 %v4588
      %v4590 = vpop.xlane.xlu0 %4589
      %v4591 = vadd.f32 %v3939, %v4590
      %v4592 = vmul.f32 %v4587, %v4537
      %v4593 = vsel %vm3929, %v4592, 0.0
      %4594 = vadd.xlane.f32.xlu0 %v4593
      %v4595 = vpop.xlane.xlu0 %4594
      %v4596 = vadd.f32 %v3953, %v4595
      %vm4597 = vcmask 7168
      %v4598 = vsel %vm4597, %v4591, %v4596
      %vm4599 = vcmask 10240
      %4600 = vst.msk [vmem:[%s352] sm:$0x7] %vm4599, %v4598
      %p4601 = scmp.lt.s32.totalorder %s23, 1
      %s4602 = scalar_select %p4601, %s23, 1
      %p4603 = scmp.lt.s32.totalorder %s24, 1
      %s4604 = scalar_select %p4603, %s24, 1
      %s4605 = smul.addr %s4604, 5
      %s4606 = smul.addr %s4602, 10
      %s4607 = sadd.s32 %s4605, %s4606
      %s4608 = smul.addr %s4607, 2
      %s4609 = scalar_lea.vmem %s6, %s4608
      %p4610 = scmp.lt.s32.totalorder %s23, 1
      %s4611 = scalar_select %p4610, %s23, 1
      %p4612 = scmp.lt.s32.totalorder %s24, 1
      %s4613 = scalar_select %p4612, %s24, 1
      %s4614 = smul.addr %s4611, 2
      %s4615 = sadd.s32 %s4613, %s4614
      %s4616 = smul.addr %s4615, 4
      %s4617 = scalar_lea.vmem %s7, %s4616
      // Predicated region
      $region45: #{conv_ins_block_forward.2} parent=43 // pred_check
        %p4618 = pneg %p189
      $region46: #{conv_ins_block_forward.2} parent=43 // pred_check_branch
        %4620 = sbr.rel (%p4618) target = $region48
      $region47: #{conv_ins_block_forward.2} parent=43 // pred_region
        _
      $region48: #{conv_ins_block_forward.2} parent=43 // pred_fallthru
        _
      // Predicated region
      $region49: #{conv_ins_block_forward.2} parent=43 // pred_check
        %p4621 = pneg %p217
      $region50: #{conv_ins_block_forward.2} parent=43 // pred_check_branch
        %4623 = sbr.rel (%p4621) target = $region52
      $region51: #{conv_ins_block_forward.2} parent=43 // pred_region
        _
      $region52: #{conv_ins_block_forward.2} parent=43 // pred_fallthru
        _
    $region44: #{conv_ins_block_forward.2} parent=5 // pred_fallthru
      _
    %p4624 = scmp.le.s32.totalorder 2, %s14
    // Predicated region
    $region53: #{conv_ins_block_forward.2} parent=5 // pred_check
      %p4625 = pneg %p4624
    $region54: #{conv_ins_block_forward.2} parent=5 // pred_check_branch
      %4627 = sbr.rel (%p4625) target = $region56
    $region55: #{conv_ins_block_forward.2} parent=5 // pred_region
      %s4628 = ssub.s32 %s14, 2
      // Predicated region
      $region57: #{conv_ins_block_forward.2} parent=55 // pred_check
        %p4629 = pneg %p195
      $region58: #{conv_ins_block_forward.2} parent=55 // pred_check_branch
        %4631 = sbr.rel (%p4629) target = $region60
      $region59: #{conv_ins_block_forward.2} parent=55 // pred_region
        %p4632 = scmp.lt.s32.totalorder %s25, 1
        %s4633 = scalar_select %p4632, %s25, 1
        %p4634 = scmp.lt.s32.totalorder %s26, 1
        %s4635 = scalar_select %p4634, %s26, 1
        %s4636 = smul.addr %s4635, 5
        %s4637 = smul.addr %s4633, 10
        %s4638 = sadd.s32 %s4636, %s4637
        %s4639 = smul.addr %s4638, 2
        %s4640 = scalar_lea.vmem %s6, %s4639
      $region60: #{conv_ins_block_forward.2} parent=55 // pred_fallthru
        _
      // Predicated region
      $region61: #{conv_ins_block_forward.2} parent=55 // pred_check
        %p4641 = pneg %p223
      $region62: #{conv_ins_block_forward.2} parent=55 // pred_check_branch
        %4643 = sbr.rel (%p4641) target = $region64
      $region63: #{conv_ins_block_forward.2} parent=55 // pred_region
        %p4644 = scmp.lt.s32.totalorder %s25, 1
        %s4645 = scalar_select %p4644, %s25, 1
        %p4646 = scmp.lt.s32.totalorder %s26, 1
        %s4647 = scalar_select %p4646, %s26, 1
        %s4648 = smul.addr %s4645, 2
        %s4649 = sadd.s32 %s4647, %s4648
        %s4650 = smul.addr %s4649, 4
        %s4651 = scalar_lea.vmem %s7, %s4650
      $region64: #{conv_ins_block_forward.2} parent=55 // pred_fallthru
        _
    $region56: #{conv_ins_block_forward.2} parent=5 // pred_fallthru
      _
  $region6: #{conv_ins_block_forward.2} parent=0 // loop_footer
    %s18 = sadd.s32 1, %s14
  $region7: #{conv_ins_block_forward.2} parent=0 // loop_footer_branch
    %13 = sbr.rel target = $region3
  $region8: #{conv_ins_block_forward.2} parent=0 // loop_exit
    _

</llo_original>
